<compile_context>
chip_gen: v5e
topology: v5e:2x2
jax: 0.10.0
libtpu: 0.0.40
codegen_flags: <defaults>
</compile_context>

<pallas_src>
import numpy as np
import jax
import jax.numpy as jnp
from jax.experimental import pallas as pl
from jax.experimental.pallas import tpu as pltpu

# ---- small, module-consistent hyperparameters ----
B = 2
SEQ = 24            # sequence_length (module requires 24..31)
IN = 16             # input_size
EMB = 128           # embedding_dim
FB = 4              # fbase (default is 25; kept small here)
OUT = 10            # output_size
C1, C2, C3 = FB, 2 * FB, 4 * FB
H0, W0 = SEQ, EMB                 # conv input spatial dims (Cin = 1)
H1, W1 = H0 // 2, W0 // 2         # 12, 64
H2, W2 = H1 // 2, W1 // 2         # 6, 32
H3, W3 = H2 // 2, W2 // 2         # 3, 16
LDIM = C3 * H3 * W3               # == fbase*4*3*16
EPS = 1e-5
LANE = 128


# ----------------------------- parameter setup (glue) -----------------------------
def make_params(key):
    ks = jax.random.split(key, 24)

    def u(k, shape, bound):
        return jax.random.uniform(k, shape, jnp.float32, -bound, bound)

    p = {}
    p["emb_w"] = u(ks[0], (IN, EMB), 1.0 / np.sqrt(IN))     # stored (in, out)
    p["emb_b"] = u(ks[1], (EMB,), 1.0 / np.sqrt(IN))
    p["w1"] = u(ks[2], (C1, 1, 4, 4), 1.0 / np.sqrt(1 * 16))
    p["b1"] = u(ks[3], (C1,), 1.0 / np.sqrt(1 * 16))
    p["g1"] = jax.random.uniform(ks[4], (C1,), jnp.float32, 0.5, 1.5)
    p["be1"] = u(ks[5], (C1,), 0.2)
    p["mu1"] = u(ks[6], (C1,), 0.2)
    p["v1"] = jax.random.uniform(ks[7], (C1,), jnp.float32, 0.5, 1.5)
    p["w2"] = u(ks[8], (C2, C1, 4, 4), 1.0 / np.sqrt(C1 * 16))
    p["b2"] = u(ks[9], (C2,), 1.0 / np.sqrt(C1 * 16))
    p["g2"] = jax.random.uniform(ks[10], (C2,), jnp.float32, 0.5, 1.5)
    p["be2"] = u(ks[11], (C2,), 0.2)
    p["mu2"] = u(ks[12], (C2,), 0.2)
    p["v2"] = jax.random.uniform(ks[13], (C2,), jnp.float32, 0.5, 1.5)
    p["w3"] = u(ks[14], (C3, C2, 4, 4), 1.0 / np.sqrt(C2 * 16))
    p["b3"] = u(ks[15], (C3,), 1.0 / np.sqrt(C2 * 16))
    p["g3"] = jax.random.uniform(ks[16], (C3,), jnp.float32, 0.5, 1.5)
    p["be3"] = u(ks[17], (C3,), 0.2)
    p["mu3"] = u(ks[18], (C3,), 0.2)
    p["v3"] = jax.random.uniform(ks[19], (C3,), jnp.float32, 0.5, 1.5)
    p["lin_w"] = u(ks[20], (OUT, LDIM), 1.0 / np.sqrt(LDIM))   # PyTorch (out, in)
    p["lin_b"] = u(ks[21], (OUT,), 1.0 / np.sqrt(LDIM))
    return p


def build_conv_consts(w_oihw, H, W, batch):
    """Stacked block-diagonal selection matrix S (bf16) and banded weights M (bf16).

    Activation layout: input (batch*H, W*Cin), lane = w*Cin + ci; output
    (batch*(H//2), (W//2)*Cout), lane = j*Cout + co.  For each tap kh,
        rows_kh = S[kh*rpad : kh*rpad + batch*Ho] @ X   and   out += rows_kh @ M[kh].
    Tap blocks inside S are padded to a multiple of 8 rows so kernel slices are
    sublane-aligned.
    """
    w_np = np.asarray(w_oihw, np.float32)
    Cout, Cin, KH, KW = w_np.shape
    Ho, Wo = H // 2, W // 2
    rout = batch * Ho
    rpad = ((rout + 7) // 8) * 8
    S = np.zeros((KH, rpad, batch * H), np.float32)
    for kh in range(KH):
        for b in range(batch):
            for i in range(Ho):
                r = 2 * i + kh - 1                    # height padding = 1
                if 0 <= r < H:
                    S[kh, b * Ho + i, b * H + r] = 1.0
    Sstack = S.reshape(KH * rpad, batch * H)
    M = np.zeros((KH, W * Cin, Wo * Cout), np.float32)
    for kh in range(KH):
        for j in range(Wo):
            for kw in range(KW):
                w_in = 2 * j + kw - 1                 # width padding = 1
                if 0 <= w_in < W:
                    for ci in range(Cin):
                        M[kh, w_in * Cin + ci, j * Cout:(j + 1) * Cout] = w_np[:, ci, kh, kw]
    return jnp.asarray(Sstack, jnp.bfloat16), jnp.asarray(M, jnp.bfloat16)


def fold_bn_to_lane(conv_b, gamma, beta, mean, var, Wo):
    """Fold conv bias + eval-mode BatchNorm into per-lane scale/bias vectors (f32)."""
    scale = np.asarray(gamma) / np.sqrt(np.asarray(var) + EPS)
    bias = np.asarray(beta) + (np.asarray(conv_b) - np.asarray(mean)) * scale
    scale_lane = np.tile(scale.astype(np.float32), Wo)[None, :]
    bias_lane = np.tile(bias.astype(np.float32), Wo)[None, :]
    return jnp.asarray(scale_lane), jnp.asarray(bias_lane)


def prepare_kernel_params(p):
    kp = {}
    # embedding: pad input features to 128 lanes (extra rows are zero)
    ew = np.zeros((LANE, EMB), np.float32)
    ew[:IN, :] = np.asarray(p["emb_w"], np.float32)
    kp["emb_w"] = jnp.asarray(ew, jnp.bfloat16)
    kp["emb_b"] = jnp.asarray(np.asarray(p["emb_b"], np.float32)[None, :])

    kp["S1"], kp["M1"] = build_conv_consts(p["w1"], H0, W0, B)
    kp["sc1"], kp["bi1"] = fold_bn_to_lane(p["b1"], p["g1"], p["be1"], p["mu1"], p["v1"], W1)
    kp["S2"], kp["M2"] = build_conv_consts(p["w2"], H1, W1, B)
    kp["sc2"], kp["bi2"] = fold_bn_to_lane(p["b2"], p["g2"], p["be2"], p["mu2"], p["v2"], W2)
    kp["S3"], kp["M3"] = build_conv_consts(p["w3"], H2, W2, B)
    kp["sc3"], kp["bi3"] = fold_bn_to_lane(p["b3"], p["g3"], p["be3"], p["mu3"], p["v3"], W3)

    # final Linear: PyTorch flattens NCHW as (c, h, w); kernel lane order is (w, c), rows h.
    wl = np.asarray(p["lin_w"], np.float32).reshape(OUT, C3, H3, W3)
    wl = wl.transpose(2, 3, 1, 0).reshape(H3, W3 * C3, OUT)        # (H3, 256, OUT)
    lw_cat = np.zeros((W3 * C3, H3 * LANE), np.float32)            # lane-block h holds wl[h]
    for h in range(H3):
        lw_cat[:, h * LANE:h * LANE + OUT] = wl[h]
    kp["lw_cat"] = jnp.asarray(lw_cat, jnp.bfloat16)

    gsel = np.zeros((H3, B, B * H3), np.float32)                   # 0/1 row selection per tap h
    for h in range(H3):
        for b in range(B):
            gsel[h, b, b * H3 + h] = 1.0
    kp["gsel"] = jnp.asarray(gsel)

    lb = np.zeros((1, LANE), np.float32)
    lb[0, :OUT] = np.asarray(p["lin_b"], np.float32)
    kp["lin_b"] = jnp.asarray(lb)
    return kp


# --------------------------------- Pallas kernel ---------------------------------
def text_encoder_kernel(x_ref, ew_ref, eb_ref,
                        s1_ref, m1_ref, sc1_ref, bi1_ref,
                        s2_ref, m2_ref, sc2_ref, bi2_ref,
                        s3_ref, m3_ref, sc3_ref, bi3_ref,
                        lw_ref, g_ref, lb_ref, out_ref):
    # embedding Linear -> (B*SEQ, 128) "image" rows (Cin = 1), bf16 MXU + f32 accumulate
    xb = x_ref[...].astype(jnp.bfloat16)
    act = jnp.dot(xb, ew_ref[...], preferred_element_type=jnp.float32) + eb_ref[...]

    def conv_bn_relu(a, s_ref, m_ref, sc_ref, bi_ref, rout):
        rpad = s_ref.shape[0] // 4
        # one stacked 0/1 selection matmul gathers the rows for all 4 height taps
        rows_all = jnp.dot(s_ref[...], a.astype(jnp.bfloat16),
                           preferred_element_type=jnp.float32).astype(jnp.bfloat16)
        # 4 banded-weight matmuls, f32 accumulate; init with the first tap (no zero-fill)
        acc = jnp.dot(rows_all[0:rout, :], m_ref[0], preferred_element_type=jnp.float32)
        for kh in range(1, 4):
            acc = acc + jnp.dot(rows_all[kh * rpad:kh * rpad + rout, :], m_ref[kh],
                                preferred_element_type=jnp.float32)
        return jnp.maximum(acc * sc_ref[...] + bi_ref[...], 0.0)    # BN(eval) + ReLU, f32 VPU

    act = conv_bn_relu(act, s1_ref, m1_ref, sc1_ref, bi1_ref, B * H1)   # (B*H1, W1*C1)
    act = conv_bn_relu(act, s2_ref, m2_ref, sc2_ref, bi2_ref, B * H2)   # (B*H2, W2*C2)
    act = conv_bn_relu(act, s3_ref, m3_ref, sc3_ref, bi3_ref, B * H3)   # (B*H3, W3*C3)

    # flatten + final Linear: one wide dot, then tiny exact 0/1 row-selection dots
    # that sum lane-block h of row b*H3+h into output row b.  Output is lane-dense (B,128).
    y = jnp.dot(act.astype(jnp.bfloat16), lw_ref[...],
                preferred_element_type=jnp.float32)                     # (B*H3, H3*128)
    out = lb_ref[...]
    for h in range(H3):
        out = out + jnp.dot(g_ref[h], y[:, h * LANE:(h + 1) * LANE],
                            preferred_element_type=jnp.float32,
                            precision=jax.lax.Precision.HIGHEST)        # (2,6)@(6,128): negligible
    out_ref[...] = out


def text_encoder_2d(x, kp):
    # fold batch into rows and widen the input block to 128 lanes (lane-dense DMA)
    xf = x.reshape(B * SEQ, IN)
    x_pad = jnp.pad(xf, ((0, 0), (0, LANE - IN)))

    args = [x_pad, kp["emb_w"], kp["emb_b"],
            kp["S1"], kp["M1"], kp["sc1"], kp["bi1"],
            kp["S2"], kp["M2"], kp["sc2"], kp["bi2"],
            kp["S3"], kp["M3"], kp["sc3"], kp["bi3"],
            kp["lw_cat"], kp["gsel"], kp["lin_b"]]

    vspec = pl.BlockSpec(memory_space=pltpu.MemorySpace.VMEM)   # whole array, single-buffered
    out_pad = pl.pallas_call(
        text_encoder_kernel,
        out_shape=jax.ShapeDtypeStruct((B, LANE), jnp.float32),
        in_specs=[vspec] * len(args),
        out_specs=vspec,
        compiler_params=pltpu.CompilerParams(vmem_limit_bytes=16 * 1024 * 1024),
    )(*args)
    return out_pad[:, :OUT]


# ------------------------------ pure-JAX reference -------------------------------
def reference_forward(x, p):
    hp = jax.lax.Precision.HIGHEST
    h = jnp.einsum("bsi,ie->bse", x, p["emb_w"], precision=hp) + p["emb_b"]
    img = h[:, None, :, :]                                    # NCHW, C = 1

    def conv_bn_relu(y, w, b, g, be, mu, var):
        y = jax.lax.conv_general_dilated(
            y, w, window_strides=(2, 2), padding=((1, 1), (1, 1)),
            dimension_numbers=("NCHW", "OIHW", "NCHW"), precision=hp)
        y = y + b[None, :, None, None]
        y = (y - mu[None, :, None, None]) * (g / jnp.sqrt(var + EPS))[None, :, None, None] \
            + be[None, :, None, None]
        return jnp.maximum(y, 0.0)

    img = conv_bn_relu(img, p["w1"], p["b1"], p["g1"], p["be1"], p["mu1"], p["v1"])
    img = conv_bn_relu(img, p["w2"], p["b2"], p["g2"], p["be2"], p["mu2"], p["v2"])
    img = conv_bn_relu(img, p["w3"], p["b3"], p["g3"], p["be3"], p["mu3"], p["v3"])
    flat = img.reshape(img.shape[0], -1)                      # (B, LDIM), (C,H,W) order
    return jnp.dot(flat, p["lin_w"].T, precision=hp) + p["lin_b"]


if __name__ == "__main__":
    key = jax.random.PRNGKey(0)
    pkey, xkey = jax.random.split(key)
    raw = make_params(pkey)
    kparams = prepare_kernel_params(raw)
    x = jax.random.normal(xkey, (B, SEQ, IN), jnp.float32)

    out = text_encoder_2d(x, kparams)
    out = jax.block_until_ready(out)
    assert out.shape == (B, OUT)

    ref = reference_forward(x, raw)
    rel_err = float(jnp.max(jnp.abs(out - ref)) / (jnp.max(jnp.abs(ref)) + 1e-8))
    assert rel_err < 2e-2, f"kernel/reference mismatch: rel err = {rel_err}"
    print("KERNEL_OK")
</pallas_src>

<mosaic_0001>
module attributes {stable_mosaic.version = 11 : i64} {
  func.func @text_encoder_kernel(%arg0: memref<48x128xf32, #tpu.memory_space<vmem>>, %arg1: memref<128x128xbf16, #tpu.memory_space<vmem>>, %arg2: memref<1x128xf32, #tpu.memory_space<vmem>>, %arg3: memref<96x48xbf16, #tpu.memory_space<vmem>>, %arg4: memref<4x128x256xbf16, #tpu.memory_space<vmem>>, %arg5: memref<1x256xf32, #tpu.memory_space<vmem>>, %arg6: memref<1x256xf32, #tpu.memory_space<vmem>>, %arg7: memref<64x24xbf16, #tpu.memory_space<vmem>>, %arg8: memref<4x256x256xbf16, #tpu.memory_space<vmem>>, %arg9: memref<1x256xf32, #tpu.memory_space<vmem>>, %arg10: memref<1x256xf32, #tpu.memory_space<vmem>>, %arg11: memref<32x12xbf16, #tpu.memory_space<vmem>>, %arg12: memref<4x256x256xbf16, #tpu.memory_space<vmem>>, %arg13: memref<1x256xf32, #tpu.memory_space<vmem>>, %arg14: memref<1x256xf32, #tpu.memory_space<vmem>>, %arg15: memref<256x384xbf16, #tpu.memory_space<vmem>>, %arg16: memref<3x2x6xf32, #tpu.memory_space<vmem>>, %arg17: memref<1x128xf32, #tpu.memory_space<vmem>>, %arg18: memref<2x128xf32, #tpu.memory_space<vmem>>) attributes {dimension_semantics = [], scalar_prefetch = 0 : i64, scratch_operands = 0 : i64, tpu.core_type = #tpu.core_type<tc>} {
    %c0 = arith.constant 0 : index
    %c0_0 = arith.constant 0 : index
    %0 = vector.load %arg0[%c0, %c0_0] : memref<48x128xf32, #tpu.memory_space<vmem>>, vector<48x128xf32>
    %1 = arith.truncf %0 : vector<48x128xf32> to vector<48x128xbf16>
    %c0_1 = arith.constant 0 : index
    %c0_2 = arith.constant 0 : index
    %2 = vector.load %arg1[%c0_1, %c0_2] : memref<128x128xbf16, #tpu.memory_space<vmem>>, vector<128x128xbf16>
    %cst = arith.constant dense<0.000000e+00> : vector<48x128xf32>
    %3 = tpu.matmul %1, %2, %cst {dimension_numbers = #tpu.dot_dimension_numbers<[1], [0], [0], [1], [0, 0, 1, 1], [], []>} : vector<48x128xbf16>, vector<128x128xbf16>, vector<48x128xf32> -> vector<48x128xf32>
    %c0_3 = arith.constant 0 : index
    %c0_4 = arith.constant 0 : index
    %4 = vector.load %arg2[%c0_3, %c0_4] : memref<1x128xf32, #tpu.memory_space<vmem>>, vector<1x128xf32>
    %5 = vector.broadcast %4 : vector<1x128xf32> to vector<48x128xf32>
    %6 = arith.addf %3, %5 : vector<48x128xf32>
    %c0_5 = arith.constant 0 : index
    %c0_6 = arith.constant 0 : index
    %7 = vector.load %arg3[%c0_5, %c0_6] : memref<96x48xbf16, #tpu.memory_space<vmem>>, vector<96x48xbf16>
    %8 = arith.truncf %6 : vector<48x128xf32> to vector<48x128xbf16>
    %cst_7 = arith.constant dense<0.000000e+00> : vector<96x128xf32>
    %9 = tpu.matmul %7, %8, %cst_7 {dimension_numbers = #tpu.dot_dimension_numbers<[1], [0], [0], [1], [0, 0, 1, 1], [], []>} : vector<96x48xbf16>, vector<48x128xbf16>, vector<96x128xf32> -> vector<96x128xf32>
    %10 = arith.truncf %9 : vector<96x128xf32> to vector<96x128xbf16>
    %11 = vector.extract_strided_slice %10 {offsets = [0, 0], sizes = [24, 128], strides = [1, 1]} : vector<96x128xbf16> to vector<24x128xbf16>
    %c0_8 = arith.constant 0 : index
    %c0_9 = arith.constant 0 : index
    %c0_10 = arith.constant 0 : index
    %12 = vector.load %arg4[%c0_8, %c0_9, %c0_10] : memref<4x128x256xbf16, #tpu.memory_space<vmem>>, vector<1x128x256xbf16>
    %13 = vector.shape_cast %12 : vector<1x128x256xbf16> to vector<128x256xbf16>
    %cst_11 = arith.constant dense<0.000000e+00> : vector<24x256xf32>
    %14 = tpu.matmul %11, %13, %cst_11 {dimension_numbers = #tpu.dot_dimension_numbers<[1], [0], [0], [1], [0, 0, 1, 1], [], []>} : vector<24x128xbf16>, vector<128x256xbf16>, vector<24x256xf32> -> vector<24x256xf32>
    %15 = vector.extract_strided_slice %10 {offsets = [24, 0], sizes = [24, 128], strides = [1, 1]} : vector<96x128xbf16> to vector<24x128xbf16>
    %c1 = arith.constant 1 : index
    %c0_12 = arith.constant 0 : index
    %c0_13 = arith.constant 0 : index
    %16 = vector.load %arg4[%c1, %c0_12, %c0_13] : memref<4x128x256xbf16, #tpu.memory_space<vmem>>, vector<1x128x256xbf16>
    %17 = vector.shape_cast %16 : vector<1x128x256xbf16> to vector<128x256xbf16>
    %cst_14 = arith.constant dense<0.000000e+00> : vector<24x256xf32>
    %18 = tpu.matmul %15, %17, %cst_14 {dimension_numbers = #tpu.dot_dimension_numbers<[1], [0], [0], [1], [0, 0, 1, 1], [], []>} : vector<24x128xbf16>, vector<128x256xbf16>, vector<24x256xf32> -> vector<24x256xf32>
    %19 = arith.addf %14, %18 : vector<24x256xf32>
    %20 = vector.extract_strided_slice %10 {offsets = [48, 0], sizes = [24, 128], strides = [1, 1]} : vector<96x128xbf16> to vector<24x128xbf16>
    %c2 = arith.constant 2 : index
    %c0_15 = arith.constant 0 : index
    %c0_16 = arith.constant 0 : index
    %21 = vector.load %arg4[%c2, %c0_15, %c0_16] : memref<4x128x256xbf16, #tpu.memory_space<vmem>>, vector<1x128x256xbf16>
    %22 = vector.shape_cast %21 : vector<1x128x256xbf16> to vector<128x256xbf16>
    %cst_17 = arith.constant dense<0.000000e+00> : vector<24x256xf32>
    %23 = tpu.matmul %20, %22, %cst_17 {dimension_numbers = #tpu.dot_dimension_numbers<[1], [0], [0], [1], [0, 0, 1, 1], [], []>} : vector<24x128xbf16>, vector<128x256xbf16>, vector<24x256xf32> -> vector<24x256xf32>
    %24 = arith.addf %19, %23 : vector<24x256xf32>
    %25 = vector.extract_strided_slice %10 {offsets = [72, 0], sizes = [24, 128], strides = [1, 1]} : vector<96x128xbf16> to vector<24x128xbf16>
    %c3 = arith.constant 3 : index
    %c0_18 = arith.constant 0 : index
    %c0_19 = arith.constant 0 : index
    %26 = vector.load %arg4[%c3, %c0_18, %c0_19] : memref<4x128x256xbf16, #tpu.memory_space<vmem>>, vector<1x128x256xbf16>
    %27 = vector.shape_cast %26 : vector<1x128x256xbf16> to vector<128x256xbf16>
    %cst_20 = arith.constant dense<0.000000e+00> : vector<24x256xf32>
    %28 = tpu.matmul %25, %27, %cst_20 {dimension_numbers = #tpu.dot_dimension_numbers<[1], [0], [0], [1], [0, 0, 1, 1], [], []>} : vector<24x128xbf16>, vector<128x256xbf16>, vector<24x256xf32> -> vector<24x256xf32>
    %29 = arith.addf %24, %28 : vector<24x256xf32>
    %c0_21 = arith.constant 0 : index
    %c0_22 = arith.constant 0 : index
    %30 = vector.load %arg5[%c0_21, %c0_22] : memref<1x256xf32, #tpu.memory_space<vmem>>, vector<1x256xf32>
    %31 = vector.broadcast %30 : vector<1x256xf32> to vector<24x256xf32>
    %32 = arith.mulf %29, %31 : vector<24x256xf32>
    %c0_23 = arith.constant 0 : index
    %c0_24 = arith.constant 0 : index
    %33 = vector.load %arg6[%c0_23, %c0_24] : memref<1x256xf32, #tpu.memory_space<vmem>>, vector<1x256xf32>
    %34 = vector.broadcast %33 : vector<1x256xf32> to vector<24x256xf32>
    %35 = arith.addf %32, %34 : vector<24x256xf32>
    %cst_25 = arith.constant 0.000000e+00 : f32
    %36 = vector.broadcast %cst_25 : f32 to vector<24x256xf32>
    %37 = arith.maximumf %35, %36 : vector<24x256xf32>
    %c0_26 = arith.constant 0 : index
    %c0_27 = arith.constant 0 : index
    %38 = vector.load %arg7[%c0_26, %c0_27] : memref<64x24xbf16, #tpu.memory_space<vmem>>, vector<64x24xbf16>
    %39 = arith.truncf %37 : vector<24x256xf32> to vector<24x256xbf16>
    %cst_28 = arith.constant dense<0.000000e+00> : vector<64x256xf32>
    %40 = tpu.matmul %38, %39, %cst_28 {dimension_numbers = #tpu.dot_dimension_numbers<[1], [0], [0], [1], [0, 0, 1, 1], [], []>} : vector<64x24xbf16>, vector<24x256xbf16>, vector<64x256xf32> -> vector<64x256xf32>
    %41 = arith.truncf %40 : vector<64x256xf32> to vector<64x256xbf16>
    %42 = vector.extract_strided_slice %41 {offsets = [0, 0], sizes = [12, 256], strides = [1, 1]} : vector<64x256xbf16> to vector<12x256xbf16>
    %c0_29 = arith.constant 0 : index
    %c0_30 = arith.constant 0 : index
    %c0_31 = arith.constant 0 : index
    %43 = vector.load %arg8[%c0_29, %c0_30, %c0_31] : memref<4x256x256xbf16, #tpu.memory_space<vmem>>, vector<1x256x256xbf16>
    %44 = vector.shape_cast %43 : vector<1x256x256xbf16> to vector<256x256xbf16>
    %cst_32 = arith.constant dense<0.000000e+00> : vector<12x256xf32>
    %45 = tpu.matmul %42, %44, %cst_32 {dimension_numbers = #tpu.dot_dimension_numbers<[1], [0], [0], [1], [0, 0, 1, 1], [], []>} : vector<12x256xbf16>, vector<256x256xbf16>, vector<12x256xf32> -> vector<12x256xf32>
    %46 = vector.extract_strided_slice %41 {offsets = [16, 0], sizes = [12, 256], strides = [1, 1]} : vector<64x256xbf16> to vector<12x256xbf16>
    %c1_33 = arith.constant 1 : index
    %c0_34 = arith.constant 0 : index
    %c0_35 = arith.constant 0 : index
    %47 = vector.load %arg8[%c1_33, %c0_34, %c0_35] : memref<4x256x256xbf16, #tpu.memory_space<vmem>>, vector<1x256x256xbf16>
    %48 = vector.shape_cast %47 : vector<1x256x256xbf16> to vector<256x256xbf16>
    %cst_36 = arith.constant dense<0.000000e+00> : vector<12x256xf32>
    %49 = tpu.matmul %46, %48, %cst_36 {dimension_numbers = #tpu.dot_dimension_numbers<[1], [0], [0], [1], [0, 0, 1, 1], [], []>} : vector<12x256xbf16>, vector<256x256xbf16>, vector<12x256xf32> -> vector<12x256xf32>
    %50 = arith.addf %45, %49 : vector<12x256xf32>
    %51 = vector.extract_strided_slice %41 {offsets = [32, 0], sizes = [12, 256], strides = [1, 1]} : vector<64x256xbf16> to vector<12x256xbf16>
    %c2_37 = arith.constant 2 : index
    %c0_38 = arith.constant 0 : index
    %c0_39 = arith.constant 0 : index
    %52 = vector.load %arg8[%c2_37, %c0_38, %c0_39] : memref<4x256x256xbf16, #tpu.memory_space<vmem>>, vector<1x256x256xbf16>
    %53 = vector.shape_cast %52 : vector<1x256x256xbf16> to vector<256x256xbf16>
    %cst_40 = arith.constant dense<0.000000e+00> : vector<12x256xf32>
    %54 = tpu.matmul %51, %53, %cst_40 {dimension_numbers = #tpu.dot_dimension_numbers<[1], [0], [0], [1], [0, 0, 1, 1], [], []>} : vector<12x256xbf16>, vector<256x256xbf16>, vector<12x256xf32> -> vector<12x256xf32>
    %55 = arith.addf %50, %54 : vector<12x256xf32>
    %56 = vector.extract_strided_slice %41 {offsets = [48, 0], sizes = [12, 256], strides = [1, 1]} : vector<64x256xbf16> to vector<12x256xbf16>
    %c3_41 = arith.constant 3 : index
    %c0_42 = arith.constant 0 : index
    %c0_43 = arith.constant 0 : index
    %57 = vector.load %arg8[%c3_41, %c0_42, %c0_43] : memref<4x256x256xbf16, #tpu.memory_space<vmem>>, vector<1x256x256xbf16>
    %58 = vector.shape_cast %57 : vector<1x256x256xbf16> to vector<256x256xbf16>
    %cst_44 = arith.constant dense<0.000000e+00> : vector<12x256xf32>
    %59 = tpu.matmul %56, %58, %cst_44 {dimension_numbers = #tpu.dot_dimension_numbers<[1], [0], [0], [1], [0, 0, 1, 1], [], []>} : vector<12x256xbf16>, vector<256x256xbf16>, vector<12x256xf32> -> vector<12x256xf32>
    %60 = arith.addf %55, %59 : vector<12x256xf32>
    %c0_45 = arith.constant 0 : index
    %c0_46 = arith.constant 0 : index
    %61 = vector.load %arg9[%c0_45, %c0_46] : memref<1x256xf32, #tpu.memory_space<vmem>>, vector<1x256xf32>
    %62 = vector.broadcast %61 : vector<1x256xf32> to vector<12x256xf32>
    %63 = arith.mulf %60, %62 : vector<12x256xf32>
    %c0_47 = arith.constant 0 : index
    %c0_48 = arith.constant 0 : index
    %64 = vector.load %arg10[%c0_47, %c0_48] : memref<1x256xf32, #tpu.memory_space<vmem>>, vector<1x256xf32>
    %65 = vector.broadcast %64 : vector<1x256xf32> to vector<12x256xf32>
    %66 = arith.addf %63, %65 : vector<12x256xf32>
    %cst_49 = arith.constant 0.000000e+00 : f32
    %67 = vector.broadcast %cst_49 : f32 to vector<12x256xf32>
    %68 = arith.maximumf %66, %67 : vector<12x256xf32>
    %c0_50 = arith.constant 0 : index
    %c0_51 = arith.constant 0 : index
    %69 = vector.load %arg11[%c0_50, %c0_51] : memref<32x12xbf16, #tpu.memory_space<vmem>>, vector<32x12xbf16>
    %70 = arith.truncf %68 : vector<12x256xf32> to vector<12x256xbf16>
    %cst_52 = arith.constant dense<0.000000e+00> : vector<32x256xf32>
    %71 = tpu.matmul %69, %70, %cst_52 {dimension_numbers = #tpu.dot_dimension_numbers<[1], [0], [0], [1], [0, 0, 1, 1], [], []>} : vector<32x12xbf16>, vector<12x256xbf16>, vector<32x256xf32> -> vector<32x256xf32>
    %72 = arith.truncf %71 : vector<32x256xf32> to vector<32x256xbf16>
    %73 = vector.extract_strided_slice %72 {offsets = [0, 0], sizes = [6, 256], strides = [1, 1]} : vector<32x256xbf16> to vector<6x256xbf16>
    %c0_53 = arith.constant 0 : index
    %c0_54 = arith.constant 0 : index
    %c0_55 = arith.constant 0 : index
    %74 = vector.load %arg12[%c0_53, %c0_54, %c0_55] : memref<4x256x256xbf16, #tpu.memory_space<vmem>>, vector<1x256x256xbf16>
    %75 = vector.shape_cast %74 : vector<1x256x256xbf16> to vector<256x256xbf16>
    %cst_56 = arith.constant dense<0.000000e+00> : vector<6x256xf32>
    %76 = tpu.matmul %73, %75, %cst_56 {dimension_numbers = #tpu.dot_dimension_numbers<[1], [0], [0], [1], [0, 0, 1, 1], [], []>} : vector<6x256xbf16>, vector<256x256xbf16>, vector<6x256xf32> -> vector<6x256xf32>
    %77 = vector.extract_strided_slice %72 {offsets = [8, 0], sizes = [6, 256], strides = [1, 1]} : vector<32x256xbf16> to vector<6x256xbf16>
    %c1_57 = arith.constant 1 : index
    %c0_58 = arith.constant 0 : index
    %c0_59 = arith.constant 0 : index
    %78 = vector.load %arg12[%c1_57, %c0_58, %c0_59] : memref<4x256x256xbf16, #tpu.memory_space<vmem>>, vector<1x256x256xbf16>
    %79 = vector.shape_cast %78 : vector<1x256x256xbf16> to vector<256x256xbf16>
    %cst_60 = arith.constant dense<0.000000e+00> : vector<6x256xf32>
    %80 = tpu.matmul %77, %79, %cst_60 {dimension_numbers = #tpu.dot_dimension_numbers<[1], [0], [0], [1], [0, 0, 1, 1], [], []>} : vector<6x256xbf16>, vector<256x256xbf16>, vector<6x256xf32> -> vector<6x256xf32>
    %81 = arith.addf %76, %80 : vector<6x256xf32>
    %82 = vector.extract_strided_slice %72 {offsets = [16, 0], sizes = [6, 256], strides = [1, 1]} : vector<32x256xbf16> to vector<6x256xbf16>
    %c2_61 = arith.constant 2 : index
    %c0_62 = arith.constant 0 : index
    %c0_63 = arith.constant 0 : index
    %83 = vector.load %arg12[%c2_61, %c0_62, %c0_63] : memref<4x256x256xbf16, #tpu.memory_space<vmem>>, vector<1x256x256xbf16>
    %84 = vector.shape_cast %83 : vector<1x256x256xbf16> to vector<256x256xbf16>
    %cst_64 = arith.constant dense<0.000000e+00> : vector<6x256xf32>
    %85 = tpu.matmul %82, %84, %cst_64 {dimension_numbers = #tpu.dot_dimension_numbers<[1], [0], [0], [1], [0, 0, 1, 1], [], []>} : vector<6x256xbf16>, vector<256x256xbf16>, vector<6x256xf32> -> vector<6x256xf32>
    %86 = arith.addf %81, %85 : vector<6x256xf32>
    %87 = vector.extract_strided_slice %72 {offsets = [24, 0], sizes = [6, 256], strides = [1, 1]} : vector<32x256xbf16> to vector<6x256xbf16>
    %c3_65 = arith.constant 3 : index
    %c0_66 = arith.constant 0 : index
    %c0_67 = arith.constant 0 : index
    %88 = vector.load %arg12[%c3_65, %c0_66, %c0_67] : memref<4x256x256xbf16, #tpu.memory_space<vmem>>, vector<1x256x256xbf16>
    %89 = vector.shape_cast %88 : vector<1x256x256xbf16> to vector<256x256xbf16>
    %cst_68 = arith.constant dense<0.000000e+00> : vector<6x256xf32>
    %90 = tpu.matmul %87, %89, %cst_68 {dimension_numbers = #tpu.dot_dimension_numbers<[1], [0], [0], [1], [0, 0, 1, 1], [], []>} : vector<6x256xbf16>, vector<256x256xbf16>, vector<6x256xf32> -> vector<6x256xf32>
    %91 = arith.addf %86, %90 : vector<6x256xf32>
    %c0_69 = arith.constant 0 : index
    %c0_70 = arith.constant 0 : index
    %92 = vector.load %arg13[%c0_69, %c0_70] : memref<1x256xf32, #tpu.memory_space<vmem>>, vector<1x256xf32>
    %93 = vector.broadcast %92 : vector<1x256xf32> to vector<6x256xf32>
    %94 = arith.mulf %91, %93 : vector<6x256xf32>
    %c0_71 = arith.constant 0 : index
    %c0_72 = arith.constant 0 : index
    %95 = vector.load %arg14[%c0_71, %c0_72] : memref<1x256xf32, #tpu.memory_space<vmem>>, vector<1x256xf32>
    %96 = vector.broadcast %95 : vector<1x256xf32> to vector<6x256xf32>
    %97 = arith.addf %94, %96 : vector<6x256xf32>
    %cst_73 = arith.constant 0.000000e+00 : f32
    %98 = vector.broadcast %cst_73 : f32 to vector<6x256xf32>
    %99 = arith.maximumf %97, %98 : vector<6x256xf32>
    %100 = arith.truncf %99 : vector<6x256xf32> to vector<6x256xbf16>
    %c0_74 = arith.constant 0 : index
    %c0_75 = arith.constant 0 : index
    %101 = vector.load %arg15[%c0_74, %c0_75] : memref<256x384xbf16, #tpu.memory_space<vmem>>, vector<256x384xbf16>
    %cst_76 = arith.constant dense<0.000000e+00> : vector<6x384xf32>
    %102 = tpu.matmul %100, %101, %cst_76 {dimension_numbers = #tpu.dot_dimension_numbers<[1], [0], [0], [1], [0, 0, 1, 1], [], []>} : vector<6x256xbf16>, vector<256x384xbf16>, vector<6x384xf32> -> vector<6x384xf32>
    %c0_77 = arith.constant 0 : index
    %c0_78 = arith.constant 0 : index
    %103 = vector.load %arg17[%c0_77, %c0_78] : memref<1x128xf32, #tpu.memory_space<vmem>>, vector<1x128xf32>
    %c0_79 = arith.constant 0 : index
    %c0_80 = arith.constant 0 : index
    %c0_81 = arith.constant 0 : index
    %104 = vector.load %arg16[%c0_79, %c0_80, %c0_81] : memref<3x2x6xf32, #tpu.memory_space<vmem>>, vector<1x2x6xf32>
    %105 = vector.shape_cast %104 : vector<1x2x6xf32> to vector<2x6xf32>
    %106 = vector.extract_strided_slice %102 {offsets = [0, 0], sizes = [6, 128], strides = [1, 1]} : vector<6x384xf32> to vector<6x128xf32>
    %cst_82 = arith.constant dense<0.000000e+00> : vector<2x128xf32>
    %107 = tpu.matmul %105, %106, %cst_82 {dimension_numbers = #tpu.dot_dimension_numbers<[1], [0], [0], [1], [0, 0, 1, 1], [], []>, precision = #tpu.contract_precision<fp32>} : vector<2x6xf32>, vector<6x128xf32>, vector<2x128xf32> -> vector<2x128xf32>
    %108 = vector.broadcast %103 : vector<1x128xf32> to vector<2x128xf32>
    %109 = arith.addf %108, %107 : vector<2x128xf32>
    %c1_83 = arith.constant 1 : index
    %c0_84 = arith.constant 0 : index
    %c0_85 = arith.constant 0 : index
    %110 = vector.load %arg16[%c1_83, %c0_84, %c0_85] : memref<3x2x6xf32, #tpu.memory_space<vmem>>, vector<1x2x6xf32>
    %111 = vector.shape_cast %110 : vector<1x2x6xf32> to vector<2x6xf32>
    %112 = vector.extract_strided_slice %102 {offsets = [0, 128], sizes = [6, 128], strides = [1, 1]} : vector<6x384xf32> to vector<6x128xf32>
    %cst_86 = arith.constant dense<0.000000e+00> : vector<2x128xf32>
    %113 = tpu.matmul %111, %112, %cst_86 {dimension_numbers = #tpu.dot_dimension_numbers<[1], [0], [0], [1], [0, 0, 1, 1], [], []>, precision = #tpu.contract_precision<fp32>} : vector<2x6xf32>, vector<6x128xf32>, vector<2x128xf32> -> vector<2x128xf32>
    %114 = arith.addf %109, %113 : vector<2x128xf32>
    %c2_87 = arith.constant 2 : index
    %c0_88 = arith.constant 0 : index
    %c0_89 = arith.constant 0 : index
    %115 = vector.load %arg16[%c2_87, %c0_88, %c0_89] : memref<3x2x6xf32, #tpu.memory_space<vmem>>, vector<1x2x6xf32>
    %116 = vector.shape_cast %115 : vector<1x2x6xf32> to vector<2x6xf32>
    %117 = vector.extract_strided_slice %102 {offsets = [0, 256], sizes = [6, 128], strides = [1, 1]} : vector<6x384xf32> to vector<6x128xf32>
    %cst_90 = arith.constant dense<0.000000e+00> : vector<2x128xf32>
    %118 = tpu.matmul %116, %117, %cst_90 {dimension_numbers = #tpu.dot_dimension_numbers<[1], [0], [0], [1], [0, 0, 1, 1], [], []>, precision = #tpu.contract_precision<fp32>} : vector<2x6xf32>, vector<6x128xf32>, vector<2x128xf32> -> vector<2x128xf32>
    %119 = arith.addf %114, %118 : vector<2x128xf32>
    %c0_91 = arith.constant 0 : index
    %c0_92 = arith.constant 0 : index
    %120 = vector.load %arg18[%c0_91, %c0_92] : memref<2x128xf32, #tpu.memory_space<vmem>>, vector<2x128xf32>
    tpu.vector_store %arg18[%c0_91, %c0_92], %119 {strides = array<i32>} : memref<2x128xf32, #tpu.memory_space<vmem>>, vector<2x128xf32>,
    return
  }
}

</mosaic_0001>

<llo_original>
// kernel: tpu_custom_call.1
$region0: #{tpu_custom_call.1}
  #allocation0 [shape = 'u32[]', space=smem, size = 0x4, offset = 0x4, fixed_abs, tag = 'smem constant byte address 0x4 - core index']
  #allocation1 [shape = 'u32[72,128]{1,0:T(1,128)}', space=vmem, size = 0x9000, scoped, tag = 'internal scratch']
  %s0 = inlined_call_operand.hbm [shape: f32[48,128], index: 0, kind: input, shape index: {}]
  %s1 = inlined_call_operand.vmem [shape: bf16[128,128], index: 1, kind: input, shape index: {}]
  %s2 = inlined_call_operand.vmem [shape: f32[1,128], index: 2, kind: input, shape index: {}]
  %s3 = inlined_call_operand.vmem [shape: bf16[96,48], index: 3, kind: input, shape index: {}]
  %s4 = inlined_call_operand.hbm [shape: bf16[4,128,256], index: 4, kind: input, shape index: {}]
  %s5 = inlined_call_operand.vmem [shape: f32[1,256], index: 5, kind: input, shape index: {}]
  %s6 = inlined_call_operand.vmem [shape: f32[1,256], index: 6, kind: input, shape index: {}]
  %s7 = inlined_call_operand.vmem [shape: bf16[64,24], index: 7, kind: input, shape index: {}]
  %s8 = inlined_call_operand.hbm [shape: bf16[4,256,256], index: 8, kind: input, shape index: {}]
  %s9 = inlined_call_operand.vmem [shape: f32[1,256], index: 9, kind: input, shape index: {}]
  %s10 = inlined_call_operand.vmem [shape: f32[1,256], index: 10, kind: input, shape index: {}]
  %s11 = inlined_call_operand.vmem [shape: bf16[32,12], index: 11, kind: input, shape index: {}]
  %s12 = inlined_call_operand.hbm [shape: bf16[4,256,256], index: 12, kind: input, shape index: {}]
  %s13 = inlined_call_operand.vmem [shape: f32[1,256], index: 13, kind: input, shape index: {}]
  %s14 = inlined_call_operand.vmem [shape: f32[1,256], index: 14, kind: input, shape index: {}]
  %s15 = inlined_call_operand.hbm [shape: bf16[256,384], index: 15, kind: input, shape index: {}]
  %s16 = inlined_call_operand.vmem [shape: f32[3,2,6], index: 16, kind: input, shape index: {}]
  %s17 = inlined_call_operand.vmem [shape: f32[1,128], index: 17, kind: input, shape index: {}]
  %s18 = inlined_call_operand.hbm [shape: f32[2,128], index: 18, kind: output, shape index: {}]
  %s19 = sld [smem:[#allocation0]]
  $region102: #{tpu_custom_call.1} parent=0
    _
  %s21 = ssub.s32 1, %s19
  %s22 = scalar_select 0, %s21, %s19
  $region1: #{tpu_custom_call.1} parent=0
    #allocation2 [shape = 'u8[24576]{0}', space=vmem, size = 0x6000, scoped, tag = 'input window, operand 0, single buffered']
    #allocation3 [shape = 's32[1]{0}', space=sflag, size = 0x4, scoped, tag = 'scoped memory for tpu_custom_call.1']
    #allocation4 [shape = 's32[1]{0}', space=sflag, size = 0x4, scoped, tag = 'scoped memory for tpu_custom_call.1']
    #allocation5 [shape = 'u8[262144]{0}', space=vmem, size = 0x40000, scoped, tag = 'input window, operand 4, single buffered']
    #allocation6 [shape = 's32[1]{0}', space=sflag, size = 0x4, scoped, tag = 'scoped memory for tpu_custom_call.1']
    #allocation7 [shape = 'u8[524288]{0}', space=vmem, size = 0x80000, scoped, tag = 'input window, operand 8, single buffered']
    #allocation8 [shape = 'u8[524288]{0}', space=vmem, size = 0x80000, scoped, tag = 'input window, operand 12, single buffered']
    #allocation9 [shape = 's32[1]{0}', space=sflag, size = 0x4, scoped, tag = 'scoped memory for tpu_custom_call.1']
    #allocation10 [shape = 'u8[196608]{0}', space=vmem, size = 0x30000, scoped, tag = 'input window, operand 15, single buffered']
    #allocation11 [shape = 'u8[1024]{0}', space=vmem, size = 0x400, scoped, tag = 'output window, operand 0, single buffered']
    %23 = vsyncpa [#allocation3], 0
    %24 = vsyncpa [#allocation6], 0
    %25 = vsyncpa [#allocation9], 0
    %26 = vsyncpa [#allocation4], 0
    // Predicated region
    $region2: #{tpu_custom_call.1} parent=1 // pred_check
      _
    $region3: #{tpu_custom_call.1} parent=1 // pred_check_branch
      %28 = sbr.rel (0) target = $region5
    $region4: #{tpu_custom_call.1} parent=1 // pred_region
      %30 = vsyncadd [#allocation3], 0
      %s31 = sshll.u32 %s0, 4
      %s32 = int_to_ptr.hbm [resolvable:$true] %s31
      %s33 = sshll.u32 [#allocation2], 4
      %s34 = int_to_ptr.vmem [resolvable:$true] %s33
      %39 = dma.hbm_to_vmem [thread:$0]  %s32, 768, %s34, [#allocation3], 128, 128, 8
    $region5: #{tpu_custom_call.1} parent=1 // pred_fallthru
      _
    // Predicated region
    $region6: #{tpu_custom_call.1} parent=1 // pred_check
      _
    $region7: #{tpu_custom_call.1} parent=1 // pred_check_branch
      %41 = sbr.rel (0) target = $region9
    $region8: #{tpu_custom_call.1} parent=1 // pred_region
      _
    $region9: #{tpu_custom_call.1} parent=1 // pred_fallthru
      _
    // Predicated region
    $region10: #{tpu_custom_call.1} parent=1 // pred_check
      _
    $region11: #{tpu_custom_call.1} parent=1 // pred_check_branch
      %43 = sbr.rel (0) target = $region13
    $region12: #{tpu_custom_call.1} parent=1 // pred_region
      _
    $region13: #{tpu_custom_call.1} parent=1 // pred_fallthru
      _
    // Predicated region
    $region14: #{tpu_custom_call.1} parent=1 // pred_check
      _
    $region15: #{tpu_custom_call.1} parent=1 // pred_check_branch
      %45 = sbr.rel (0) target = $region17
    $region16: #{tpu_custom_call.1} parent=1 // pred_region
      _
    $region17: #{tpu_custom_call.1} parent=1 // pred_fallthru
      _
    // Predicated region
    $region18: #{tpu_custom_call.1} parent=1 // pred_check
      _
    $region19: #{tpu_custom_call.1} parent=1 // pred_check_branch
      %47 = sbr.rel (0) target = $region21
    $region20: #{tpu_custom_call.1} parent=1 // pred_region
      %49 = vsyncadd [#allocation6], 0
      %s50 = sshll.u32 %s4, 4
      %s51 = int_to_ptr.hbm [resolvable:$true] %s50
      %s52 = sshll.u32 [#allocation5], 4
      %s53 = int_to_ptr.vmem [resolvable:$true] %s52
      %58 = dma.hbm_to_vmem [thread:$0]  %s51, 8192, %s53, [#allocation6], 128, 128, 8
    $region21: #{tpu_custom_call.1} parent=1 // pred_fallthru
      _
    // Predicated region
    $region22: #{tpu_custom_call.1} parent=1 // pred_check
      _
    $region23: #{tpu_custom_call.1} parent=1 // pred_check_branch
      %60 = sbr.rel (0) target = $region25
    $region24: #{tpu_custom_call.1} parent=1 // pred_region
      _
    $region25: #{tpu_custom_call.1} parent=1 // pred_fallthru
      _
    // Predicated region
    $region26: #{tpu_custom_call.1} parent=1 // pred_check
      _
    $region27: #{tpu_custom_call.1} parent=1 // pred_check_branch
      %62 = sbr.rel (0) target = $region29
    $region28: #{tpu_custom_call.1} parent=1 // pred_region
      _
    $region29: #{tpu_custom_call.1} parent=1 // pred_fallthru
      _
    // Predicated region
    $region30: #{tpu_custom_call.1} parent=1 // pred_check
      _
    $region31: #{tpu_custom_call.1} parent=1 // pred_check_branch
      %64 = sbr.rel (0) target = $region33
    $region32: #{tpu_custom_call.1} parent=1 // pred_region
      _
    $region33: #{tpu_custom_call.1} parent=1 // pred_fallthru
      _
    // Predicated region
    $region34: #{tpu_custom_call.1} parent=1 // pred_check
      _
    $region35: #{tpu_custom_call.1} parent=1 // pred_check_branch
      %66 = sbr.rel (0) target = $region37
    $region36: #{tpu_custom_call.1} parent=1 // pred_region
      %68 = vsyncadd [#allocation6], 0
      %s69 = sshll.u32 %s8, 4
      %s70 = int_to_ptr.hbm [resolvable:$true] %s69
      %s71 = sshll.u32 [#allocation7], 4
      %s72 = int_to_ptr.vmem [resolvable:$true] %s71
      %77 = dma.hbm_to_vmem [thread:$0]  %s70, 16384, %s72, [#allocation6], 128, 128, 8
    $region37: #{tpu_custom_call.1} parent=1 // pred_fallthru
      _
    // Predicated region
    $region38: #{tpu_custom_call.1} parent=1 // pred_check
      _
    $region39: #{tpu_custom_call.1} parent=1 // pred_check_branch
      %79 = sbr.rel (0) target = $region41
    $region40: #{tpu_custom_call.1} parent=1 // pred_region
      _
    $region41: #{tpu_custom_call.1} parent=1 // pred_fallthru
      _
    // Predicated region
    $region42: #{tpu_custom_call.1} parent=1 // pred_check
      _
    $region43: #{tpu_custom_call.1} parent=1 // pred_check_branch
      %81 = sbr.rel (0) target = $region45
    $region44: #{tpu_custom_call.1} parent=1 // pred_region
      _
    $region45: #{tpu_custom_call.1} parent=1 // pred_fallthru
      _
    // Predicated region
    $region46: #{tpu_custom_call.1} parent=1 // pred_check
      _
    $region47: #{tpu_custom_call.1} parent=1 // pred_check_branch
      %83 = sbr.rel (0) target = $region49
    $region48: #{tpu_custom_call.1} parent=1 // pred_region
      _
    $region49: #{tpu_custom_call.1} parent=1 // pred_fallthru
      _
    // Predicated region
    $region50: #{tpu_custom_call.1} parent=1 // pred_check
      _
    $region51: #{tpu_custom_call.1} parent=1 // pred_check_branch
      %85 = sbr.rel (0) target = $region53
    $region52: #{tpu_custom_call.1} parent=1 // pred_region
      %87 = vsyncadd [#allocation9], 0
      %s88 = sshll.u32 %s12, 4
      %s89 = int_to_ptr.hbm [resolvable:$true] %s88
      %s90 = sshll.u32 [#allocation8], 4
      %s91 = int_to_ptr.vmem [resolvable:$true] %s90
      %96 = dma.hbm_to_vmem [thread:$0]  %s89, 16384, %s91, [#allocation9], 128, 128, 8
    $region53: #{tpu_custom_call.1} parent=1 // pred_fallthru
      _
    // Predicated region
    $region54: #{tpu_custom_call.1} parent=1 // pred_check
      _
    $region55: #{tpu_custom_call.1} parent=1 // pred_check_branch
      %98 = sbr.rel (0) target = $region57
    $region56: #{tpu_custom_call.1} parent=1 // pred_region
      _
    $region57: #{tpu_custom_call.1} parent=1 // pred_fallthru
      _
    // Predicated region
    $region58: #{tpu_custom_call.1} parent=1 // pred_check
      _
    $region59: #{tpu_custom_call.1} parent=1 // pred_check_branch
      %100 = sbr.rel (0) target = $region61
    $region60: #{tpu_custom_call.1} parent=1 // pred_region
      _
    $region61: #{tpu_custom_call.1} parent=1 // pred_fallthru
      _
    // Predicated region
    $region62: #{tpu_custom_call.1} parent=1 // pred_check
      _
    $region63: #{tpu_custom_call.1} parent=1 // pred_check_branch
      %102 = sbr.rel (0) target = $region65
    $region64: #{tpu_custom_call.1} parent=1 // pred_region
      %104 = vsyncadd [#allocation9], 0
      %s105 = sshll.u32 %s15, 4
      %s106 = int_to_ptr.hbm [resolvable:$true] %s105
      %s107 = sshll.u32 [#allocation10], 4
      %s108 = int_to_ptr.vmem [resolvable:$true] %s107
      %113 = dma.hbm_to_vmem [thread:$0]  %s106, 6144, %s108, [#allocation9], 192, 192, 12
    $region65: #{tpu_custom_call.1} parent=1 // pred_fallthru
      _
    // Predicated region
    $region66: #{tpu_custom_call.1} parent=1 // pred_check
      _
    $region67: #{tpu_custom_call.1} parent=1 // pred_check_branch
      %115 = sbr.rel (0) target = $region69
    $region68: #{tpu_custom_call.1} parent=1 // pred_region
      _
    $region69: #{tpu_custom_call.1} parent=1 // pred_fallthru
      _
    // Predicated region
    $region70: #{tpu_custom_call.1} parent=1 // pred_check
      _
    $region71: #{tpu_custom_call.1} parent=1 // pred_check_branch
      %117 = sbr.rel (0) target = $region73
    $region72: #{tpu_custom_call.1} parent=1 // pred_region
      _
    $region73: #{tpu_custom_call.1} parent=1 // pred_fallthru
      _
    // Predicated region
    $region74: #{tpu_custom_call.1} parent=1 // pred_check
      _
    $region75: #{tpu_custom_call.1} parent=1 // pred_check_branch
      %119 = sbr.rel (0) target = $region77
    $region76: #{tpu_custom_call.1} parent=1 // pred_region
      %121 = dma.done [#allocation3], 768
    $region77: #{tpu_custom_call.1} parent=1 // pred_fallthru
      _
    // Predicated region
    $region78: #{tpu_custom_call.1} parent=1 // pred_check
      _
    $region79: #{tpu_custom_call.1} parent=1 // pred_check_branch
      %123 = sbr.rel (0) target = $region81
    $region80: #{tpu_custom_call.1} parent=1 // pred_region
      %125 = dma.done [#allocation6], 8192
    $region81: #{tpu_custom_call.1} parent=1 // pred_fallthru
      _
    // Predicated region
    $region82: #{tpu_custom_call.1} parent=1 // pred_check
      _
    $region83: #{tpu_custom_call.1} parent=1 // pred_check_branch
      %127 = sbr.rel (0) target = $region85
    $region84: #{tpu_custom_call.1} parent=1 // pred_region
      %129 = dma.done [#allocation6], 16384
    $region85: #{tpu_custom_call.1} parent=1 // pred_fallthru
      _
    // Predicated region
    $region86: #{tpu_custom_call.1} parent=1 // pred_check
      _
    $region87: #{tpu_custom_call.1} parent=1 // pred_check_branch
      %131 = sbr.rel (0) target = $region89
    $region88: #{tpu_custom_call.1} parent=1 // pred_region
      %133 = dma.done [#allocation9], 16384
    $region89: #{tpu_custom_call.1} parent=1 // pred_fallthru
      _
    // Predicated region
    $region90: #{tpu_custom_call.1} parent=1 // pred_check
      _
    $region91: #{tpu_custom_call.1} parent=1 // pred_check_branch
      %135 = sbr.rel (0) target = $region93
    $region92: #{tpu_custom_call.1} parent=1 // pred_region
      %137 = dma.done [#allocation9], 6144
    $region93: #{tpu_custom_call.1} parent=1 // pred_fallthru
      _
    %v139 = vld [vmem:[#allocation2] sm:$0xff]
    %v140 = vld [vmem:[#allocation2 + $0x8] sm:$0xff]
    %v141 = vld [vmem:[#allocation2 + $0x10] sm:$0xff]
    %v142 = vld [vmem:[#allocation2 + $0x18] sm:$0xff]
    %v143 = vld [vmem:[#allocation2 + $0x20] sm:$0xff]
    %v144 = vld [vmem:[#allocation2 + $0x28] sm:$0xff]
    %v145 = vpack.c.bf16 %v140, %v139
    %v146 = vpack.c.bf16 %v142, %v141
    %v147 = vpack.c.bf16 %v144, %v143
    %v148 = vld [vmem:[%s1] sm:$0xf]
    %v149 = vld [vmem:[%s1 + $0x4] sm:$0xf]
    %v150 = vld [vmem:[%s1 + $0x8] sm:$0xf]
    %v151 = vld [vmem:[%s1 + $0xc] sm:$0xf]
    %v152 = vld [vmem:[%s1 + $0x10] sm:$0xf]
    %v153 = vld [vmem:[%s1 + $0x14] sm:$0xf]
    %v154 = vld [vmem:[%s1 + $0x18] sm:$0xf]
    %v155 = vld [vmem:[%s1 + $0x1c] sm:$0xf]
    %v156 = vld [vmem:[%s1 + $0x20] sm:$0xf]
    %v157 = vld [vmem:[%s1 + $0x24] sm:$0xf]
    %v158 = vld [vmem:[%s1 + $0x28] sm:$0xf]
    %v159 = vld [vmem:[%s1 + $0x2c] sm:$0xf]
    %v160 = vld [vmem:[%s1 + $0x30] sm:$0xf]
    %v161 = vld [vmem:[%s1 + $0x34] sm:$0xf]
    %v162 = vld [vmem:[%s1 + $0x38] sm:$0xf]
    %v163 = vld [vmem:[%s1 + $0x3c] sm:$0xf]
    %v164 = vld [vmem:[%s2] sm:$0x1]
    %v166 = vperm.slane %v164, 0
    %v184 = vunpack.c.l.b16 %v148
    %v185 = vunpack.c.l.b16 %v149
    %v186 = vunpack.c.l.b16 %v150
    %v187 = vunpack.c.l.b16 %v151
    %v188 = vunpack.c.l.b16 %v152
    %v189 = vunpack.c.l.b16 %v153
    %v190 = vunpack.c.l.b16 %v154
    %v191 = vunpack.c.l.b16 %v155
    %v192 = vunpack.c.l.b16 %v156
    %v193 = vunpack.c.l.b16 %v157
    %v194 = vunpack.c.l.b16 %v158
    %v195 = vunpack.c.l.b16 %v159
    %v196 = vunpack.c.l.b16 %v160
    %v197 = vunpack.c.l.b16 %v161
    %v198 = vunpack.c.l.b16 %v162
    %v199 = vunpack.c.l.b16 %v163
    %v200 = vpack.c.b16 %v185, %v184
    %v201 = vpack.c.b16 %v187, %v186
    %v202 = vpack.c.b16 %v189, %v188
    %v203 = vpack.c.b16 %v191, %v190
    %v204 = vpack.c.b16 %v193, %v192
    %v205 = vpack.c.b16 %v195, %v194
    %v206 = vpack.c.b16 %v197, %v196
    %v207 = vpack.c.b16 %v199, %v198
    %216 = vmatpush.bf16.msra.mxu0 %v207
    %217 = vmatpush.bf16.msra.mxu0 %v206
    %218 = vmatpush.bf16.msra.mxu0 %v205
    %219 = vmatpush.bf16.msra.mxu0 %v204
    %220 = vmatpush.bf16.msra.mxu0 %v203
    %221 = vmatpush.bf16.msra.mxu0 %v202
    %222 = vmatpush.bf16.msra.mxu0 %v201
    %223 = vmatpush.bf16.msra.mxu0 %v200
    %224 = vmatmul.bf16.gmra.mxu0 %v145
    %v225 = vpop.f32.mrf.mxu0
    %v226 = vadd.f32 %v166, %v225
    %v227 = vpop.f32.mrf.mxu0
    %v228 = vadd.f32 %v166, %v227
    %229 = vmatmul.bf16.gmra.mxu0 %v146
    %v230 = vpop.f32.mrf.mxu0
    %v231 = vadd.f32 %v166, %v230
    %v232 = vpop.f32.mrf.mxu0
    %v233 = vadd.f32 %v166, %v232
    %234 = vmatmul.bf16.gmra.mxu0 %v147
    %v235 = vpop.f32.mrf.mxu0
    %v236 = vadd.f32 %v166, %v235
    %v237 = vpop.f32.mrf.mxu0
    %v238 = vadd.f32 %v166, %v237
    %239 = vdwg.mxu0
    %v240 = vld [vmem:[%s3] sm:$0xf]
    %v241 = vld [vmem:[%s3 + $0x4] sm:$0xf]
    %v242 = vld [vmem:[%s3 + $0x8] sm:$0xf]
    %v243 = vld [vmem:[%s3 + $0xc] sm:$0xf]
    %v244 = vld [vmem:[%s3 + $0x10] sm:$0xf]
    %v245 = vld [vmem:[%s3 + $0x14] sm:$0xf]
    %v246 = vld [vmem:[%s3 + $0x18] sm:$0xf]
    %v247 = vld [vmem:[%s3 + $0x1c] sm:$0xf]
    %v248 = vld [vmem:[%s3 + $0x20] sm:$0xf]
    %v249 = vld [vmem:[%s3 + $0x24] sm:$0xf]
    %v250 = vld [vmem:[%s3 + $0x28] sm:$0xf]
    %v251 = vld [vmem:[%s3 + $0x2c] sm:$0xf]
    %v252 = vpack.c.bf16 %v228, %v226
    %v253 = vpack.c.bf16 %v233, %v231
    %v254 = vpack.c.bf16 %v238, %v236
    %v267 = vunpack.c.l.b16 %v240
    %v268 = vunpack.c.l.b16 %v241
    %v269 = vunpack.c.l.b16 %v242
    %v270 = vunpack.c.l.b16 %v243
    %v271 = vunpack.c.l.b16 %v244
    %v272 = vunpack.c.l.b16 %v245
    %v273 = vunpack.c.l.b16 %v246
    %v274 = vunpack.c.l.b16 %v247
    %v275 = vunpack.c.l.b16 %v248
    %v276 = vunpack.c.l.b16 %v249
    %v277 = vunpack.c.l.b16 %v250
    %v278 = vunpack.c.l.b16 %v251
    %v279 = vpack.c.b16 %v268, %v267
    %v280 = vpack.c.b16 %v270, %v269
    %v281 = vpack.c.b16 %v272, %v271
    %v282 = vpack.c.b16 %v274, %v273
    %v283 = vpack.c.b16 %v276, %v275
    %v284 = vpack.c.b16 %v278, %v277
    %vm285 = vcmask 392192
    %v287 = vsel %vm285, %v279, 0
    %v290 = vsel %vm285, %v280, 0
    %v293 = vsel %vm285, %v281, 0
    %v296 = vsel %vm285, %v282, 0
    %v299 = vsel %vm285, %v283, 0
    %v302 = vsel %vm285, %v284, 0
    %304 = vmatpush.bf16.msra.mxu0 0
    %305 = vmatpush.bf16.msra.mxu0 0
    %306 = vmatpush.bf16.msra.mxu0 0
    %307 = vmatpush.bf16.msra.mxu0 0
    %308 = vmatpush.bf16.msra.mxu0 0
    %309 = vmatpush.bf16.msra.mxu0 %v254
    %310 = vmatpush.bf16.msra.mxu0 %v253
    %311 = vmatpush.bf16.msra.mxu0 %v252
    %312 = vmatmul.bf16.gmra.mxu0 %v287
    %v313 = vpop.f32.mrf.mxu0
    %v314 = vadd.f32 0.0, %v313
    %v315 = vpop.f32.mrf.mxu0
    %v316 = vadd.f32 0.0, %v315
    %317 = vmatmul.bf16.gmra.mxu0 %v290
    %v318 = vpop.f32.mrf.mxu0
    %v319 = vadd.f32 0.0, %v318
    %v320 = vpop.f32.mrf.mxu0
    %v321 = vadd.f32 0.0, %v320
    %322 = vmatmul.bf16.gmra.mxu0 %v293
    %v323 = vpop.f32.mrf.mxu0
    %v324 = vadd.f32 0.0, %v323
    %v325 = vpop.f32.mrf.mxu0
    %v326 = vadd.f32 0.0, %v325
    %327 = vmatmul.bf16.gmra.mxu0 %v296
    %v328 = vpop.f32.mrf.mxu0
    %v329 = vadd.f32 0.0, %v328
    %v330 = vpop.f32.mrf.mxu0
    %v331 = vadd.f32 0.0, %v330
    %332 = vmatmul.bf16.gmra.mxu0 %v299
    %v333 = vpop.f32.mrf.mxu0
    %v334 = vadd.f32 0.0, %v333
    %v335 = vpop.f32.mrf.mxu0
    %v336 = vadd.f32 0.0, %v335
    %337 = vmatmul.bf16.gmra.mxu0 %v302
    %v338 = vpop.f32.mrf.mxu0
    %v339 = vadd.f32 0.0, %v338
    %v340 = vpop.f32.mrf.mxu0
    %v341 = vadd.f32 0.0, %v340
    %342 = vdwg.mxu0
    %v343 = vpack.c.bf16 %v314, %v314
    %v344 = vpack.c.bf16 %v316, %v316
    %v345 = vpack.c.bf16 %v319, %v319
    %v346 = vpack.c.bf16 %v321, %v321
    %v347 = vpack.c.bf16 %v324, %v324
    %v348 = vpack.c.bf16 %v326, %v326
    %v349 = vpack.c.bf16 %v329, %v329
    %v350 = vpack.c.bf16 %v331, %v331
    %v351 = vpack.c.bf16 %v334, %v334
    %v352 = vpack.c.bf16 %v336, %v336
    %v353 = vpack.c.bf16 %v339, %v339
    %v354 = vpack.c.bf16 %v341, %v341
    %v355 = vld [vmem:[#allocation5] sm:$0xff]
    %v356 = vld [vmem:[#allocation5 + $0x8] sm:$0xff]
    %v357 = vld [vmem:[#allocation5 + $0x10] sm:$0xff]
    %v358 = vld [vmem:[#allocation5 + $0x18] sm:$0xff]
    %v359 = vld [vmem:[#allocation5 + $0x20] sm:$0xff]
    %v360 = vld [vmem:[#allocation5 + $0x28] sm:$0xff]
    %v361 = vld [vmem:[#allocation5 + $0x30] sm:$0xff]
    %v362 = vld [vmem:[#allocation5 + $0x38] sm:$0xff]
    %v363 = vld [vmem:[#allocation5 + $0x40] sm:$0xff]
    %v364 = vld [vmem:[#allocation5 + $0x48] sm:$0xff]
    %v365 = vld [vmem:[#allocation5 + $0x50] sm:$0xff]
    %v366 = vld [vmem:[#allocation5 + $0x58] sm:$0xff]
    %v367 = vld [vmem:[#allocation5 + $0x60] sm:$0xff]
    %v368 = vld [vmem:[#allocation5 + $0x68] sm:$0xff]
    %v369 = vld [vmem:[#allocation5 + $0x70] sm:$0xff]
    %v370 = vld [vmem:[#allocation5 + $0x78] sm:$0xff]
    %s371 = scalar_lea.vmem [#allocation5], 128
    %v372 = vld [vmem:[%s371] sm:$0xff]
    %v373 = vld [vmem:[%s371 + $0x8] sm:$0xff]
    %v374 = vld [vmem:[%s371 + $0x10] sm:$0xff]
    %v375 = vld [vmem:[%s371 + $0x18] sm:$0xff]
    %v376 = vld [vmem:[%s371 + $0x20] sm:$0xff]
    %v377 = vld [vmem:[%s371 + $0x28] sm:$0xff]
    %v378 = vld [vmem:[%s371 + $0x30] sm:$0xff]
    %v379 = vld [vmem:[%s371 + $0x38] sm:$0xff]
    %v380 = vld [vmem:[%s371 + $0x40] sm:$0xff]
    %v381 = vld [vmem:[%s371 + $0x48] sm:$0xff]
    %v382 = vld [vmem:[%s371 + $0x50] sm:$0xff]
    %v383 = vld [vmem:[%s371 + $0x58] sm:$0xff]
    %v384 = vld [vmem:[%s371 + $0x60] sm:$0xff]
    %v385 = vld [vmem:[%s371 + $0x68] sm:$0xff]
    %v386 = vld [vmem:[%s371 + $0x70] sm:$0xff]
    %v387 = vld [vmem:[%s371 + $0x78] sm:$0xff]
    %v391 = vunpack.c.l.b16 %v346
    %v392 = vunpack.c.l.b16 %v347
    %v393 = vunpack.c.l.b16 %v348
    %v394 = vpack.c.b16 %v392, %v391
    %v395 = vpack.c.b16 %v393, %v393
    %v414 = vunpack.c.l.b16 %v372
    %v415 = vunpack.c.h.b16 %v372
    %v416 = vunpack.c.l.b16 %v373
    %v417 = vunpack.c.h.b16 %v373
    %v418 = vunpack.c.l.b16 %v374
    %v419 = vunpack.c.h.b16 %v374
    %v420 = vunpack.c.l.b16 %v375
    %v421 = vunpack.c.h.b16 %v375
    %v422 = vunpack.c.l.b16 %v376
    %v423 = vunpack.c.h.b16 %v376
    %v424 = vunpack.c.l.b16 %v377
    %v425 = vunpack.c.h.b16 %v377
    %v426 = vunpack.c.l.b16 %v378
    %v427 = vunpack.c.h.b16 %v378
    %v428 = vunpack.c.l.b16 %v379
    %v429 = vunpack.c.h.b16 %v379
    %v430 = vunpack.c.l.b16 %v380
    %v431 = vunpack.c.h.b16 %v380
    %v432 = vunpack.c.l.b16 %v381
    %v433 = vunpack.c.h.b16 %v381
    %v434 = vunpack.c.l.b16 %v382
    %v435 = vunpack.c.h.b16 %v382
    %v436 = vunpack.c.l.b16 %v383
    %v437 = vunpack.c.h.b16 %v383
    %v438 = vunpack.c.l.b16 %v384
    %v439 = vunpack.c.h.b16 %v384
    %v440 = vunpack.c.l.b16 %v385
    %v441 = vunpack.c.h.b16 %v385
    %v442 = vunpack.c.l.b16 %v386
    %v443 = vunpack.c.h.b16 %v386
    %v444 = vunpack.c.l.b16 %v387
    %v445 = vunpack.c.h.b16 %v387
    %v446 = vpack.c.b16 %v416, %v414
    %v447 = vpack.c.b16 %v417, %v415
    %v448 = vpack.c.b16 %v420, %v418
    %v449 = vpack.c.b16 %v421, %v419
    %v450 = vpack.c.b16 %v424, %v422
    %v451 = vpack.c.b16 %v425, %v423
    %v452 = vpack.c.b16 %v428, %v426
    %v453 = vpack.c.b16 %v429, %v427
    %v454 = vpack.c.b16 %v432, %v430
    %v455 = vpack.c.b16 %v433, %v431
    %v456 = vpack.c.b16 %v436, %v434
    %v457 = vpack.c.b16 %v437, %v435
    %v458 = vpack.c.b16 %v440, %v438
    %v459 = vpack.c.b16 %v441, %v439
    %v460 = vpack.c.b16 %v444, %v442
    %v461 = vpack.c.b16 %v445, %v443
    %478 = vmatpush.bf16.msra.mxu0 %v460
    %479 = vmatpush.bf16.msra.mxu0 %v458
    %480 = vmatpush.bf16.msra.mxu0 %v456
    %481 = vmatpush.bf16.msra.mxu0 %v454
    %482 = vmatpush.bf16.msra.mxu0 %v452
    %483 = vmatpush.bf16.msra.mxu0 %v450
    %484 = vmatpush.bf16.msra.mxu0 %v448
    %485 = vmatpush.bf16.msra.mxu0 %v446
    %486 = vmatmul.bf16.gmra.mxu0 %v394
    %v487 = vpop.f32.mrf.mxu0
    %v488 = vadd.f32 0.0, %v487
    %v489 = vpop.f32.mrf.mxu0
    %v490 = vadd.f32 0.0, %v489
    %491 = vmatmul.bf16.gmra.mxu0 %v395
    %v492 = vpop.f32.mrf.mxu0
    %v493 = vadd.f32 0.0, %v492
    %v494 = vpop.f32.mrf.mxu0
    %495 = vdwg.mxu0
    %496 = vmatpush.bf16.msra.mxu0 %v461
    %497 = vmatpush.bf16.msra.mxu0 %v459
    %498 = vmatpush.bf16.msra.mxu0 %v457
    %499 = vmatpush.bf16.msra.mxu0 %v455
    %500 = vmatpush.bf16.msra.mxu0 %v453
    %501 = vmatpush.bf16.msra.mxu0 %v451
    %502 = vmatpush.bf16.msra.mxu0 %v449
    %503 = vmatpush.bf16.msra.mxu0 %v447
    %504 = vmatmul.bf16.gmra.mxu0 %v394
    %v505 = vpop.f32.mrf.mxu0
    %v506 = vadd.f32 0.0, %v505
    %v507 = vpop.f32.mrf.mxu0
    %v508 = vadd.f32 0.0, %v507
    %509 = vmatmul.bf16.gmra.mxu0 %v395
    %v510 = vpop.f32.mrf.mxu0
    %v511 = vadd.f32 0.0, %v510
    %v512 = vpop.f32.mrf.mxu0
    %513 = vdwg.mxu0
    %v517 = vunpack.c.l.b16 %v343
    %v518 = vunpack.c.l.b16 %v344
    %v519 = vunpack.c.l.b16 %v345
    %v520 = vpack.c.b16 %v518, %v517
    %v521 = vpack.c.b16 %v519, %v519
    %v540 = vunpack.c.l.b16 %v355
    %v541 = vunpack.c.h.b16 %v355
    %v542 = vunpack.c.l.b16 %v356
    %v543 = vunpack.c.h.b16 %v356
    %v544 = vunpack.c.l.b16 %v357
    %v545 = vunpack.c.h.b16 %v357
    %v546 = vunpack.c.l.b16 %v358
    %v547 = vunpack.c.h.b16 %v358
    %v548 = vunpack.c.l.b16 %v359
    %v549 = vunpack.c.h.b16 %v359
    %v550 = vunpack.c.l.b16 %v360
    %v551 = vunpack.c.h.b16 %v360
    %v552 = vunpack.c.l.b16 %v361
    %v553 = vunpack.c.h.b16 %v361
    %v554 = vunpack.c.l.b16 %v362
    %v555 = vunpack.c.h.b16 %v362
    %v556 = vunpack.c.l.b16 %v363
    %v557 = vunpack.c.h.b16 %v363
    %v558 = vunpack.c.l.b16 %v364
    %v559 = vunpack.c.h.b16 %v364
    %v560 = vunpack.c.l.b16 %v365
    %v561 = vunpack.c.h.b16 %v365
    %v562 = vunpack.c.l.b16 %v366
    %v563 = vunpack.c.h.b16 %v366
    %v564 = vunpack.c.l.b16 %v367
    %v565 = vunpack.c.h.b16 %v367
    %v566 = vunpack.c.l.b16 %v368
    %v567 = vunpack.c.h.b16 %v368
    %v568 = vunpack.c.l.b16 %v369
    %v569 = vunpack.c.h.b16 %v369
    %v570 = vunpack.c.l.b16 %v370
    %v571 = vunpack.c.h.b16 %v370
    %v572 = vpack.c.b16 %v542, %v540
    %v573 = vpack.c.b16 %v543, %v541
    %v574 = vpack.c.b16 %v546, %v544
    %v575 = vpack.c.b16 %v547, %v545
    %v576 = vpack.c.b16 %v550, %v548
    %v577 = vpack.c.b16 %v551, %v549
    %v578 = vpack.c.b16 %v554, %v552
    %v579 = vpack.c.b16 %v555, %v553
    %v580 = vpack.c.b16 %v558, %v556
    %v581 = vpack.c.b16 %v559, %v557
    %v582 = vpack.c.b16 %v562, %v560
    %v583 = vpack.c.b16 %v563, %v561
    %v584 = vpack.c.b16 %v566, %v564
    %v585 = vpack.c.b16 %v567, %v565
    %v586 = vpack.c.b16 %v570, %v568
    %v587 = vpack.c.b16 %v571, %v569
    %604 = vmatpush.bf16.msra.mxu0 %v586
    %605 = vmatpush.bf16.msra.mxu0 %v584
    %606 = vmatpush.bf16.msra.mxu0 %v582
    %607 = vmatpush.bf16.msra.mxu0 %v580
    %608 = vmatpush.bf16.msra.mxu0 %v578
    %609 = vmatpush.bf16.msra.mxu0 %v576
    %610 = vmatpush.bf16.msra.mxu0 %v574
    %611 = vmatpush.bf16.msra.mxu0 %v572
    %612 = vmatmul.bf16.gmra.mxu0 %v520
    %v613 = vpop.f32.mrf.mxu0
    %v614 = vadd.f32 %v488, %v613
    %v615 = vpop.f32.mrf.mxu0
    %v616 = vadd.f32 %v490, %v615
    %617 = vmatmul.bf16.gmra.mxu0 %v521
    %v618 = vpop.f32.mrf.mxu0
    %v619 = vadd.f32 %v493, %v618
    %v620 = vpop.f32.mrf.mxu0
    %621 = vdwg.mxu0
    %622 = vmatpush.bf16.msra.mxu0 %v587
    %623 = vmatpush.bf16.msra.mxu0 %v585
    %624 = vmatpush.bf16.msra.mxu0 %v583
    %625 = vmatpush.bf16.msra.mxu0 %v581
    %626 = vmatpush.bf16.msra.mxu0 %v579
    %627 = vmatpush.bf16.msra.mxu0 %v577
    %628 = vmatpush.bf16.msra.mxu0 %v575
    %629 = vmatpush.bf16.msra.mxu0 %v573
    %630 = vmatmul.bf16.gmra.mxu0 %v520
    %v631 = vpop.f32.mrf.mxu0
    %v632 = vadd.f32 %v506, %v631
    %v633 = vpop.f32.mrf.mxu0
    %v634 = vadd.f32 %v508, %v633
    %635 = vmatmul.bf16.gmra.mxu0 %v521
    %v636 = vpop.f32.mrf.mxu0
    %v637 = vadd.f32 %v511, %v636
    %v638 = vpop.f32.mrf.mxu0
    %639 = vdwg.mxu0
    %s640 = scalar_lea.vmem [#allocation5], 256
    %v641 = vld [vmem:[%s640] sm:$0xff]
    %v642 = vld [vmem:[%s640 + $0x8] sm:$0xff]
    %v643 = vld [vmem:[%s640 + $0x10] sm:$0xff]
    %v644 = vld [vmem:[%s640 + $0x18] sm:$0xff]
    %v645 = vld [vmem:[%s640 + $0x20] sm:$0xff]
    %v646 = vld [vmem:[%s640 + $0x28] sm:$0xff]
    %v647 = vld [vmem:[%s640 + $0x30] sm:$0xff]
    %v648 = vld [vmem:[%s640 + $0x38] sm:$0xff]
    %v649 = vld [vmem:[%s640 + $0x40] sm:$0xff]
    %v650 = vld [vmem:[%s640 + $0x48] sm:$0xff]
    %v651 = vld [vmem:[%s640 + $0x50] sm:$0xff]
    %v652 = vld [vmem:[%s640 + $0x58] sm:$0xff]
    %v653 = vld [vmem:[%s640 + $0x60] sm:$0xff]
    %v654 = vld [vmem:[%s640 + $0x68] sm:$0xff]
    %v655 = vld [vmem:[%s640 + $0x70] sm:$0xff]
    %v656 = vld [vmem:[%s640 + $0x78] sm:$0xff]
    %v660 = vunpack.c.l.b16 %v349
    %v661 = vunpack.c.l.b16 %v350
    %v662 = vunpack.c.l.b16 %v351
    %v663 = vpack.c.b16 %v661, %v660
    %v664 = vpack.c.b16 %v662, %v662
    %v683 = vunpack.c.l.b16 %v641
    %v684 = vunpack.c.h.b16 %v641
    %v685 = vunpack.c.l.b16 %v642
    %v686 = vunpack.c.h.b16 %v642
    %v687 = vunpack.c.l.b16 %v643
    %v688 = vunpack.c.h.b16 %v643
    %v689 = vunpack.c.l.b16 %v644
    %v690 = vunpack.c.h.b16 %v644
    %v691 = vunpack.c.l.b16 %v645
    %v692 = vunpack.c.h.b16 %v645
    %v693 = vunpack.c.l.b16 %v646
    %v694 = vunpack.c.h.b16 %v646
    %v695 = vunpack.c.l.b16 %v647
    %v696 = vunpack.c.h.b16 %v647
    %v697 = vunpack.c.l.b16 %v648
    %v698 = vunpack.c.h.b16 %v648
    %v699 = vunpack.c.l.b16 %v649
    %v700 = vunpack.c.h.b16 %v649
    %v701 = vunpack.c.l.b16 %v650
    %v702 = vunpack.c.h.b16 %v650
    %v703 = vunpack.c.l.b16 %v651
    %v704 = vunpack.c.h.b16 %v651
    %v705 = vunpack.c.l.b16 %v652
    %v706 = vunpack.c.h.b16 %v652
    %v707 = vunpack.c.l.b16 %v653
    %v708 = vunpack.c.h.b16 %v653
    %v709 = vunpack.c.l.b16 %v654
    %v710 = vunpack.c.h.b16 %v654
    %v711 = vunpack.c.l.b16 %v655
    %v712 = vunpack.c.h.b16 %v655
    %v713 = vunpack.c.l.b16 %v656
    %v714 = vunpack.c.h.b16 %v656
    %v715 = vpack.c.b16 %v685, %v683
    %v716 = vpack.c.b16 %v686, %v684
    %v717 = vpack.c.b16 %v689, %v687
    %v718 = vpack.c.b16 %v690, %v688
    %v719 = vpack.c.b16 %v693, %v691
    %v720 = vpack.c.b16 %v694, %v692
    %v721 = vpack.c.b16 %v697, %v695
    %v722 = vpack.c.b16 %v698, %v696
    %v723 = vpack.c.b16 %v701, %v699
    %v724 = vpack.c.b16 %v702, %v700
    %v725 = vpack.c.b16 %v705, %v703
    %v726 = vpack.c.b16 %v706, %v704
    %v727 = vpack.c.b16 %v709, %v707
    %v728 = vpack.c.b16 %v710, %v708
    %v729 = vpack.c.b16 %v713, %v711
    %v730 = vpack.c.b16 %v714, %v712
    %747 = vmatpush.bf16.msra.mxu0 %v729
    %748 = vmatpush.bf16.msra.mxu0 %v727
    %749 = vmatpush.bf16.msra.mxu0 %v725
    %750 = vmatpush.bf16.msra.mxu0 %v723
    %751 = vmatpush.bf16.msra.mxu0 %v721
    %752 = vmatpush.bf16.msra.mxu0 %v719
    %753 = vmatpush.bf16.msra.mxu0 %v717
    %754 = vmatpush.bf16.msra.mxu0 %v715
    %755 = vmatmul.bf16.gmra.mxu0 %v663
    %v756 = vpop.f32.mrf.mxu0
    %v757 = vadd.f32 0.0, %v756
    %v758 = vpop.f32.mrf.mxu0
    %v759 = vadd.f32 0.0, %v758
    %760 = vmatmul.bf16.gmra.mxu0 %v664
    %v761 = vpop.f32.mrf.mxu0
    %v762 = vadd.f32 0.0, %v761
    %v763 = vpop.f32.mrf.mxu0
    %764 = vdwg.mxu0
    %765 = vmatpush.bf16.msra.mxu0 %v730
    %766 = vmatpush.bf16.msra.mxu0 %v728
    %767 = vmatpush.bf16.msra.mxu0 %v726
    %768 = vmatpush.bf16.msra.mxu0 %v724
    %769 = vmatpush.bf16.msra.mxu0 %v722
    %770 = vmatpush.bf16.msra.mxu0 %v720
    %771 = vmatpush.bf16.msra.mxu0 %v718
    %772 = vmatpush.bf16.msra.mxu0 %v716
    %773 = vmatmul.bf16.gmra.mxu0 %v663
    %v774 = vpop.f32.mrf.mxu0
    %v775 = vadd.f32 0.0, %v774
    %v776 = vpop.f32.mrf.mxu0
    %v777 = vadd.f32 0.0, %v776
    %778 = vmatmul.bf16.gmra.mxu0 %v664
    %v779 = vpop.f32.mrf.mxu0
    %v780 = vadd.f32 0.0, %v779
    %v781 = vpop.f32.mrf.mxu0
    %782 = vdwg.mxu0
    %v783 = vadd.f32 %v614, %v757
    %v784 = vadd.f32 %v632, %v775
    %v785 = vadd.f32 %v616, %v759
    %v786 = vadd.f32 %v634, %v777
    %v787 = vadd.f32 %v619, %v762
    %v788 = vadd.f32 %v637, %v780
    %s789 = scalar_lea.vmem [#allocation5], 384
    %v790 = vld [vmem:[%s789] sm:$0xff]
    %v791 = vld [vmem:[%s789 + $0x8] sm:$0xff]
    %v792 = vld [vmem:[%s789 + $0x10] sm:$0xff]
    %v793 = vld [vmem:[%s789 + $0x18] sm:$0xff]
    %v794 = vld [vmem:[%s789 + $0x20] sm:$0xff]
    %v795 = vld [vmem:[%s789 + $0x28] sm:$0xff]
    %v796 = vld [vmem:[%s789 + $0x30] sm:$0xff]
    %v797 = vld [vmem:[%s789 + $0x38] sm:$0xff]
    %v798 = vld [vmem:[%s789 + $0x40] sm:$0xff]
    %v799 = vld [vmem:[%s789 + $0x48] sm:$0xff]
    %v800 = vld [vmem:[%s789 + $0x50] sm:$0xff]
    %v801 = vld [vmem:[%s789 + $0x58] sm:$0xff]
    %v802 = vld [vmem:[%s789 + $0x60] sm:$0xff]
    %v803 = vld [vmem:[%s789 + $0x68] sm:$0xff]
    %v804 = vld [vmem:[%s789 + $0x70] sm:$0xff]
    %v805 = vld [vmem:[%s789 + $0x78] sm:$0xff]
    %v809 = vunpack.c.l.b16 %v352
    %v810 = vunpack.c.l.b16 %v353
    %v811 = vunpack.c.l.b16 %v354
    %v812 = vpack.c.b16 %v810, %v809
    %v813 = vpack.c.b16 %v811, %v811
    %v832 = vunpack.c.l.b16 %v790
    %v833 = vunpack.c.h.b16 %v790
    %v834 = vunpack.c.l.b16 %v791
    %v835 = vunpack.c.h.b16 %v791
    %v836 = vunpack.c.l.b16 %v792
    %v837 = vunpack.c.h.b16 %v792
    %v838 = vunpack.c.l.b16 %v793
    %v839 = vunpack.c.h.b16 %v793
    %v840 = vunpack.c.l.b16 %v794
    %v841 = vunpack.c.h.b16 %v794
    %v842 = vunpack.c.l.b16 %v795
    %v843 = vunpack.c.h.b16 %v795
    %v844 = vunpack.c.l.b16 %v796
    %v845 = vunpack.c.h.b16 %v796
    %v846 = vunpack.c.l.b16 %v797
    %v847 = vunpack.c.h.b16 %v797
    %v848 = vunpack.c.l.b16 %v798
    %v849 = vunpack.c.h.b16 %v798
    %v850 = vunpack.c.l.b16 %v799
    %v851 = vunpack.c.h.b16 %v799
    %v852 = vunpack.c.l.b16 %v800
    %v853 = vunpack.c.h.b16 %v800
    %v854 = vunpack.c.l.b16 %v801
    %v855 = vunpack.c.h.b16 %v801
    %v856 = vunpack.c.l.b16 %v802
    %v857 = vunpack.c.h.b16 %v802
    %v858 = vunpack.c.l.b16 %v803
    %v859 = vunpack.c.h.b16 %v803
    %v860 = vunpack.c.l.b16 %v804
    %v861 = vunpack.c.h.b16 %v804
    %v862 = vunpack.c.l.b16 %v805
    %v863 = vunpack.c.h.b16 %v805
    %v864 = vpack.c.b16 %v834, %v832
    %v865 = vpack.c.b16 %v835, %v833
    %v866 = vpack.c.b16 %v838, %v836
    %v867 = vpack.c.b16 %v839, %v837
    %v868 = vpack.c.b16 %v842, %v840
    %v869 = vpack.c.b16 %v843, %v841
    %v870 = vpack.c.b16 %v846, %v844
    %v871 = vpack.c.b16 %v847, %v845
    %v872 = vpack.c.b16 %v850, %v848
    %v873 = vpack.c.b16 %v851, %v849
    %v874 = vpack.c.b16 %v854, %v852
    %v875 = vpack.c.b16 %v855, %v853
    %v876 = vpack.c.b16 %v858, %v856
    %v877 = vpack.c.b16 %v859, %v857
    %v878 = vpack.c.b16 %v862, %v860
    %v879 = vpack.c.b16 %v863, %v861
    %896 = vmatpush.bf16.msra.mxu0 %v878
    %897 = vmatpush.bf16.msra.mxu0 %v876
    %898 = vmatpush.bf16.msra.mxu0 %v874
    %899 = vmatpush.bf16.msra.mxu0 %v872
    %900 = vmatpush.bf16.msra.mxu0 %v870
    %901 = vmatpush.bf16.msra.mxu0 %v868
    %902 = vmatpush.bf16.msra.mxu0 %v866
    %903 = vmatpush.bf16.msra.mxu0 %v864
    %904 = vmatmul.bf16.gmra.mxu0 %v812
    %v905 = vpop.f32.mrf.mxu0
    %v906 = vadd.f32 0.0, %v905
    %v907 = vpop.f32.mrf.mxu0
    %v908 = vadd.f32 0.0, %v907
    %909 = vmatmul.bf16.gmra.mxu0 %v813
    %v910 = vpop.f32.mrf.mxu0
    %v911 = vadd.f32 0.0, %v910
    %v912 = vpop.f32.mrf.mxu0
    %913 = vdwg.mxu0
    %914 = vmatpush.bf16.msra.mxu0 %v879
    %915 = vmatpush.bf16.msra.mxu0 %v877
    %916 = vmatpush.bf16.msra.mxu0 %v875
    %917 = vmatpush.bf16.msra.mxu0 %v873
    %918 = vmatpush.bf16.msra.mxu0 %v871
    %919 = vmatpush.bf16.msra.mxu0 %v869
    %920 = vmatpush.bf16.msra.mxu0 %v867
    %921 = vmatpush.bf16.msra.mxu0 %v865
    %922 = vmatmul.bf16.gmra.mxu0 %v812
    %v923 = vpop.f32.mrf.mxu0
    %v924 = vadd.f32 0.0, %v923
    %v925 = vpop.f32.mrf.mxu0
    %v926 = vadd.f32 0.0, %v925
    %927 = vmatmul.bf16.gmra.mxu0 %v813
    %v928 = vpop.f32.mrf.mxu0
    %v929 = vadd.f32 0.0, %v928
    %v930 = vpop.f32.mrf.mxu0
    %931 = vdwg.mxu0
    %v932 = vadd.f32 %v783, %v906
    %v933 = vadd.f32 %v784, %v924
    %v934 = vadd.f32 %v785, %v908
    %v935 = vadd.f32 %v786, %v926
    %v936 = vadd.f32 %v787, %v911
    %v937 = vadd.f32 %v788, %v929
    %v938 = vld [vmem:[%s5] sm:$0x3]
    %v940 = vperm.slane %v938, 0
    %v941 = vperm.slane %v938, 1
    %v944 = vmul.f32 %v932, %v940
    %v945 = vmul.f32 %v933, %v941
    %v946 = vmul.f32 %v934, %v940
    %v947 = vmul.f32 %v935, %v941
    %v948 = vmul.f32 %v936, %v940
    %v949 = vmul.f32 %v937, %v941
    %v950 = vld [vmem:[%s6] sm:$0x3]
    %v952 = vperm.slane %v950, 0
    %v953 = vperm.slane %v950, 1
    %v956 = vadd.f32 %v944, %v952
    %v957 = vadd.f32 %v945, %v953
    %v958 = vadd.f32 %v946, %v952
    %v959 = vadd.f32 %v947, %v953
    %v960 = vadd.f32 %v948, %v952
    %v961 = vadd.f32 %v949, %v953
    %v962 = vmax.f32 %v956, 0.0
    %v963 = vmax.f32 %v957, 0.0
    %v964 = vmax.f32 %v958, 0.0
    %v965 = vmax.f32 %v959, 0.0
    %v966 = vmax.f32 %v960, 0.0
    %v967 = vmax.f32 %v961, 0.0
    %v968 = vld [vmem:[%s7] sm:$0xf]
    %v969 = vld [vmem:[%s7 + $0x4] sm:$0xf]
    %v970 = vld [vmem:[%s7 + $0x8] sm:$0xf]
    %v971 = vld [vmem:[%s7 + $0xc] sm:$0xf]
    %v972 = vld [vmem:[%s7 + $0x10] sm:$0xf]
    %v973 = vld [vmem:[%s7 + $0x14] sm:$0xf]
    %v974 = vld [vmem:[%s7 + $0x18] sm:$0xf]
    %v975 = vld [vmem:[%s7 + $0x1c] sm:$0xf]
    %v976 = vpack.c.bf16 %v964, %v962
    %v977 = vpack.c.bf16 %v965, %v963
    %v978 = vpack.c.bf16 %v966, %v966
    %v979 = vpack.c.bf16 %v967, %v967
    %v988 = vunpack.c.l.b16 %v968
    %v989 = vunpack.c.l.b16 %v969
    %v990 = vunpack.c.l.b16 %v970
    %v991 = vunpack.c.l.b16 %v971
    %v992 = vunpack.c.l.b16 %v972
    %v993 = vunpack.c.l.b16 %v973
    %v994 = vunpack.c.l.b16 %v974
    %v995 = vunpack.c.l.b16 %v975
    %v996 = vpack.c.b16 %v989, %v988
    %v997 = vpack.c.b16 %v991, %v990
    %v998 = vpack.c.b16 %v993, %v992
    %v999 = vpack.c.b16 %v995, %v994
    %vm1000 = vcmask 195584
    %v1002 = vsel %vm1000, %v996, 0
    %v1005 = vsel %vm1000, %v997, 0
    %v1008 = vsel %vm1000, %v998, 0
    %v1011 = vsel %vm1000, %v999, 0
    %vm1013 = vcmask 1043456
    %v1015 = vsel %vm1013, %v978, 0
    %v1018 = vsel %vm1013, %v979, 0
    %1020 = vmatpush.bf16.msra.mxu0 0
    %1021 = vmatpush.bf16.msra.mxu0 0
    %1022 = vmatpush.bf16.msra.mxu0 0
    %1023 = vmatpush.bf16.msra.mxu0 0
    %1024 = vmatpush.bf16.msra.mxu0 0
    %1025 = vmatpush.bf16.msra.mxu0 0
    %1026 = vmatpush.bf16.msra.mxu0 %v1015
    %1027 = vmatpush.bf16.msra.mxu0 %v976
    %1028 = vmatmul.bf16.gmra.mxu0 %v1002
    %v1029 = vpop.f32.mrf.mxu0
    %v1030 = vadd.f32 0.0, %v1029
    %v1031 = vpop.f32.mrf.mxu0
    %v1032 = vadd.f32 0.0, %v1031
    %1033 = vmatmul.bf16.gmra.mxu0 %v1005
    %v1034 = vpop.f32.mrf.mxu0
    %v1035 = vadd.f32 0.0, %v1034
    %v1036 = vpop.f32.mrf.mxu0
    %v1037 = vadd.f32 0.0, %v1036
    %1038 = vmatmul.bf16.gmra.mxu0 %v1008
    %v1039 = vpop.f32.mrf.mxu0
    %v1040 = vadd.f32 0.0, %v1039
    %v1041 = vpop.f32.mrf.mxu0
    %v1042 = vadd.f32 0.0, %v1041
    %1043 = vmatmul.bf16.gmra.mxu0 %v1011
    %v1044 = vpop.f32.mrf.mxu0
    %v1045 = vadd.f32 0.0, %v1044
    %v1046 = vpop.f32.mrf.mxu0
    %v1047 = vadd.f32 0.0, %v1046
    %1048 = vdwg.mxu0
    %1049 = vmatpush.bf16.msra.mxu0 0
    %1050 = vmatpush.bf16.msra.mxu0 0
    %1051 = vmatpush.bf16.msra.mxu0 0
    %1052 = vmatpush.bf16.msra.mxu0 0
    %1053 = vmatpush.bf16.msra.mxu0 0
    %1054 = vmatpush.bf16.msra.mxu0 0
    %1055 = vmatpush.bf16.msra.mxu0 %v1018
    %1056 = vmatpush.bf16.msra.mxu0 %v977
    %1057 = vmatmul.bf16.gmra.mxu0 %v1002
    %v1058 = vpop.f32.mrf.mxu0
    %v1059 = vadd.f32 0.0, %v1058
    %v1060 = vpop.f32.mrf.mxu0
    %v1061 = vadd.f32 0.0, %v1060
    %1062 = vmatmul.bf16.gmra.mxu0 %v1005
    %v1063 = vpop.f32.mrf.mxu0
    %v1064 = vadd.f32 0.0, %v1063
    %v1065 = vpop.f32.mrf.mxu0
    %v1066 = vadd.f32 0.0, %v1065
    %1067 = vmatmul.bf16.gmra.mxu0 %v1008
    %v1068 = vpop.f32.mrf.mxu0
    %v1069 = vadd.f32 0.0, %v1068
    %v1070 = vpop.f32.mrf.mxu0
    %v1071 = vadd.f32 0.0, %v1070
    %1072 = vmatmul.bf16.gmra.mxu0 %v1011
    %v1073 = vpop.f32.mrf.mxu0
    %v1074 = vadd.f32 0.0, %v1073
    %v1075 = vpop.f32.mrf.mxu0
    %v1076 = vadd.f32 0.0, %v1075
    %1077 = vdwg.mxu0
    %v1078 = vpack.c.bf16 %v1059, %v1030
    %v1079 = vpack.c.bf16 %v1061, %v1032
    %v1080 = vpack.c.bf16 %v1064, %v1035
    %v1081 = vpack.c.bf16 %v1066, %v1037
    %v1082 = vpack.c.bf16 %v1069, %v1040
    %v1083 = vpack.c.bf16 %v1071, %v1042
    %v1084 = vpack.c.bf16 %v1074, %v1045
    %v1085 = vpack.c.bf16 %v1076, %v1047
    %v1086 = vld [vmem:[#allocation7] sm:$0xff]
    %v1087 = vld [vmem:[#allocation7 + $0x8] sm:$0xff]
    %v1088 = vld [vmem:[#allocation7 + $0x10] sm:$0xff]
    %v1089 = vld [vmem:[#allocation7 + $0x18] sm:$0xff]
    %v1090 = vld [vmem:[#allocation7 + $0x20] sm:$0xff]
    %v1091 = vld [vmem:[#allocation7 + $0x28] sm:$0xff]
    %v1092 = vld [vmem:[#allocation7 + $0x30] sm:$0xff]
    %v1093 = vld [vmem:[#allocation7 + $0x38] sm:$0xff]
    %v1094 = vld [vmem:[#allocation7 + $0x40] sm:$0xff]
    %v1095 = vld [vmem:[#allocation7 + $0x48] sm:$0xff]
    %v1096 = vld [vmem:[#allocation7 + $0x50] sm:$0xff]
    %v1097 = vld [vmem:[#allocation7 + $0x58] sm:$0xff]
    %v1098 = vld [vmem:[#allocation7 + $0x60] sm:$0xff]
    %v1099 = vld [vmem:[#allocation7 + $0x68] sm:$0xff]
    %v1100 = vld [vmem:[#allocation7 + $0x70] sm:$0xff]
    %v1101 = vld [vmem:[#allocation7 + $0x78] sm:$0xff]
    %v1102 = vld [vmem:[#allocation7 + $0x80] sm:$0xff]
    %v1103 = vld [vmem:[#allocation7 + $0x88] sm:$0xff]
    %v1104 = vld [vmem:[#allocation7 + $0x90] sm:$0xff]
    %v1105 = vld [vmem:[#allocation7 + $0x98] sm:$0xff]
    %v1106 = vld [vmem:[#allocation7 + $0xa0] sm:$0xff]
    %v1107 = vld [vmem:[#allocation7 + $0xa8] sm:$0xff]
    %v1108 = vld [vmem:[#allocation7 + $0xb0] sm:$0xff]
    %v1109 = vld [vmem:[#allocation7 + $0xb8] sm:$0xff]
    %v1110 = vld [vmem:[#allocation7 + $0xc0] sm:$0xff]
    %v1111 = vld [vmem:[#allocation7 + $0xc8] sm:$0xff]
    %v1112 = vld [vmem:[#allocation7 + $0xd0] sm:$0xff]
    %v1113 = vld [vmem:[#allocation7 + $0xd8] sm:$0xff]
    %v1114 = vld [vmem:[#allocation7 + $0xe0] sm:$0xff]
    %v1115 = vld [vmem:[#allocation7 + $0xe8] sm:$0xff]
    %v1116 = vld [vmem:[#allocation7 + $0xf0] sm:$0xff]
    %v1117 = vld [vmem:[#allocation7 + $0xf8] sm:$0xff]
    %s1118 = scalar_lea.vmem [#allocation7], 256
    %v1119 = vld [vmem:[%s1118] sm:$0xff]
    %v1120 = vld [vmem:[%s1118 + $0x8] sm:$0xff]
    %v1121 = vld [vmem:[%s1118 + $0x10] sm:$0xff]
    %v1122 = vld [vmem:[%s1118 + $0x18] sm:$0xff]
    %v1123 = vld [vmem:[%s1118 + $0x20] sm:$0xff]
    %v1124 = vld [vmem:[%s1118 + $0x28] sm:$0xff]
    %v1125 = vld [vmem:[%s1118 + $0x30] sm:$0xff]
    %v1126 = vld [vmem:[%s1118 + $0x38] sm:$0xff]
    %v1127 = vld [vmem:[%s1118 + $0x40] sm:$0xff]
    %v1128 = vld [vmem:[%s1118 + $0x48] sm:$0xff]
    %v1129 = vld [vmem:[%s1118 + $0x50] sm:$0xff]
    %v1130 = vld [vmem:[%s1118 + $0x58] sm:$0xff]
    %v1131 = vld [vmem:[%s1118 + $0x60] sm:$0xff]
    %v1132 = vld [vmem:[%s1118 + $0x68] sm:$0xff]
    %v1133 = vld [vmem:[%s1118 + $0x70] sm:$0xff]
    %v1134 = vld [vmem:[%s1118 + $0x78] sm:$0xff]
    %v1135 = vld [vmem:[%s1118 + $0x80] sm:$0xff]
    %v1136 = vld [vmem:[%s1118 + $0x88] sm:$0xff]
    %v1137 = vld [vmem:[%s1118 + $0x90] sm:$0xff]
    %v1138 = vld [vmem:[%s1118 + $0x98] sm:$0xff]
    %v1139 = vld [vmem:[%s1118 + $0xa0] sm:$0xff]
    %v1140 = vld [vmem:[%s1118 + $0xa8] sm:$0xff]
    %v1141 = vld [vmem:[%s1118 + $0xb0] sm:$0xff]
    %v1142 = vld [vmem:[%s1118 + $0xb8] sm:$0xff]
    %v1143 = vld [vmem:[%s1118 + $0xc0] sm:$0xff]
    %v1144 = vld [vmem:[%s1118 + $0xc8] sm:$0xff]
    %v1145 = vld [vmem:[%s1118 + $0xd0] sm:$0xff]
    %v1146 = vld [vmem:[%s1118 + $0xd8] sm:$0xff]
    %v1147 = vld [vmem:[%s1118 + $0xe0] sm:$0xff]
    %v1148 = vld [vmem:[%s1118 + $0xe8] sm:$0xff]
    %v1149 = vld [vmem:[%s1118 + $0xf0] sm:$0xff]
    %v1150 = vld [vmem:[%s1118 + $0xf8] sm:$0xff]
    %v1153 = vunpack.c.l.b16 %v1080
    %v1154 = vunpack.c.h.b16 %v1080
    %v1155 = vunpack.c.l.b16 %v1081
    %v1156 = vunpack.c.h.b16 %v1081
    %v1157 = vpack.c.b16 %v1155, %v1153
    %v1158 = vpack.c.b16 %v1156, %v1154
    %v1193 = vunpack.c.l.b16 %v1119
    %v1194 = vunpack.c.h.b16 %v1119
    %v1195 = vunpack.c.l.b16 %v1120
    %v1196 = vunpack.c.h.b16 %v1120
    %v1197 = vunpack.c.l.b16 %v1121
    %v1198 = vunpack.c.h.b16 %v1121
    %v1199 = vunpack.c.l.b16 %v1122
    %v1200 = vunpack.c.h.b16 %v1122
    %v1201 = vunpack.c.l.b16 %v1123
    %v1202 = vunpack.c.h.b16 %v1123
    %v1203 = vunpack.c.l.b16 %v1124
    %v1204 = vunpack.c.h.b16 %v1124
    %v1205 = vunpack.c.l.b16 %v1125
    %v1206 = vunpack.c.h.b16 %v1125
    %v1207 = vunpack.c.l.b16 %v1126
    %v1208 = vunpack.c.h.b16 %v1126
    %v1209 = vunpack.c.l.b16 %v1127
    %v1210 = vunpack.c.h.b16 %v1127
    %v1211 = vunpack.c.l.b16 %v1128
    %v1212 = vunpack.c.h.b16 %v1128
    %v1213 = vunpack.c.l.b16 %v1129
    %v1214 = vunpack.c.h.b16 %v1129
    %v1215 = vunpack.c.l.b16 %v1130
    %v1216 = vunpack.c.h.b16 %v1130
    %v1217 = vunpack.c.l.b16 %v1131
    %v1218 = vunpack.c.h.b16 %v1131
    %v1219 = vunpack.c.l.b16 %v1132
    %v1220 = vunpack.c.h.b16 %v1132
    %v1221 = vunpack.c.l.b16 %v1133
    %v1222 = vunpack.c.h.b16 %v1133
    %v1223 = vunpack.c.l.b16 %v1134
    %v1224 = vunpack.c.h.b16 %v1134
    %v1225 = vunpack.c.l.b16 %v1135
    %v1226 = vunpack.c.h.b16 %v1135
    %v1227 = vunpack.c.l.b16 %v1136
    %v1228 = vunpack.c.h.b16 %v1136
    %v1229 = vunpack.c.l.b16 %v1137
    %v1230 = vunpack.c.h.b16 %v1137
    %v1231 = vunpack.c.l.b16 %v1138
    %v1232 = vunpack.c.h.b16 %v1138
    %v1233 = vunpack.c.l.b16 %v1139
    %v1234 = vunpack.c.h.b16 %v1139
    %v1235 = vunpack.c.l.b16 %v1140
    %v1236 = vunpack.c.h.b16 %v1140
    %v1237 = vunpack.c.l.b16 %v1141
    %v1238 = vunpack.c.h.b16 %v1141
    %v1239 = vunpack.c.l.b16 %v1142
    %v1240 = vunpack.c.h.b16 %v1142
    %v1241 = vunpack.c.l.b16 %v1143
    %v1242 = vunpack.c.h.b16 %v1143
    %v1243 = vunpack.c.l.b16 %v1144
    %v1244 = vunpack.c.h.b16 %v1144
    %v1245 = vunpack.c.l.b16 %v1145
    %v1246 = vunpack.c.h.b16 %v1145
    %v1247 = vunpack.c.l.b16 %v1146
    %v1248 = vunpack.c.h.b16 %v1146
    %v1249 = vunpack.c.l.b16 %v1147
    %v1250 = vunpack.c.h.b16 %v1147
    %v1251 = vunpack.c.l.b16 %v1148
    %v1252 = vunpack.c.h.b16 %v1148
    %v1253 = vunpack.c.l.b16 %v1149
    %v1254 = vunpack.c.h.b16 %v1149
    %v1255 = vunpack.c.l.b16 %v1150
    %v1256 = vunpack.c.h.b16 %v1150
    %v1257 = vpack.c.b16 %v1195, %v1193
    %v1258 = vpack.c.b16 %v1196, %v1194
    %v1259 = vpack.c.b16 %v1199, %v1197
    %v1260 = vpack.c.b16 %v1200, %v1198
    %v1261 = vpack.c.b16 %v1203, %v1201
    %v1262 = vpack.c.b16 %v1204, %v1202
    %v1263 = vpack.c.b16 %v1207, %v1205
    %v1264 = vpack.c.b16 %v1208, %v1206
    %v1265 = vpack.c.b16 %v1211, %v1209
    %v1266 = vpack.c.b16 %v1212, %v1210
    %v1267 = vpack.c.b16 %v1215, %v1213
    %v1268 = vpack.c.b16 %v1216, %v1214
    %v1269 = vpack.c.b16 %v1219, %v1217
    %v1270 = vpack.c.b16 %v1220, %v1218
    %v1271 = vpack.c.b16 %v1223, %v1221
    %v1272 = vpack.c.b16 %v1224, %v1222
    %v1273 = vpack.c.b16 %v1227, %v1225
    %v1274 = vpack.c.b16 %v1228, %v1226
    %v1275 = vpack.c.b16 %v1231, %v1229
    %v1276 = vpack.c.b16 %v1232, %v1230
    %v1277 = vpack.c.b16 %v1235, %v1233
    %v1278 = vpack.c.b16 %v1236, %v1234
    %v1279 = vpack.c.b16 %v1239, %v1237
    %v1280 = vpack.c.b16 %v1240, %v1238
    %v1281 = vpack.c.b16 %v1243, %v1241
    %v1282 = vpack.c.b16 %v1244, %v1242
    %v1283 = vpack.c.b16 %v1247, %v1245
    %v1284 = vpack.c.b16 %v1248, %v1246
    %v1285 = vpack.c.b16 %v1251, %v1249
    %v1286 = vpack.c.b16 %v1252, %v1250
    %v1287 = vpack.c.b16 %v1255, %v1253
    %v1288 = vpack.c.b16 %v1256, %v1254
    %1321 = vmatpush.bf16.msra.mxu0 %v1271
    %1322 = vmatpush.bf16.msra.mxu0 %v1269
    %1323 = vmatpush.bf16.msra.mxu0 %v1267
    %1324 = vmatpush.bf16.msra.mxu0 %v1265
    %1325 = vmatpush.bf16.msra.mxu0 %v1263
    %1326 = vmatpush.bf16.msra.mxu0 %v1261
    %1327 = vmatpush.bf16.msra.mxu0 %v1259
    %1328 = vmatpush.bf16.msra.mxu0 %v1257
    %1329 = vmatmul.bf16.gmra.mxu0 %v1157
    %v1330 = vpop.f32.mrf.mxu0
    %v1331 = vadd.f32 0.0, %v1330
    %v1332 = vpop.f32.mrf.mxu0
    %v1333 = vadd.f32 0.0, %v1332
    %1334 = vdwg.mxu0
    %1335 = vmatpush.bf16.msra.mxu0 %v1287
    %1336 = vmatpush.bf16.msra.mxu0 %v1285
    %1337 = vmatpush.bf16.msra.mxu0 %v1283
    %1338 = vmatpush.bf16.msra.mxu0 %v1281
    %1339 = vmatpush.bf16.msra.mxu0 %v1279
    %1340 = vmatpush.bf16.msra.mxu0 %v1277
    %1341 = vmatpush.bf16.msra.mxu0 %v1275
    %1342 = vmatpush.bf16.msra.mxu0 %v1273
    %1343 = vmatmul.bf16.gmra.mxu0 %v1158
    %v1344 = vpop.f32.mrf.mxu0
    %v1345 = vadd.f32 %v1331, %v1344
    %v1346 = vpop.f32.mrf.mxu0
    %v1347 = vadd.f32 %v1333, %v1346
    %1348 = vdwg.mxu0
    %1349 = vmatpush.bf16.msra.mxu0 %v1272
    %1350 = vmatpush.bf16.msra.mxu0 %v1270
    %1351 = vmatpush.bf16.msra.mxu0 %v1268
    %1352 = vmatpush.bf16.msra.mxu0 %v1266
    %1353 = vmatpush.bf16.msra.mxu0 %v1264
    %1354 = vmatpush.bf16.msra.mxu0 %v1262
    %1355 = vmatpush.bf16.msra.mxu0 %v1260
    %1356 = vmatpush.bf16.msra.mxu0 %v1258
    %1357 = vmatmul.bf16.gmra.mxu0 %v1157
    %v1358 = vpop.f32.mrf.mxu0
    %v1359 = vadd.f32 0.0, %v1358
    %v1360 = vpop.f32.mrf.mxu0
    %v1361 = vadd.f32 0.0, %v1360
    %1362 = vdwg.mxu0
    %1363 = vmatpush.bf16.msra.mxu0 %v1288
    %1364 = vmatpush.bf16.msra.mxu0 %v1286
    %1365 = vmatpush.bf16.msra.mxu0 %v1284
    %1366 = vmatpush.bf16.msra.mxu0 %v1282
    %1367 = vmatpush.bf16.msra.mxu0 %v1280
    %1368 = vmatpush.bf16.msra.mxu0 %v1278
    %1369 = vmatpush.bf16.msra.mxu0 %v1276
    %1370 = vmatpush.bf16.msra.mxu0 %v1274
    %1371 = vmatmul.bf16.gmra.mxu0 %v1158
    %v1372 = vpop.f32.mrf.mxu0
    %v1373 = vadd.f32 %v1359, %v1372
    %v1374 = vpop.f32.mrf.mxu0
    %v1375 = vadd.f32 %v1361, %v1374
    %1376 = vdwg.mxu0
    %v1379 = vunpack.c.l.b16 %v1078
    %v1380 = vunpack.c.h.b16 %v1078
    %v1381 = vunpack.c.l.b16 %v1079
    %v1382 = vunpack.c.h.b16 %v1079
    %v1383 = vpack.c.b16 %v1381, %v1379
    %v1384 = vpack.c.b16 %v1382, %v1380
    %v1419 = vunpack.c.l.b16 %v1086
    %v1420 = vunpack.c.h.b16 %v1086
    %v1421 = vunpack.c.l.b16 %v1087
    %v1422 = vunpack.c.h.b16 %v1087
    %v1423 = vunpack.c.l.b16 %v1088
    %v1424 = vunpack.c.h.b16 %v1088
    %v1425 = vunpack.c.l.b16 %v1089
    %v1426 = vunpack.c.h.b16 %v1089
    %v1427 = vunpack.c.l.b16 %v1090
    %v1428 = vunpack.c.h.b16 %v1090
    %v1429 = vunpack.c.l.b16 %v1091
    %v1430 = vunpack.c.h.b16 %v1091
    %v1431 = vunpack.c.l.b16 %v1092
    %v1432 = vunpack.c.h.b16 %v1092
    %v1433 = vunpack.c.l.b16 %v1093
    %v1434 = vunpack.c.h.b16 %v1093
    %v1435 = vunpack.c.l.b16 %v1094
    %v1436 = vunpack.c.h.b16 %v1094
    %v1437 = vunpack.c.l.b16 %v1095
    %v1438 = vunpack.c.h.b16 %v1095
    %v1439 = vunpack.c.l.b16 %v1096
    %v1440 = vunpack.c.h.b16 %v1096
    %v1441 = vunpack.c.l.b16 %v1097
    %v1442 = vunpack.c.h.b16 %v1097
    %v1443 = vunpack.c.l.b16 %v1098
    %v1444 = vunpack.c.h.b16 %v1098
    %v1445 = vunpack.c.l.b16 %v1099
    %v1446 = vunpack.c.h.b16 %v1099
    %v1447 = vunpack.c.l.b16 %v1100
    %v1448 = vunpack.c.h.b16 %v1100
    %v1449 = vunpack.c.l.b16 %v1101
    %v1450 = vunpack.c.h.b16 %v1101
    %v1451 = vunpack.c.l.b16 %v1102
    %v1452 = vunpack.c.h.b16 %v1102
    %v1453 = vunpack.c.l.b16 %v1103
    %v1454 = vunpack.c.h.b16 %v1103
    %v1455 = vunpack.c.l.b16 %v1104
    %v1456 = vunpack.c.h.b16 %v1104
    %v1457 = vunpack.c.l.b16 %v1105
    %v1458 = vunpack.c.h.b16 %v1105
    %v1459 = vunpack.c.l.b16 %v1106
    %v1460 = vunpack.c.h.b16 %v1106
    %v1461 = vunpack.c.l.b16 %v1107
    %v1462 = vunpack.c.h.b16 %v1107
    %v1463 = vunpack.c.l.b16 %v1108
    %v1464 = vunpack.c.h.b16 %v1108
    %v1465 = vunpack.c.l.b16 %v1109
    %v1466 = vunpack.c.h.b16 %v1109
    %v1467 = vunpack.c.l.b16 %v1110
    %v1468 = vunpack.c.h.b16 %v1110
    %v1469 = vunpack.c.l.b16 %v1111
    %v1470 = vunpack.c.h.b16 %v1111
    %v1471 = vunpack.c.l.b16 %v1112
    %v1472 = vunpack.c.h.b16 %v1112
    %v1473 = vunpack.c.l.b16 %v1113
    %v1474 = vunpack.c.h.b16 %v1113
    %v1475 = vunpack.c.l.b16 %v1114
    %v1476 = vunpack.c.h.b16 %v1114
    %v1477 = vunpack.c.l.b16 %v1115
    %v1478 = vunpack.c.h.b16 %v1115
    %v1479 = vunpack.c.l.b16 %v1116
    %v1480 = vunpack.c.h.b16 %v1116
    %v1481 = vunpack.c.l.b16 %v1117
    %v1482 = vunpack.c.h.b16 %v1117
    %v1483 = vpack.c.b16 %v1421, %v1419
    %v1484 = vpack.c.b16 %v1422, %v1420
    %v1485 = vpack.c.b16 %v1425, %v1423
    %v1486 = vpack.c.b16 %v1426, %v1424
    %v1487 = vpack.c.b16 %v1429, %v1427
    %v1488 = vpack.c.b16 %v1430, %v1428
    %v1489 = vpack.c.b16 %v1433, %v1431
    %v1490 = vpack.c.b16 %v1434, %v1432
    %v1491 = vpack.c.b16 %v1437, %v1435
    %v1492 = vpack.c.b16 %v1438, %v1436
    %v1493 = vpack.c.b16 %v1441, %v1439
    %v1494 = vpack.c.b16 %v1442, %v1440
    %v1495 = vpack.c.b16 %v1445, %v1443
    %v1496 = vpack.c.b16 %v1446, %v1444
    %v1497 = vpack.c.b16 %v1449, %v1447
    %v1498 = vpack.c.b16 %v1450, %v1448
    %v1499 = vpack.c.b16 %v1453, %v1451
    %v1500 = vpack.c.b16 %v1454, %v1452
    %v1501 = vpack.c.b16 %v1457, %v1455
    %v1502 = vpack.c.b16 %v1458, %v1456
    %v1503 = vpack.c.b16 %v1461, %v1459
    %v1504 = vpack.c.b16 %v1462, %v1460
    %v1505 = vpack.c.b16 %v1465, %v1463
    %v1506 = vpack.c.b16 %v1466, %v1464
    %v1507 = vpack.c.b16 %v1469, %v1467
    %v1508 = vpack.c.b16 %v1470, %v1468
    %v1509 = vpack.c.b16 %v1473, %v1471
    %v1510 = vpack.c.b16 %v1474, %v1472
    %v1511 = vpack.c.b16 %v1477, %v1475
    %v1512 = vpack.c.b16 %v1478, %v1476
    %v1513 = vpack.c.b16 %v1481, %v1479
    %v1514 = vpack.c.b16 %v1482, %v1480
    %1547 = vmatpush.bf16.msra.mxu0 %v1497
    %1548 = vmatpush.bf16.msra.mxu0 %v1495
    %1549 = vmatpush.bf16.msra.mxu0 %v1493
    %1550 = vmatpush.bf16.msra.mxu0 %v1491
    %1551 = vmatpush.bf16.msra.mxu0 %v1489
    %1552 = vmatpush.bf16.msra.mxu0 %v1487
    %1553 = vmatpush.bf16.msra.mxu0 %v1485
    %1554 = vmatpush.bf16.msra.mxu0 %v1483
    %1555 = vmatmul.bf16.gmra.mxu0 %v1383
    %v1556 = vpop.f32.mrf.mxu0
    %v1557 = vadd.f32 %v1345, %v1556
    %v1558 = vpop.f32.mrf.mxu0
    %v1559 = vadd.f32 %v1347, %v1558
    %1560 = vdwg.mxu0
    %1561 = vmatpush.bf16.msra.mxu0 %v1513
    %1562 = vmatpush.bf16.msra.mxu0 %v1511
    %1563 = vmatpush.bf16.msra.mxu0 %v1509
    %1564 = vmatpush.bf16.msra.mxu0 %v1507
    %1565 = vmatpush.bf16.msra.mxu0 %v1505
    %1566 = vmatpush.bf16.msra.mxu0 %v1503
    %1567 = vmatpush.bf16.msra.mxu0 %v1501
    %1568 = vmatpush.bf16.msra.mxu0 %v1499
    %1569 = vmatmul.bf16.gmra.mxu0 %v1384
    %v1570 = vpop.f32.mrf.mxu0
    %v1571 = vadd.f32 %v1557, %v1570
    %v1572 = vpop.f32.mrf.mxu0
    %v1573 = vadd.f32 %v1559, %v1572
    %1574 = vdwg.mxu0
    %1575 = vmatpush.bf16.msra.mxu0 %v1498
    %1576 = vmatpush.bf16.msra.mxu0 %v1496
    %1577 = vmatpush.bf16.msra.mxu0 %v1494
    %1578 = vmatpush.bf16.msra.mxu0 %v1492
    %1579 = vmatpush.bf16.msra.mxu0 %v1490
    %1580 = vmatpush.bf16.msra.mxu0 %v1488
    %1581 = vmatpush.bf16.msra.mxu0 %v1486
    %1582 = vmatpush.bf16.msra.mxu0 %v1484
    %1583 = vmatmul.bf16.gmra.mxu0 %v1383
    %v1584 = vpop.f32.mrf.mxu0
    %v1585 = vadd.f32 %v1373, %v1584
    %v1586 = vpop.f32.mrf.mxu0
    %v1587 = vadd.f32 %v1375, %v1586
    %1588 = vdwg.mxu0
    %1589 = vmatpush.bf16.msra.mxu0 %v1514
    %1590 = vmatpush.bf16.msra.mxu0 %v1512
    %1591 = vmatpush.bf16.msra.mxu0 %v1510
    %1592 = vmatpush.bf16.msra.mxu0 %v1508
    %1593 = vmatpush.bf16.msra.mxu0 %v1506
    %1594 = vmatpush.bf16.msra.mxu0 %v1504
    %1595 = vmatpush.bf16.msra.mxu0 %v1502
    %1596 = vmatpush.bf16.msra.mxu0 %v1500
    %1597 = vmatmul.bf16.gmra.mxu0 %v1384
    %v1598 = vpop.f32.mrf.mxu0
    %v1599 = vadd.f32 %v1585, %v1598
    %v1600 = vpop.f32.mrf.mxu0
    %v1601 = vadd.f32 %v1587, %v1600
    %1602 = vdwg.mxu0
    %s1603 = scalar_lea.vmem [#allocation7], 512
    %v1604 = vld [vmem:[%s1603] sm:$0xff]
    %v1605 = vld [vmem:[%s1603 + $0x8] sm:$0xff]
    %v1606 = vld [vmem:[%s1603 + $0x10] sm:$0xff]
    %v1607 = vld [vmem:[%s1603 + $0x18] sm:$0xff]
    %v1608 = vld [vmem:[%s1603 + $0x20] sm:$0xff]
    %v1609 = vld [vmem:[%s1603 + $0x28] sm:$0xff]
    %v1610 = vld [vmem:[%s1603 + $0x30] sm:$0xff]
    %v1611 = vld [vmem:[%s1603 + $0x38] sm:$0xff]
    %v1612 = vld [vmem:[%s1603 + $0x40] sm:$0xff]
    %v1613 = vld [vmem:[%s1603 + $0x48] sm:$0xff]
    %v1614 = vld [vmem:[%s1603 + $0x50] sm:$0xff]
    %v1615 = vld [vmem:[%s1603 + $0x58] sm:$0xff]
    %v1616 = vld [vmem:[%s1603 + $0x60] sm:$0xff]
    %v1617 = vld [vmem:[%s1603 + $0x68] sm:$0xff]
    %v1618 = vld [vmem:[%s1603 + $0x70] sm:$0xff]
    %v1619 = vld [vmem:[%s1603 + $0x78] sm:$0xff]
    %v1620 = vld [vmem:[%s1603 + $0x80] sm:$0xff]
    %v1621 = vld [vmem:[%s1603 + $0x88] sm:$0xff]
    %v1622 = vld [vmem:[%s1603 + $0x90] sm:$0xff]
    %v1623 = vld [vmem:[%s1603 + $0x98] sm:$0xff]
    %v1624 = vld [vmem:[%s1603 + $0xa0] sm:$0xff]
    %v1625 = vld [vmem:[%s1603 + $0xa8] sm:$0xff]
    %v1626 = vld [vmem:[%s1603 + $0xb0] sm:$0xff]
    %v1627 = vld [vmem:[%s1603 + $0xb8] sm:$0xff]
    %v1628 = vld [vmem:[%s1603 + $0xc0] sm:$0xff]
    %v1629 = vld [vmem:[%s1603 + $0xc8] sm:$0xff]
    %v1630 = vld [vmem:[%s1603 + $0xd0] sm:$0xff]
    %v1631 = vld [vmem:[%s1603 + $0xd8] sm:$0xff]
    %v1632 = vld [vmem:[%s1603 + $0xe0] sm:$0xff]
    %v1633 = vld [vmem:[%s1603 + $0xe8] sm:$0xff]
    %v1634 = vld [vmem:[%s1603 + $0xf0] sm:$0xff]
    %v1635 = vld [vmem:[%s1603 + $0xf8] sm:$0xff]
    %v1638 = vunpack.c.l.b16 %v1082
    %v1639 = vunpack.c.h.b16 %v1082
    %v1640 = vunpack.c.l.b16 %v1083
    %v1641 = vunpack.c.h.b16 %v1083
    %v1642 = vpack.c.b16 %v1640, %v1638
    %v1643 = vpack.c.b16 %v1641, %v1639
    %v1678 = vunpack.c.l.b16 %v1604
    %v1679 = vunpack.c.h.b16 %v1604
    %v1680 = vunpack.c.l.b16 %v1605
    %v1681 = vunpack.c.h.b16 %v1605
    %v1682 = vunpack.c.l.b16 %v1606
    %v1683 = vunpack.c.h.b16 %v1606
    %v1684 = vunpack.c.l.b16 %v1607
    %v1685 = vunpack.c.h.b16 %v1607
    %v1686 = vunpack.c.l.b16 %v1608
    %v1687 = vunpack.c.h.b16 %v1608
    %v1688 = vunpack.c.l.b16 %v1609
    %v1689 = vunpack.c.h.b16 %v1609
    %v1690 = vunpack.c.l.b16 %v1610
    %v1691 = vunpack.c.h.b16 %v1610
    %v1692 = vunpack.c.l.b16 %v1611
    %v1693 = vunpack.c.h.b16 %v1611
    %v1694 = vunpack.c.l.b16 %v1612
    %v1695 = vunpack.c.h.b16 %v1612
    %v1696 = vunpack.c.l.b16 %v1613
    %v1697 = vunpack.c.h.b16 %v1613
    %v1698 = vunpack.c.l.b16 %v1614
    %v1699 = vunpack.c.h.b16 %v1614
    %v1700 = vunpack.c.l.b16 %v1615
    %v1701 = vunpack.c.h.b16 %v1615
    %v1702 = vunpack.c.l.b16 %v1616
    %v1703 = vunpack.c.h.b16 %v1616
    %v1704 = vunpack.c.l.b16 %v1617
    %v1705 = vunpack.c.h.b16 %v1617
    %v1706 = vunpack.c.l.b16 %v1618
    %v1707 = vunpack.c.h.b16 %v1618
    %v1708 = vunpack.c.l.b16 %v1619
    %v1709 = vunpack.c.h.b16 %v1619
    %v1710 = vunpack.c.l.b16 %v1620
    %v1711 = vunpack.c.h.b16 %v1620
    %v1712 = vunpack.c.l.b16 %v1621
    %v1713 = vunpack.c.h.b16 %v1621
    %v1714 = vunpack.c.l.b16 %v1622
    %v1715 = vunpack.c.h.b16 %v1622
    %v1716 = vunpack.c.l.b16 %v1623
    %v1717 = vunpack.c.h.b16 %v1623
    %v1718 = vunpack.c.l.b16 %v1624
    %v1719 = vunpack.c.h.b16 %v1624
    %v1720 = vunpack.c.l.b16 %v1625
    %v1721 = vunpack.c.h.b16 %v1625
    %v1722 = vunpack.c.l.b16 %v1626
    %v1723 = vunpack.c.h.b16 %v1626
    %v1724 = vunpack.c.l.b16 %v1627
    %v1725 = vunpack.c.h.b16 %v1627
    %v1726 = vunpack.c.l.b16 %v1628
    %v1727 = vunpack.c.h.b16 %v1628
    %v1728 = vunpack.c.l.b16 %v1629
    %v1729 = vunpack.c.h.b16 %v1629
    %v1730 = vunpack.c.l.b16 %v1630
    %v1731 = vunpack.c.h.b16 %v1630
    %v1732 = vunpack.c.l.b16 %v1631
    %v1733 = vunpack.c.h.b16 %v1631
    %v1734 = vunpack.c.l.b16 %v1632
    %v1735 = vunpack.c.h.b16 %v1632
    %v1736 = vunpack.c.l.b16 %v1633
    %v1737 = vunpack.c.h.b16 %v1633
    %v1738 = vunpack.c.l.b16 %v1634
    %v1739 = vunpack.c.h.b16 %v1634
    %v1740 = vunpack.c.l.b16 %v1635
    %v1741 = vunpack.c.h.b16 %v1635
    %v1742 = vpack.c.b16 %v1680, %v1678
    %v1743 = vpack.c.b16 %v1681, %v1679
    %v1744 = vpack.c.b16 %v1684, %v1682
    %v1745 = vpack.c.b16 %v1685, %v1683
    %v1746 = vpack.c.b16 %v1688, %v1686
    %v1747 = vpack.c.b16 %v1689, %v1687
    %v1748 = vpack.c.b16 %v1692, %v1690
    %v1749 = vpack.c.b16 %v1693, %v1691
    %v1750 = vpack.c.b16 %v1696, %v1694
    %v1751 = vpack.c.b16 %v1697, %v1695
    %v1752 = vpack.c.b16 %v1700, %v1698
    %v1753 = vpack.c.b16 %v1701, %v1699
    %v1754 = vpack.c.b16 %v1704, %v1702
    %v1755 = vpack.c.b16 %v1705, %v1703
    %v1756 = vpack.c.b16 %v1708, %v1706
    %v1757 = vpack.c.b16 %v1709, %v1707
    %v1758 = vpack.c.b16 %v1712, %v1710
    %v1759 = vpack.c.b16 %v1713, %v1711
    %v1760 = vpack.c.b16 %v1716, %v1714
    %v1761 = vpack.c.b16 %v1717, %v1715
    %v1762 = vpack.c.b16 %v1720, %v1718
    %v1763 = vpack.c.b16 %v1721, %v1719
    %v1764 = vpack.c.b16 %v1724, %v1722
    %v1765 = vpack.c.b16 %v1725, %v1723
    %v1766 = vpack.c.b16 %v1728, %v1726
    %v1767 = vpack.c.b16 %v1729, %v1727
    %v1768 = vpack.c.b16 %v1732, %v1730
    %v1769 = vpack.c.b16 %v1733, %v1731
    %v1770 = vpack.c.b16 %v1736, %v1734
    %v1771 = vpack.c.b16 %v1737, %v1735
    %v1772 = vpack.c.b16 %v1740, %v1738
    %v1773 = vpack.c.b16 %v1741, %v1739
    %1806 = vmatpush.bf16.msra.mxu0 %v1756
    %1807 = vmatpush.bf16.msra.mxu0 %v1754
    %1808 = vmatpush.bf16.msra.mxu0 %v1752
    %1809 = vmatpush.bf16.msra.mxu0 %v1750
    %1810 = vmatpush.bf16.msra.mxu0 %v1748
    %1811 = vmatpush.bf16.msra.mxu0 %v1746
    %1812 = vmatpush.bf16.msra.mxu0 %v1744
    %1813 = vmatpush.bf16.msra.mxu0 %v1742
    %1814 = vmatmul.bf16.gmra.mxu0 %v1642
    %v1815 = vpop.f32.mrf.mxu0
    %v1816 = vadd.f32 0.0, %v1815
    %v1817 = vpop.f32.mrf.mxu0
    %v1818 = vadd.f32 0.0, %v1817
    %1819 = vdwg.mxu0
    %1820 = vmatpush.bf16.msra.mxu0 %v1772
    %1821 = vmatpush.bf16.msra.mxu0 %v1770
    %1822 = vmatpush.bf16.msra.mxu0 %v1768
    %1823 = vmatpush.bf16.msra.mxu0 %v1766
    %1824 = vmatpush.bf16.msra.mxu0 %v1764
    %1825 = vmatpush.bf16.msra.mxu0 %v1762
    %1826 = vmatpush.bf16.msra.mxu0 %v1760
    %1827 = vmatpush.bf16.msra.mxu0 %v1758
    %1828 = vmatmul.bf16.gmra.mxu0 %v1643
    %v1829 = vpop.f32.mrf.mxu0
    %v1830 = vadd.f32 %v1816, %v1829
    %v1831 = vpop.f32.mrf.mxu0
    %v1832 = vadd.f32 %v1818, %v1831
    %1833 = vdwg.mxu0
    %1834 = vmatpush.bf16.msra.mxu0 %v1757
    %1835 = vmatpush.bf16.msra.mxu0 %v1755
    %1836 = vmatpush.bf16.msra.mxu0 %v1753
    %1837 = vmatpush.bf16.msra.mxu0 %v1751
    %1838 = vmatpush.bf16.msra.mxu0 %v1749
    %1839 = vmatpush.bf16.msra.mxu0 %v1747
    %1840 = vmatpush.bf16.msra.mxu0 %v1745
    %1841 = vmatpush.bf16.msra.mxu0 %v1743
    %1842 = vmatmul.bf16.gmra.mxu0 %v1642
    %v1843 = vpop.f32.mrf.mxu0
    %v1844 = vadd.f32 0.0, %v1843
    %v1845 = vpop.f32.mrf.mxu0
    %v1846 = vadd.f32 0.0, %v1845
    %1847 = vdwg.mxu0
    %1848 = vmatpush.bf16.msra.mxu0 %v1773
    %1849 = vmatpush.bf16.msra.mxu0 %v1771
    %1850 = vmatpush.bf16.msra.mxu0 %v1769
    %1851 = vmatpush.bf16.msra.mxu0 %v1767
    %1852 = vmatpush.bf16.msra.mxu0 %v1765
    %1853 = vmatpush.bf16.msra.mxu0 %v1763
    %1854 = vmatpush.bf16.msra.mxu0 %v1761
    %1855 = vmatpush.bf16.msra.mxu0 %v1759
    %1856 = vmatmul.bf16.gmra.mxu0 %v1643
    %v1857 = vpop.f32.mrf.mxu0
    %v1858 = vadd.f32 %v1844, %v1857
    %v1859 = vpop.f32.mrf.mxu0
    %v1860 = vadd.f32 %v1846, %v1859
    %1861 = vdwg.mxu0
    %v1862 = vadd.f32 %v1571, %v1830
    %v1863 = vadd.f32 %v1599, %v1858
    %v1864 = vadd.f32 %v1573, %v1832
    %v1865 = vadd.f32 %v1601, %v1860
    %s1866 = scalar_lea.vmem [#allocation7], 768
    %v1867 = vld [vmem:[%s1866] sm:$0xff]
    %v1868 = vld [vmem:[%s1866 + $0x8] sm:$0xff]
    %v1869 = vld [vmem:[%s1866 + $0x10] sm:$0xff]
    %v1870 = vld [vmem:[%s1866 + $0x18] sm:$0xff]
    %v1871 = vld [vmem:[%s1866 + $0x20] sm:$0xff]
    %v1872 = vld [vmem:[%s1866 + $0x28] sm:$0xff]
    %v1873 = vld [vmem:[%s1866 + $0x30] sm:$0xff]
    %v1874 = vld [vmem:[%s1866 + $0x38] sm:$0xff]
    %v1875 = vld [vmem:[%s1866 + $0x40] sm:$0xff]
    %v1876 = vld [vmem:[%s1866 + $0x48] sm:$0xff]
    %v1877 = vld [vmem:[%s1866 + $0x50] sm:$0xff]
    %v1878 = vld [vmem:[%s1866 + $0x58] sm:$0xff]
    %v1879 = vld [vmem:[%s1866 + $0x60] sm:$0xff]
    %v1880 = vld [vmem:[%s1866 + $0x68] sm:$0xff]
    %v1881 = vld [vmem:[%s1866 + $0x70] sm:$0xff]
    %v1882 = vld [vmem:[%s1866 + $0x78] sm:$0xff]
    %v1883 = vld [vmem:[%s1866 + $0x80] sm:$0xff]
    %v1884 = vld [vmem:[%s1866 + $0x88] sm:$0xff]
    %v1885 = vld [vmem:[%s1866 + $0x90] sm:$0xff]
    %v1886 = vld [vmem:[%s1866 + $0x98] sm:$0xff]
    %v1887 = vld [vmem:[%s1866 + $0xa0] sm:$0xff]
    %v1888 = vld [vmem:[%s1866 + $0xa8] sm:$0xff]
    %v1889 = vld [vmem:[%s1866 + $0xb0] sm:$0xff]
    %v1890 = vld [vmem:[%s1866 + $0xb8] sm:$0xff]
    %v1891 = vld [vmem:[%s1866 + $0xc0] sm:$0xff]
    %v1892 = vld [vmem:[%s1866 + $0xc8] sm:$0xff]
    %v1893 = vld [vmem:[%s1866 + $0xd0] sm:$0xff]
    %v1894 = vld [vmem:[%s1866 + $0xd8] sm:$0xff]
    %v1895 = vld [vmem:[%s1866 + $0xe0] sm:$0xff]
    %v1896 = vld [vmem:[%s1866 + $0xe8] sm:$0xff]
    %v1897 = vld [vmem:[%s1866 + $0xf0] sm:$0xff]
    %v1898 = vld [vmem:[%s1866 + $0xf8] sm:$0xff]
    %v1901 = vunpack.c.l.b16 %v1084
    %v1902 = vunpack.c.h.b16 %v1084
    %v1903 = vunpack.c.l.b16 %v1085
    %v1904 = vunpack.c.h.b16 %v1085
    %v1905 = vpack.c.b16 %v1903, %v1901
    %v1906 = vpack.c.b16 %v1904, %v1902
    %v1941 = vunpack.c.l.b16 %v1867
    %v1942 = vunpack.c.h.b16 %v1867
    %v1943 = vunpack.c.l.b16 %v1868
    %v1944 = vunpack.c.h.b16 %v1868
    %v1945 = vunpack.c.l.b16 %v1869
    %v1946 = vunpack.c.h.b16 %v1869
    %v1947 = vunpack.c.l.b16 %v1870
    %v1948 = vunpack.c.h.b16 %v1870
    %v1949 = vunpack.c.l.b16 %v1871
    %v1950 = vunpack.c.h.b16 %v1871
    %v1951 = vunpack.c.l.b16 %v1872
    %v1952 = vunpack.c.h.b16 %v1872
    %v1953 = vunpack.c.l.b16 %v1873
    %v1954 = vunpack.c.h.b16 %v1873
    %v1955 = vunpack.c.l.b16 %v1874
    %v1956 = vunpack.c.h.b16 %v1874
    %v1957 = vunpack.c.l.b16 %v1875
    %v1958 = vunpack.c.h.b16 %v1875
    %v1959 = vunpack.c.l.b16 %v1876
    %v1960 = vunpack.c.h.b16 %v1876
    %v1961 = vunpack.c.l.b16 %v1877
    %v1962 = vunpack.c.h.b16 %v1877
    %v1963 = vunpack.c.l.b16 %v1878
    %v1964 = vunpack.c.h.b16 %v1878
    %v1965 = vunpack.c.l.b16 %v1879
    %v1966 = vunpack.c.h.b16 %v1879
    %v1967 = vunpack.c.l.b16 %v1880
    %v1968 = vunpack.c.h.b16 %v1880
    %v1969 = vunpack.c.l.b16 %v1881
    %v1970 = vunpack.c.h.b16 %v1881
    %v1971 = vunpack.c.l.b16 %v1882
    %v1972 = vunpack.c.h.b16 %v1882
    %v1973 = vunpack.c.l.b16 %v1883
    %v1974 = vunpack.c.h.b16 %v1883
    %v1975 = vunpack.c.l.b16 %v1884
    %v1976 = vunpack.c.h.b16 %v1884
    %v1977 = vunpack.c.l.b16 %v1885
    %v1978 = vunpack.c.h.b16 %v1885
    %v1979 = vunpack.c.l.b16 %v1886
    %v1980 = vunpack.c.h.b16 %v1886
    %v1981 = vunpack.c.l.b16 %v1887
    %v1982 = vunpack.c.h.b16 %v1887
    %v1983 = vunpack.c.l.b16 %v1888
    %v1984 = vunpack.c.h.b16 %v1888
    %v1985 = vunpack.c.l.b16 %v1889
    %v1986 = vunpack.c.h.b16 %v1889
    %v1987 = vunpack.c.l.b16 %v1890
    %v1988 = vunpack.c.h.b16 %v1890
    %v1989 = vunpack.c.l.b16 %v1891
    %v1990 = vunpack.c.h.b16 %v1891
    %v1991 = vunpack.c.l.b16 %v1892
    %v1992 = vunpack.c.h.b16 %v1892
    %v1993 = vunpack.c.l.b16 %v1893
    %v1994 = vunpack.c.h.b16 %v1893
    %v1995 = vunpack.c.l.b16 %v1894
    %v1996 = vunpack.c.h.b16 %v1894
    %v1997 = vunpack.c.l.b16 %v1895
    %v1998 = vunpack.c.h.b16 %v1895
    %v1999 = vunpack.c.l.b16 %v1896
    %v2000 = vunpack.c.h.b16 %v1896
    %v2001 = vunpack.c.l.b16 %v1897
    %v2002 = vunpack.c.h.b16 %v1897
    %v2003 = vunpack.c.l.b16 %v1898
    %v2004 = vunpack.c.h.b16 %v1898
    %v2005 = vpack.c.b16 %v1943, %v1941
    %v2006 = vpack.c.b16 %v1944, %v1942
    %v2007 = vpack.c.b16 %v1947, %v1945
    %v2008 = vpack.c.b16 %v1948, %v1946
    %v2009 = vpack.c.b16 %v1951, %v1949
    %v2010 = vpack.c.b16 %v1952, %v1950
    %v2011 = vpack.c.b16 %v1955, %v1953
    %v2012 = vpack.c.b16 %v1956, %v1954
    %v2013 = vpack.c.b16 %v1959, %v1957
    %v2014 = vpack.c.b16 %v1960, %v1958
    %v2015 = vpack.c.b16 %v1963, %v1961
    %v2016 = vpack.c.b16 %v1964, %v1962
    %v2017 = vpack.c.b16 %v1967, %v1965
    %v2018 = vpack.c.b16 %v1968, %v1966
    %v2019 = vpack.c.b16 %v1971, %v1969
    %v2020 = vpack.c.b16 %v1972, %v1970
    %v2021 = vpack.c.b16 %v1975, %v1973
    %v2022 = vpack.c.b16 %v1976, %v1974
    %v2023 = vpack.c.b16 %v1979, %v1977
    %v2024 = vpack.c.b16 %v1980, %v1978
    %v2025 = vpack.c.b16 %v1983, %v1981
    %v2026 = vpack.c.b16 %v1984, %v1982
    %v2027 = vpack.c.b16 %v1987, %v1985
    %v2028 = vpack.c.b16 %v1988, %v1986
    %v2029 = vpack.c.b16 %v1991, %v1989
    %v2030 = vpack.c.b16 %v1992, %v1990
    %v2031 = vpack.c.b16 %v1995, %v1993
    %v2032 = vpack.c.b16 %v1996, %v1994
    %v2033 = vpack.c.b16 %v1999, %v1997
    %v2034 = vpack.c.b16 %v2000, %v1998
    %v2035 = vpack.c.b16 %v2003, %v2001
    %v2036 = vpack.c.b16 %v2004, %v2002
    %2069 = vmatpush.bf16.msra.mxu0 %v2019
    %2070 = vmatpush.bf16.msra.mxu0 %v2017
    %2071 = vmatpush.bf16.msra.mxu0 %v2015
    %2072 = vmatpush.bf16.msra.mxu0 %v2013
    %2073 = vmatpush.bf16.msra.mxu0 %v2011
    %2074 = vmatpush.bf16.msra.mxu0 %v2009
    %2075 = vmatpush.bf16.msra.mxu0 %v2007
    %2076 = vmatpush.bf16.msra.mxu0 %v2005
    %2077 = vmatmul.bf16.gmra.mxu0 %v1905
    %v2078 = vpop.f32.mrf.mxu0
    %v2079 = vadd.f32 0.0, %v2078
    %v2080 = vpop.f32.mrf.mxu0
    %v2081 = vadd.f32 0.0, %v2080
    %2082 = vdwg.mxu0
    %2083 = vmatpush.bf16.msra.mxu0 %v2035
    %2084 = vmatpush.bf16.msra.mxu0 %v2033
    %2085 = vmatpush.bf16.msra.mxu0 %v2031
    %2086 = vmatpush.bf16.msra.mxu0 %v2029
    %2087 = vmatpush.bf16.msra.mxu0 %v2027
    %2088 = vmatpush.bf16.msra.mxu0 %v2025
    %2089 = vmatpush.bf16.msra.mxu0 %v2023
    %2090 = vmatpush.bf16.msra.mxu0 %v2021
    %2091 = vmatmul.bf16.gmra.mxu0 %v1906
    %v2092 = vpop.f32.mrf.mxu0
    %v2093 = vadd.f32 %v2079, %v2092
    %v2094 = vpop.f32.mrf.mxu0
    %v2095 = vadd.f32 %v2081, %v2094
    %2096 = vdwg.mxu0
    %2097 = vmatpush.bf16.msra.mxu0 %v2020
    %2098 = vmatpush.bf16.msra.mxu0 %v2018
    %2099 = vmatpush.bf16.msra.mxu0 %v2016
    %2100 = vmatpush.bf16.msra.mxu0 %v2014
    %2101 = vmatpush.bf16.msra.mxu0 %v2012
    %2102 = vmatpush.bf16.msra.mxu0 %v2010
    %2103 = vmatpush.bf16.msra.mxu0 %v2008
    %2104 = vmatpush.bf16.msra.mxu0 %v2006
    %2105 = vmatmul.bf16.gmra.mxu0 %v1905
    %v2106 = vpop.f32.mrf.mxu0
    %v2107 = vadd.f32 0.0, %v2106
    %v2108 = vpop.f32.mrf.mxu0
    %v2109 = vadd.f32 0.0, %v2108
    %2110 = vdwg.mxu0
    %2111 = vmatpush.bf16.msra.mxu0 %v2036
    %2112 = vmatpush.bf16.msra.mxu0 %v2034
    %2113 = vmatpush.bf16.msra.mxu0 %v2032
    %2114 = vmatpush.bf16.msra.mxu0 %v2030
    %2115 = vmatpush.bf16.msra.mxu0 %v2028
    %2116 = vmatpush.bf16.msra.mxu0 %v2026
    %2117 = vmatpush.bf16.msra.mxu0 %v2024
    %2118 = vmatpush.bf16.msra.mxu0 %v2022
    %2119 = vmatmul.bf16.gmra.mxu0 %v1906
    %v2120 = vpop.f32.mrf.mxu0
    %v2121 = vadd.f32 %v2107, %v2120
    %v2122 = vpop.f32.mrf.mxu0
    %v2123 = vadd.f32 %v2109, %v2122
    %2124 = vdwg.mxu0
    %v2125 = vadd.f32 %v1862, %v2093
    %v2126 = vadd.f32 %v1863, %v2121
    %v2127 = vadd.f32 %v1864, %v2095
    %v2128 = vadd.f32 %v1865, %v2123
    %v2129 = vld [vmem:[%s9] sm:$0x3]
    %v2131 = vperm.slane %v2129, 0
    %v2132 = vperm.slane %v2129, 1
    %v2135 = vmul.f32 %v2125, %v2131
    %v2136 = vmul.f32 %v2126, %v2132
    %v2137 = vmul.f32 %v2127, %v2131
    %v2138 = vmul.f32 %v2128, %v2132
    %v2139 = vld [vmem:[%s10] sm:$0x3]
    %v2141 = vperm.slane %v2139, 0
    %v2142 = vperm.slane %v2139, 1
    %v2145 = vadd.f32 %v2135, %v2141
    %v2146 = vadd.f32 %v2136, %v2142
    %v2147 = vadd.f32 %v2137, %v2141
    %v2148 = vadd.f32 %v2138, %v2142
    %v2149 = vmax.f32 %v2145, 0.0
    %v2150 = vmax.f32 %v2146, 0.0
    %v2151 = vmax.f32 %v2147, 0.0
    %v2152 = vmax.f32 %v2148, 0.0
    %v2153 = vld [vmem:[%s11] sm:$0xf]
    %v2154 = vld [vmem:[%s11 + $0x4] sm:$0xf]
    %v2155 = vld [vmem:[%s11 + $0x8] sm:$0xf]
    %v2156 = vld [vmem:[%s11 + $0xc] sm:$0xf]
    %v2157 = vpack.c.bf16 %v2151, %v2149
    %v2158 = vpack.c.bf16 %v2152, %v2150
    %v2163 = vunpack.c.l.b16 %v2153
    %v2164 = vunpack.c.l.b16 %v2154
    %v2165 = vunpack.c.l.b16 %v2155
    %v2166 = vunpack.c.l.b16 %v2156
    %v2167 = vpack.c.b16 %v2164, %v2163
    %v2168 = vpack.c.b16 %v2166, %v2165
    %vm2169 = vcmask 97280
    %v2171 = vsel %vm2169, %v2167, 0
    %v2174 = vsel %vm2169, %v2168, 0
    %vm2176 = vcmask 1045504
    %v2178 = vsel %vm2176, %v2157, 0
    %v2181 = vsel %vm2176, %v2158, 0
    %2183 = vmatpush.bf16.msra.mxu0 0
    %2184 = vmatpush.bf16.msra.mxu0 0
    %2185 = vmatpush.bf16.msra.mxu0 0
    %2186 = vmatpush.bf16.msra.mxu0 0
    %2187 = vmatpush.bf16.msra.mxu0 0
    %2188 = vmatpush.bf16.msra.mxu0 0
    %2189 = vmatpush.bf16.msra.mxu0 0
    %2190 = vmatpush.bf16.msra.mxu0 %v2178
    %2191 = vmatmul.bf16.gmra.mxu0 %v2171
    %v2192 = vpop.f32.mrf.mxu0
    %v2193 = vadd.f32 0.0, %v2192
    %v2194 = vpop.f32.mrf.mxu0
    %v2195 = vadd.f32 0.0, %v2194
    %2196 = vmatmul.bf16.gmra.mxu0 %v2174
    %v2197 = vpop.f32.mrf.mxu0
    %v2198 = vadd.f32 0.0, %v2197
    %v2199 = vpop.f32.mrf.mxu0
    %v2200 = vadd.f32 0.0, %v2199
    %2201 = vdwg.mxu0
    %2202 = vmatpush.bf16.msra.mxu0 0
    %2203 = vmatpush.bf16.msra.mxu0 0
    %2204 = vmatpush.bf16.msra.mxu0 0
    %2205 = vmatpush.bf16.msra.mxu0 0
    %2206 = vmatpush.bf16.msra.mxu0 0
    %2207 = vmatpush.bf16.msra.mxu0 0
    %2208 = vmatpush.bf16.msra.mxu0 0
    %2209 = vmatpush.bf16.msra.mxu0 %v2181
    %2210 = vmatmul.bf16.gmra.mxu0 %v2171
    %v2211 = vpop.f32.mrf.mxu0
    %v2212 = vadd.f32 0.0, %v2211
    %v2213 = vpop.f32.mrf.mxu0
    %v2214 = vadd.f32 0.0, %v2213
    %2215 = vmatmul.bf16.gmra.mxu0 %v2174
    %v2216 = vpop.f32.mrf.mxu0
    %v2217 = vadd.f32 0.0, %v2216
    %v2218 = vpop.f32.mrf.mxu0
    %v2219 = vadd.f32 0.0, %v2218
    %2220 = vdwg.mxu0
    %v2221 = vpack.c.bf16 %v2212, %v2193
    %v2222 = vpack.c.bf16 %v2214, %v2195
    %v2223 = vpack.c.bf16 %v2217, %v2198
    %v2224 = vpack.c.bf16 %v2219, %v2200
    %v2225 = vld [vmem:[#allocation8] sm:$0xff]
    %v2226 = vld [vmem:[#allocation8 + $0x8] sm:$0xff]
    %v2227 = vld [vmem:[#allocation8 + $0x10] sm:$0xff]
    %v2228 = vld [vmem:[#allocation8 + $0x18] sm:$0xff]
    %v2229 = vld [vmem:[#allocation8 + $0x20] sm:$0xff]
    %v2230 = vld [vmem:[#allocation8 + $0x28] sm:$0xff]
    %v2231 = vld [vmem:[#allocation8 + $0x30] sm:$0xff]
    %v2232 = vld [vmem:[#allocation8 + $0x38] sm:$0xff]
    %v2233 = vld [vmem:[#allocation8 + $0x40] sm:$0xff]
    %v2234 = vld [vmem:[#allocation8 + $0x48] sm:$0xff]
    %v2235 = vld [vmem:[#allocation8 + $0x50] sm:$0xff]
    %v2236 = vld [vmem:[#allocation8 + $0x58] sm:$0xff]
    %v2237 = vld [vmem:[#allocation8 + $0x60] sm:$0xff]
    %v2238 = vld [vmem:[#allocation8 + $0x68] sm:$0xff]
    %v2239 = vld [vmem:[#allocation8 + $0x70] sm:$0xff]
    %v2240 = vld [vmem:[#allocation8 + $0x78] sm:$0xff]
    %v2241 = vld [vmem:[#allocation8 + $0x80] sm:$0xff]
    %v2242 = vld [vmem:[#allocation8 + $0x88] sm:$0xff]
    %v2243 = vld [vmem:[#allocation8 + $0x90] sm:$0xff]
    %v2244 = vld [vmem:[#allocation8 + $0x98] sm:$0xff]
    %v2245 = vld [vmem:[#allocation8 + $0xa0] sm:$0xff]
    %v2246 = vld [vmem:[#allocation8 + $0xa8] sm:$0xff]
    %v2247 = vld [vmem:[#allocation8 + $0xb0] sm:$0xff]
    %v2248 = vld [vmem:[#allocation8 + $0xb8] sm:$0xff]
    %v2249 = vld [vmem:[#allocation8 + $0xc0] sm:$0xff]
    %v2250 = vld [vmem:[#allocation8 + $0xc8] sm:$0xff]
    %v2251 = vld [vmem:[#allocation8 + $0xd0] sm:$0xff]
    %v2252 = vld [vmem:[#allocation8 + $0xd8] sm:$0xff]
    %v2253 = vld [vmem:[#allocation8 + $0xe0] sm:$0xff]
    %v2254 = vld [vmem:[#allocation8 + $0xe8] sm:$0xff]
    %v2255 = vld [vmem:[#allocation8 + $0xf0] sm:$0xff]
    %v2256 = vld [vmem:[#allocation8 + $0xf8] sm:$0xff]
    %s2257 = scalar_lea.vmem [#allocation8], 256
    %v2258 = vld [vmem:[%s2257] sm:$0xff]
    %v2259 = vld [vmem:[%s2257 + $0x8] sm:$0xff]
    %v2260 = vld [vmem:[%s2257 + $0x10] sm:$0xff]
    %v2261 = vld [vmem:[%s2257 + $0x18] sm:$0xff]
    %v2262 = vld [vmem:[%s2257 + $0x20] sm:$0xff]
    %v2263 = vld [vmem:[%s2257 + $0x28] sm:$0xff]
    %v2264 = vld [vmem:[%s2257 + $0x30] sm:$0xff]
    %v2265 = vld [vmem:[%s2257 + $0x38] sm:$0xff]
    %v2266 = vld [vmem:[%s2257 + $0x40] sm:$0xff]
    %v2267 = vld [vmem:[%s2257 + $0x48] sm:$0xff]
    %v2268 = vld [vmem:[%s2257 + $0x50] sm:$0xff]
    %v2269 = vld [vmem:[%s2257 + $0x58] sm:$0xff]
    %v2270 = vld [vmem:[%s2257 + $0x60] sm:$0xff]
    %v2271 = vld [vmem:[%s2257 + $0x68] sm:$0xff]
    %v2272 = vld [vmem:[%s2257 + $0x70] sm:$0xff]
    %v2273 = vld [vmem:[%s2257 + $0x78] sm:$0xff]
    %v2274 = vld [vmem:[%s2257 + $0x80] sm:$0xff]
    %v2275 = vld [vmem:[%s2257 + $0x88] sm:$0xff]
    %v2276 = vld [vmem:[%s2257 + $0x90] sm:$0xff]
    %v2277 = vld [vmem:[%s2257 + $0x98] sm:$0xff]
    %v2278 = vld [vmem:[%s2257 + $0xa0] sm:$0xff]
    %v2279 = vld [vmem:[%s2257 + $0xa8] sm:$0xff]
    %v2280 = vld [vmem:[%s2257 + $0xb0] sm:$0xff]
    %v2281 = vld [vmem:[%s2257 + $0xb8] sm:$0xff]
    %v2282 = vld [vmem:[%s2257 + $0xc0] sm:$0xff]
    %v2283 = vld [vmem:[%s2257 + $0xc8] sm:$0xff]
    %v2284 = vld [vmem:[%s2257 + $0xd0] sm:$0xff]
    %v2285 = vld [vmem:[%s2257 + $0xd8] sm:$0xff]
    %v2286 = vld [vmem:[%s2257 + $0xe0] sm:$0xff]
    %v2287 = vld [vmem:[%s2257 + $0xe8] sm:$0xff]
    %v2288 = vld [vmem:[%s2257 + $0xf0] sm:$0xff]
    %v2289 = vld [vmem:[%s2257 + $0xf8] sm:$0xff]
    %v2291 = vunpack.c.l.b16 %v2222
    %v2292 = vunpack.c.h.b16 %v2222
    %v2293 = vpack.c.b16 %v2291, %v2291
    %v2294 = vpack.c.b16 %v2292, %v2292
    %v2329 = vunpack.c.l.b16 %v2258
    %v2330 = vunpack.c.h.b16 %v2258
    %v2331 = vunpack.c.l.b16 %v2259
    %v2332 = vunpack.c.h.b16 %v2259
    %v2333 = vunpack.c.l.b16 %v2260
    %v2334 = vunpack.c.h.b16 %v2260
    %v2335 = vunpack.c.l.b16 %v2261
    %v2336 = vunpack.c.h.b16 %v2261
    %v2337 = vunpack.c.l.b16 %v2262
    %v2338 = vunpack.c.h.b16 %v2262
    %v2339 = vunpack.c.l.b16 %v2263
    %v2340 = vunpack.c.h.b16 %v2263
    %v2341 = vunpack.c.l.b16 %v2264
    %v2342 = vunpack.c.h.b16 %v2264
    %v2343 = vunpack.c.l.b16 %v2265
    %v2344 = vunpack.c.h.b16 %v2265
    %v2345 = vunpack.c.l.b16 %v2266
    %v2346 = vunpack.c.h.b16 %v2266
    %v2347 = vunpack.c.l.b16 %v2267
    %v2348 = vunpack.c.h.b16 %v2267
    %v2349 = vunpack.c.l.b16 %v2268
    %v2350 = vunpack.c.h.b16 %v2268
    %v2351 = vunpack.c.l.b16 %v2269
    %v2352 = vunpack.c.h.b16 %v2269
    %v2353 = vunpack.c.l.b16 %v2270
    %v2354 = vunpack.c.h.b16 %v2270
    %v2355 = vunpack.c.l.b16 %v2271
    %v2356 = vunpack.c.h.b16 %v2271
    %v2357 = vunpack.c.l.b16 %v2272
    %v2358 = vunpack.c.h.b16 %v2272
    %v2359 = vunpack.c.l.b16 %v2273
    %v2360 = vunpack.c.h.b16 %v2273
    %v2361 = vunpack.c.l.b16 %v2274
    %v2362 = vunpack.c.h.b16 %v2274
    %v2363 = vunpack.c.l.b16 %v2275
    %v2364 = vunpack.c.h.b16 %v2275
    %v2365 = vunpack.c.l.b16 %v2276
    %v2366 = vunpack.c.h.b16 %v2276
    %v2367 = vunpack.c.l.b16 %v2277
    %v2368 = vunpack.c.h.b16 %v2277
    %v2369 = vunpack.c.l.b16 %v2278
    %v2370 = vunpack.c.h.b16 %v2278
    %v2371 = vunpack.c.l.b16 %v2279
    %v2372 = vunpack.c.h.b16 %v2279
    %v2373 = vunpack.c.l.b16 %v2280
    %v2374 = vunpack.c.h.b16 %v2280
    %v2375 = vunpack.c.l.b16 %v2281
    %v2376 = vunpack.c.h.b16 %v2281
    %v2377 = vunpack.c.l.b16 %v2282
    %v2378 = vunpack.c.h.b16 %v2282
    %v2379 = vunpack.c.l.b16 %v2283
    %v2380 = vunpack.c.h.b16 %v2283
    %v2381 = vunpack.c.l.b16 %v2284
    %v2382 = vunpack.c.h.b16 %v2284
    %v2383 = vunpack.c.l.b16 %v2285
    %v2384 = vunpack.c.h.b16 %v2285
    %v2385 = vunpack.c.l.b16 %v2286
    %v2386 = vunpack.c.h.b16 %v2286
    %v2387 = vunpack.c.l.b16 %v2287
    %v2388 = vunpack.c.h.b16 %v2287
    %v2389 = vunpack.c.l.b16 %v2288
    %v2390 = vunpack.c.h.b16 %v2288
    %v2391 = vunpack.c.l.b16 %v2289
    %v2392 = vunpack.c.h.b16 %v2289
    %v2393 = vpack.c.b16 %v2331, %v2329
    %v2394 = vpack.c.b16 %v2332, %v2330
    %v2395 = vpack.c.b16 %v2335, %v2333
    %v2396 = vpack.c.b16 %v2336, %v2334
    %v2397 = vpack.c.b16 %v2339, %v2337
    %v2398 = vpack.c.b16 %v2340, %v2338
    %v2399 = vpack.c.b16 %v2343, %v2341
    %v2400 = vpack.c.b16 %v2344, %v2342
    %v2401 = vpack.c.b16 %v2347, %v2345
    %v2402 = vpack.c.b16 %v2348, %v2346
    %v2403 = vpack.c.b16 %v2351, %v2349
    %v2404 = vpack.c.b16 %v2352, %v2350
    %v2405 = vpack.c.b16 %v2355, %v2353
    %v2406 = vpack.c.b16 %v2356, %v2354
    %v2407 = vpack.c.b16 %v2359, %v2357
    %v2408 = vpack.c.b16 %v2360, %v2358
    %v2409 = vpack.c.b16 %v2363, %v2361
    %v2410 = vpack.c.b16 %v2364, %v2362
    %v2411 = vpack.c.b16 %v2367, %v2365
    %v2412 = vpack.c.b16 %v2368, %v2366
    %v2413 = vpack.c.b16 %v2371, %v2369
    %v2414 = vpack.c.b16 %v2372, %v2370
    %v2415 = vpack.c.b16 %v2375, %v2373
    %v2416 = vpack.c.b16 %v2376, %v2374
    %v2417 = vpack.c.b16 %v2379, %v2377
    %v2418 = vpack.c.b16 %v2380, %v2378
    %v2419 = vpack.c.b16 %v2383, %v2381
    %v2420 = vpack.c.b16 %v2384, %v2382
    %v2421 = vpack.c.b16 %v2387, %v2385
    %v2422 = vpack.c.b16 %v2388, %v2386
    %v2423 = vpack.c.b16 %v2391, %v2389
    %v2424 = vpack.c.b16 %v2392, %v2390
    %2457 = vmatpush.bf16.msra.mxu0 %v2407
    %2458 = vmatpush.bf16.msra.mxu0 %v2405
    %2459 = vmatpush.bf16.msra.mxu0 %v2403
    %2460 = vmatpush.bf16.msra.mxu0 %v2401
    %2461 = vmatpush.bf16.msra.mxu0 %v2399
    %2462 = vmatpush.bf16.msra.mxu0 %v2397
    %2463 = vmatpush.bf16.msra.mxu0 %v2395
    %2464 = vmatpush.bf16.msra.mxu0 %v2393
    %2465 = vmatmul.bf16.gmra.mxu0 %v2293
    %v2466 = vpop.f32.mrf.mxu0
    %v2467 = vadd.f32 0.0, %v2466
    %v2468 = vpop.f32.mrf.mxu0
    %2469 = vdwg.mxu0
    %2470 = vmatpush.bf16.msra.mxu0 %v2423
    %2471 = vmatpush.bf16.msra.mxu0 %v2421
    %2472 = vmatpush.bf16.msra.mxu0 %v2419
    %2473 = vmatpush.bf16.msra.mxu0 %v2417
    %2474 = vmatpush.bf16.msra.mxu0 %v2415
    %2475 = vmatpush.bf16.msra.mxu0 %v2413
    %2476 = vmatpush.bf16.msra.mxu0 %v2411
    %2477 = vmatpush.bf16.msra.mxu0 %v2409
    %2478 = vmatmul.bf16.gmra.mxu0 %v2294
    %v2479 = vpop.f32.mrf.mxu0
    %v2480 = vadd.f32 %v2467, %v2479
    %v2481 = vpop.f32.mrf.mxu0
    %2482 = vdwg.mxu0
    %2483 = vmatpush.bf16.msra.mxu0 %v2408
    %2484 = vmatpush.bf16.msra.mxu0 %v2406
    %2485 = vmatpush.bf16.msra.mxu0 %v2404
    %2486 = vmatpush.bf16.msra.mxu0 %v2402
    %2487 = vmatpush.bf16.msra.mxu0 %v2400
    %2488 = vmatpush.bf16.msra.mxu0 %v2398
    %2489 = vmatpush.bf16.msra.mxu0 %v2396
    %2490 = vmatpush.bf16.msra.mxu0 %v2394
    %2491 = vmatmul.bf16.gmra.mxu0 %v2293
    %v2492 = vpop.f32.mrf.mxu0
    %v2493 = vadd.f32 0.0, %v2492
    %v2494 = vpop.f32.mrf.mxu0
    %2495 = vdwg.mxu0
    %2496 = vmatpush.bf16.msra.mxu0 %v2424
    %2497 = vmatpush.bf16.msra.mxu0 %v2422
    %2498 = vmatpush.bf16.msra.mxu0 %v2420
    %2499 = vmatpush.bf16.msra.mxu0 %v2418
    %2500 = vmatpush.bf16.msra.mxu0 %v2416
    %2501 = vmatpush.bf16.msra.mxu0 %v2414
    %2502 = vmatpush.bf16.msra.mxu0 %v2412
    %2503 = vmatpush.bf16.msra.mxu0 %v2410
    %2504 = vmatmul.bf16.gmra.mxu0 %v2294
    %v2505 = vpop.f32.mrf.mxu0
    %v2506 = vadd.f32 %v2493, %v2505
    %v2507 = vpop.f32.mrf.mxu0
    %2508 = vdwg.mxu0
    %v2510 = vunpack.c.l.b16 %v2221
    %v2511 = vunpack.c.h.b16 %v2221
    %v2512 = vpack.c.b16 %v2510, %v2510
    %v2513 = vpack.c.b16 %v2511, %v2511
    %v2548 = vunpack.c.l.b16 %v2225
    %v2549 = vunpack.c.h.b16 %v2225
    %v2550 = vunpack.c.l.b16 %v2226
    %v2551 = vunpack.c.h.b16 %v2226
    %v2552 = vunpack.c.l.b16 %v2227
    %v2553 = vunpack.c.h.b16 %v2227
    %v2554 = vunpack.c.l.b16 %v2228
    %v2555 = vunpack.c.h.b16 %v2228
    %v2556 = vunpack.c.l.b16 %v2229
    %v2557 = vunpack.c.h.b16 %v2229
    %v2558 = vunpack.c.l.b16 %v2230
    %v2559 = vunpack.c.h.b16 %v2230
    %v2560 = vunpack.c.l.b16 %v2231
    %v2561 = vunpack.c.h.b16 %v2231
    %v2562 = vunpack.c.l.b16 %v2232
    %v2563 = vunpack.c.h.b16 %v2232
    %v2564 = vunpack.c.l.b16 %v2233
    %v2565 = vunpack.c.h.b16 %v2233
    %v2566 = vunpack.c.l.b16 %v2234
    %v2567 = vunpack.c.h.b16 %v2234
    %v2568 = vunpack.c.l.b16 %v2235
    %v2569 = vunpack.c.h.b16 %v2235
    %v2570 = vunpack.c.l.b16 %v2236
    %v2571 = vunpack.c.h.b16 %v2236
    %v2572 = vunpack.c.l.b16 %v2237
    %v2573 = vunpack.c.h.b16 %v2237
    %v2574 = vunpack.c.l.b16 %v2238
    %v2575 = vunpack.c.h.b16 %v2238
    %v2576 = vunpack.c.l.b16 %v2239
    %v2577 = vunpack.c.h.b16 %v2239
    %v2578 = vunpack.c.l.b16 %v2240
    %v2579 = vunpack.c.h.b16 %v2240
    %v2580 = vunpack.c.l.b16 %v2241
    %v2581 = vunpack.c.h.b16 %v2241
    %v2582 = vunpack.c.l.b16 %v2242
    %v2583 = vunpack.c.h.b16 %v2242
    %v2584 = vunpack.c.l.b16 %v2243
    %v2585 = vunpack.c.h.b16 %v2243
    %v2586 = vunpack.c.l.b16 %v2244
    %v2587 = vunpack.c.h.b16 %v2244
    %v2588 = vunpack.c.l.b16 %v2245
    %v2589 = vunpack.c.h.b16 %v2245
    %v2590 = vunpack.c.l.b16 %v2246
    %v2591 = vunpack.c.h.b16 %v2246
    %v2592 = vunpack.c.l.b16 %v2247
    %v2593 = vunpack.c.h.b16 %v2247
    %v2594 = vunpack.c.l.b16 %v2248
    %v2595 = vunpack.c.h.b16 %v2248
    %v2596 = vunpack.c.l.b16 %v2249
    %v2597 = vunpack.c.h.b16 %v2249
    %v2598 = vunpack.c.l.b16 %v2250
    %v2599 = vunpack.c.h.b16 %v2250
    %v2600 = vunpack.c.l.b16 %v2251
    %v2601 = vunpack.c.h.b16 %v2251
    %v2602 = vunpack.c.l.b16 %v2252
    %v2603 = vunpack.c.h.b16 %v2252
    %v2604 = vunpack.c.l.b16 %v2253
    %v2605 = vunpack.c.h.b16 %v2253
    %v2606 = vunpack.c.l.b16 %v2254
    %v2607 = vunpack.c.h.b16 %v2254
    %v2608 = vunpack.c.l.b16 %v2255
    %v2609 = vunpack.c.h.b16 %v2255
    %v2610 = vunpack.c.l.b16 %v2256
    %v2611 = vunpack.c.h.b16 %v2256
    %v2612 = vpack.c.b16 %v2550, %v2548
    %v2613 = vpack.c.b16 %v2551, %v2549
    %v2614 = vpack.c.b16 %v2554, %v2552
    %v2615 = vpack.c.b16 %v2555, %v2553
    %v2616 = vpack.c.b16 %v2558, %v2556
    %v2617 = vpack.c.b16 %v2559, %v2557
    %v2618 = vpack.c.b16 %v2562, %v2560
    %v2619 = vpack.c.b16 %v2563, %v2561
    %v2620 = vpack.c.b16 %v2566, %v2564
    %v2621 = vpack.c.b16 %v2567, %v2565
    %v2622 = vpack.c.b16 %v2570, %v2568
    %v2623 = vpack.c.b16 %v2571, %v2569
    %v2624 = vpack.c.b16 %v2574, %v2572
    %v2625 = vpack.c.b16 %v2575, %v2573
    %v2626 = vpack.c.b16 %v2578, %v2576
    %v2627 = vpack.c.b16 %v2579, %v2577
    %v2628 = vpack.c.b16 %v2582, %v2580
    %v2629 = vpack.c.b16 %v2583, %v2581
    %v2630 = vpack.c.b16 %v2586, %v2584
    %v2631 = vpack.c.b16 %v2587, %v2585
    %v2632 = vpack.c.b16 %v2590, %v2588
    %v2633 = vpack.c.b16 %v2591, %v2589
    %v2634 = vpack.c.b16 %v2594, %v2592
    %v2635 = vpack.c.b16 %v2595, %v2593
    %v2636 = vpack.c.b16 %v2598, %v2596
    %v2637 = vpack.c.b16 %v2599, %v2597
    %v2638 = vpack.c.b16 %v2602, %v2600
    %v2639 = vpack.c.b16 %v2603, %v2601
    %v2640 = vpack.c.b16 %v2606, %v2604
    %v2641 = vpack.c.b16 %v2607, %v2605
    %v2642 = vpack.c.b16 %v2610, %v2608
    %v2643 = vpack.c.b16 %v2611, %v2609
    %2676 = vmatpush.bf16.msra.mxu0 %v2626
    %2677 = vmatpush.bf16.msra.mxu0 %v2624
    %2678 = vmatpush.bf16.msra.mxu0 %v2622
    %2679 = vmatpush.bf16.msra.mxu0 %v2620
    %2680 = vmatpush.bf16.msra.mxu0 %v2618
    %2681 = vmatpush.bf16.msra.mxu0 %v2616
    %2682 = vmatpush.bf16.msra.mxu0 %v2614
    %2683 = vmatpush.bf16.msra.mxu0 %v2612
    %2684 = vmatmul.bf16.gmra.mxu0 %v2512
    %v2685 = vpop.f32.mrf.mxu0
    %v2686 = vadd.f32 %v2480, %v2685
    %v2687 = vpop.f32.mrf.mxu0
    %2688 = vdwg.mxu0
    %2689 = vmatpush.bf16.msra.mxu0 %v2642
    %2690 = vmatpush.bf16.msra.mxu0 %v2640
    %2691 = vmatpush.bf16.msra.mxu0 %v2638
    %2692 = vmatpush.bf16.msra.mxu0 %v2636
    %2693 = vmatpush.bf16.msra.mxu0 %v2634
    %2694 = vmatpush.bf16.msra.mxu0 %v2632
    %2695 = vmatpush.bf16.msra.mxu0 %v2630
    %2696 = vmatpush.bf16.msra.mxu0 %v2628
    %2697 = vmatmul.bf16.gmra.mxu0 %v2513
    %v2698 = vpop.f32.mrf.mxu0
    %v2699 = vadd.f32 %v2686, %v2698
    %v2700 = vpop.f32.mrf.mxu0
    %2701 = vdwg.mxu0
    %2702 = vmatpush.bf16.msra.mxu0 %v2627
    %2703 = vmatpush.bf16.msra.mxu0 %v2625
    %2704 = vmatpush.bf16.msra.mxu0 %v2623
    %2705 = vmatpush.bf16.msra.mxu0 %v2621
    %2706 = vmatpush.bf16.msra.mxu0 %v2619
    %2707 = vmatpush.bf16.msra.mxu0 %v2617
    %2708 = vmatpush.bf16.msra.mxu0 %v2615
    %2709 = vmatpush.bf16.msra.mxu0 %v2613
    %2710 = vmatmul.bf16.gmra.mxu0 %v2512
    %v2711 = vpop.f32.mrf.mxu0
    %v2712 = vadd.f32 %v2506, %v2711
    %v2713 = vpop.f32.mrf.mxu0
    %2714 = vdwg.mxu0
    %2715 = vmatpush.bf16.msra.mxu0 %v2643
    %2716 = vmatpush.bf16.msra.mxu0 %v2641
    %2717 = vmatpush.bf16.msra.mxu0 %v2639
    %2718 = vmatpush.bf16.msra.mxu0 %v2637
    %2719 = vmatpush.bf16.msra.mxu0 %v2635
    %2720 = vmatpush.bf16.msra.mxu0 %v2633
    %2721 = vmatpush.bf16.msra.mxu0 %v2631
    %2722 = vmatpush.bf16.msra.mxu0 %v2629
    %2723 = vmatmul.bf16.gmra.mxu0 %v2513
    %v2724 = vpop.f32.mrf.mxu0
    %v2725 = vadd.f32 %v2712, %v2724
    %v2726 = vpop.f32.mrf.mxu0
    %2727 = vdwg.mxu0
    %s2728 = scalar_lea.vmem [#allocation8], 512
    %v2729 = vld [vmem:[%s2728] sm:$0xff]
    %v2730 = vld [vmem:[%s2728 + $0x8] sm:$0xff]
    %v2731 = vld [vmem:[%s2728 + $0x10] sm:$0xff]
    %v2732 = vld [vmem:[%s2728 + $0x18] sm:$0xff]
    %v2733 = vld [vmem:[%s2728 + $0x20] sm:$0xff]
    %v2734 = vld [vmem:[%s2728 + $0x28] sm:$0xff]
    %v2735 = vld [vmem:[%s2728 + $0x30] sm:$0xff]
    %v2736 = vld [vmem:[%s2728 + $0x38] sm:$0xff]
    %v2737 = vld [vmem:[%s2728 + $0x40] sm:$0xff]
    %v2738 = vld [vmem:[%s2728 + $0x48] sm:$0xff]
    %v2739 = vld [vmem:[%s2728 + $0x50] sm:$0xff]
    %v2740 = vld [vmem:[%s2728 + $0x58] sm:$0xff]
    %v2741 = vld [vmem:[%s2728 + $0x60] sm:$0xff]
    %v2742 = vld [vmem:[%s2728 + $0x68] sm:$0xff]
    %v2743 = vld [vmem:[%s2728 + $0x70] sm:$0xff]
    %v2744 = vld [vmem:[%s2728 + $0x78] sm:$0xff]
    %v2745 = vld [vmem:[%s2728 + $0x80] sm:$0xff]
    %v2746 = vld [vmem:[%s2728 + $0x88] sm:$0xff]
    %v2747 = vld [vmem:[%s2728 + $0x90] sm:$0xff]
    %v2748 = vld [vmem:[%s2728 + $0x98] sm:$0xff]
    %v2749 = vld [vmem:[%s2728 + $0xa0] sm:$0xff]
    %v2750 = vld [vmem:[%s2728 + $0xa8] sm:$0xff]
    %v2751 = vld [vmem:[%s2728 + $0xb0] sm:$0xff]
    %v2752 = vld [vmem:[%s2728 + $0xb8] sm:$0xff]
    %v2753 = vld [vmem:[%s2728 + $0xc0] sm:$0xff]
    %v2754 = vld [vmem:[%s2728 + $0xc8] sm:$0xff]
    %v2755 = vld [vmem:[%s2728 + $0xd0] sm:$0xff]
    %v2756 = vld [vmem:[%s2728 + $0xd8] sm:$0xff]
    %v2757 = vld [vmem:[%s2728 + $0xe0] sm:$0xff]
    %v2758 = vld [vmem:[%s2728 + $0xe8] sm:$0xff]
    %v2759 = vld [vmem:[%s2728 + $0xf0] sm:$0xff]
    %v2760 = vld [vmem:[%s2728 + $0xf8] sm:$0xff]
    %v2762 = vunpack.c.l.b16 %v2223
    %v2763 = vunpack.c.h.b16 %v2223
    %v2764 = vpack.c.b16 %v2762, %v2762
    %v2765 = vpack.c.b16 %v2763, %v2763
    %v2800 = vunpack.c.l.b16 %v2729
    %v2801 = vunpack.c.h.b16 %v2729
    %v2802 = vunpack.c.l.b16 %v2730
    %v2803 = vunpack.c.h.b16 %v2730
    %v2804 = vunpack.c.l.b16 %v2731
    %v2805 = vunpack.c.h.b16 %v2731
    %v2806 = vunpack.c.l.b16 %v2732
    %v2807 = vunpack.c.h.b16 %v2732
    %v2808 = vunpack.c.l.b16 %v2733
    %v2809 = vunpack.c.h.b16 %v2733
    %v2810 = vunpack.c.l.b16 %v2734
    %v2811 = vunpack.c.h.b16 %v2734
    %v2812 = vunpack.c.l.b16 %v2735
    %v2813 = vunpack.c.h.b16 %v2735
    %v2814 = vunpack.c.l.b16 %v2736
    %v2815 = vunpack.c.h.b16 %v2736
    %v2816 = vunpack.c.l.b16 %v2737
    %v2817 = vunpack.c.h.b16 %v2737
    %v2818 = vunpack.c.l.b16 %v2738
    %v2819 = vunpack.c.h.b16 %v2738
    %v2820 = vunpack.c.l.b16 %v2739
    %v2821 = vunpack.c.h.b16 %v2739
    %v2822 = vunpack.c.l.b16 %v2740
    %v2823 = vunpack.c.h.b16 %v2740
    %v2824 = vunpack.c.l.b16 %v2741
    %v2825 = vunpack.c.h.b16 %v2741
    %v2826 = vunpack.c.l.b16 %v2742
    %v2827 = vunpack.c.h.b16 %v2742
    %v2828 = vunpack.c.l.b16 %v2743
    %v2829 = vunpack.c.h.b16 %v2743
    %v2830 = vunpack.c.l.b16 %v2744
    %v2831 = vunpack.c.h.b16 %v2744
    %v2832 = vunpack.c.l.b16 %v2745
    %v2833 = vunpack.c.h.b16 %v2745
    %v2834 = vunpack.c.l.b16 %v2746
    %v2835 = vunpack.c.h.b16 %v2746
    %v2836 = vunpack.c.l.b16 %v2747
    %v2837 = vunpack.c.h.b16 %v2747
    %v2838 = vunpack.c.l.b16 %v2748
    %v2839 = vunpack.c.h.b16 %v2748
    %v2840 = vunpack.c.l.b16 %v2749
    %v2841 = vunpack.c.h.b16 %v2749
    %v2842 = vunpack.c.l.b16 %v2750
    %v2843 = vunpack.c.h.b16 %v2750
    %v2844 = vunpack.c.l.b16 %v2751
    %v2845 = vunpack.c.h.b16 %v2751
    %v2846 = vunpack.c.l.b16 %v2752
    %v2847 = vunpack.c.h.b16 %v2752
    %v2848 = vunpack.c.l.b16 %v2753
    %v2849 = vunpack.c.h.b16 %v2753
    %v2850 = vunpack.c.l.b16 %v2754
    %v2851 = vunpack.c.h.b16 %v2754
    %v2852 = vunpack.c.l.b16 %v2755
    %v2853 = vunpack.c.h.b16 %v2755
    %v2854 = vunpack.c.l.b16 %v2756
    %v2855 = vunpack.c.h.b16 %v2756
    %v2856 = vunpack.c.l.b16 %v2757
    %v2857 = vunpack.c.h.b16 %v2757
    %v2858 = vunpack.c.l.b16 %v2758
    %v2859 = vunpack.c.h.b16 %v2758
    %v2860 = vunpack.c.l.b16 %v2759
    %v2861 = vunpack.c.h.b16 %v2759
    %v2862 = vunpack.c.l.b16 %v2760
    %v2863 = vunpack.c.h.b16 %v2760
    %v2864 = vpack.c.b16 %v2802, %v2800
    %v2865 = vpack.c.b16 %v2803, %v2801
    %v2866 = vpack.c.b16 %v2806, %v2804
    %v2867 = vpack.c.b16 %v2807, %v2805
    %v2868 = vpack.c.b16 %v2810, %v2808
    %v2869 = vpack.c.b16 %v2811, %v2809
    %v2870 = vpack.c.b16 %v2814, %v2812
    %v2871 = vpack.c.b16 %v2815, %v2813
    %v2872 = vpack.c.b16 %v2818, %v2816
    %v2873 = vpack.c.b16 %v2819, %v2817
    %v2874 = vpack.c.b16 %v2822, %v2820
    %v2875 = vpack.c.b16 %v2823, %v2821
    %v2876 = vpack.c.b16 %v2826, %v2824
    %v2877 = vpack.c.b16 %v2827, %v2825
    %v2878 = vpack.c.b16 %v2830, %v2828
    %v2879 = vpack.c.b16 %v2831, %v2829
    %v2880 = vpack.c.b16 %v2834, %v2832
    %v2881 = vpack.c.b16 %v2835, %v2833
    %v2882 = vpack.c.b16 %v2838, %v2836
    %v2883 = vpack.c.b16 %v2839, %v2837
    %v2884 = vpack.c.b16 %v2842, %v2840
    %v2885 = vpack.c.b16 %v2843, %v2841
    %v2886 = vpack.c.b16 %v2846, %v2844
    %v2887 = vpack.c.b16 %v2847, %v2845
    %v2888 = vpack.c.b16 %v2850, %v2848
    %v2889 = vpack.c.b16 %v2851, %v2849
    %v2890 = vpack.c.b16 %v2854, %v2852
    %v2891 = vpack.c.b16 %v2855, %v2853
    %v2892 = vpack.c.b16 %v2858, %v2856
    %v2893 = vpack.c.b16 %v2859, %v2857
    %v2894 = vpack.c.b16 %v2862, %v2860
    %v2895 = vpack.c.b16 %v2863, %v2861
    %2928 = vmatpush.bf16.msra.mxu0 %v2878
    %2929 = vmatpush.bf16.msra.mxu0 %v2876
    %2930 = vmatpush.bf16.msra.mxu0 %v2874
    %2931 = vmatpush.bf16.msra.mxu0 %v2872
    %2932 = vmatpush.bf16.msra.mxu0 %v2870
    %2933 = vmatpush.bf16.msra.mxu0 %v2868
    %2934 = vmatpush.bf16.msra.mxu0 %v2866
    %2935 = vmatpush.bf16.msra.mxu0 %v2864
    %2936 = vmatmul.bf16.gmra.mxu0 %v2764
    %v2937 = vpop.f32.mrf.mxu0
    %v2938 = vadd.f32 0.0, %v2937
    %v2939 = vpop.f32.mrf.mxu0
    %2940 = vdwg.mxu0
    %2941 = vmatpush.bf16.msra.mxu0 %v2894
    %2942 = vmatpush.bf16.msra.mxu0 %v2892
    %2943 = vmatpush.bf16.msra.mxu0 %v2890
    %2944 = vmatpush.bf16.msra.mxu0 %v2888
    %2945 = vmatpush.bf16.msra.mxu0 %v2886
    %2946 = vmatpush.bf16.msra.mxu0 %v2884
    %2947 = vmatpush.bf16.msra.mxu0 %v2882
    %2948 = vmatpush.bf16.msra.mxu0 %v2880
    %2949 = vmatmul.bf16.gmra.mxu0 %v2765
    %v2950 = vpop.f32.mrf.mxu0
    %v2951 = vadd.f32 %v2938, %v2950
    %v2952 = vpop.f32.mrf.mxu0
    %2953 = vdwg.mxu0
    %2954 = vmatpush.bf16.msra.mxu0 %v2879
    %2955 = vmatpush.bf16.msra.mxu0 %v2877
    %2956 = vmatpush.bf16.msra.mxu0 %v2875
    %2957 = vmatpush.bf16.msra.mxu0 %v2873
    %2958 = vmatpush.bf16.msra.mxu0 %v2871
    %2959 = vmatpush.bf16.msra.mxu0 %v2869
    %2960 = vmatpush.bf16.msra.mxu0 %v2867
    %2961 = vmatpush.bf16.msra.mxu0 %v2865
    %2962 = vmatmul.bf16.gmra.mxu0 %v2764
    %v2963 = vpop.f32.mrf.mxu0
    %v2964 = vadd.f32 0.0, %v2963
    %v2965 = vpop.f32.mrf.mxu0
    %2966 = vdwg.mxu0
    %2967 = vmatpush.bf16.msra.mxu0 %v2895
    %2968 = vmatpush.bf16.msra.mxu0 %v2893
    %2969 = vmatpush.bf16.msra.mxu0 %v2891
    %2970 = vmatpush.bf16.msra.mxu0 %v2889
    %2971 = vmatpush.bf16.msra.mxu0 %v2887
    %2972 = vmatpush.bf16.msra.mxu0 %v2885
    %2973 = vmatpush.bf16.msra.mxu0 %v2883
    %2974 = vmatpush.bf16.msra.mxu0 %v2881
    %2975 = vmatmul.bf16.gmra.mxu0 %v2765
    %v2976 = vpop.f32.mrf.mxu0
    %v2977 = vadd.f32 %v2964, %v2976
    %v2978 = vpop.f32.mrf.mxu0
    %2979 = vdwg.mxu0
    %v2980 = vadd.f32 %v2699, %v2951
    %v2981 = vadd.f32 %v2725, %v2977
    %s2982 = scalar_lea.vmem [#allocation8], 768
    %v2983 = vld [vmem:[%s2982] sm:$0xff]
    %v2984 = vld [vmem:[%s2982 + $0x8] sm:$0xff]
    %v2985 = vld [vmem:[%s2982 + $0x10] sm:$0xff]
    %v2986 = vld [vmem:[%s2982 + $0x18] sm:$0xff]
    %v2987 = vld [vmem:[%s2982 + $0x20] sm:$0xff]
    %v2988 = vld [vmem:[%s2982 + $0x28] sm:$0xff]
    %v2989 = vld [vmem:[%s2982 + $0x30] sm:$0xff]
    %v2990 = vld [vmem:[%s2982 + $0x38] sm:$0xff]
    %v2991 = vld [vmem:[%s2982 + $0x40] sm:$0xff]
    %v2992 = vld [vmem:[%s2982 + $0x48] sm:$0xff]
    %v2993 = vld [vmem:[%s2982 + $0x50] sm:$0xff]
    %v2994 = vld [vmem:[%s2982 + $0x58] sm:$0xff]
    %v2995 = vld [vmem:[%s2982 + $0x60] sm:$0xff]
    %v2996 = vld [vmem:[%s2982 + $0x68] sm:$0xff]
    %v2997 = vld [vmem:[%s2982 + $0x70] sm:$0xff]
    %v2998 = vld [vmem:[%s2982 + $0x78] sm:$0xff]
    %v2999 = vld [vmem:[%s2982 + $0x80] sm:$0xff]
    %v3000 = vld [vmem:[%s2982 + $0x88] sm:$0xff]
    %v3001 = vld [vmem:[%s2982 + $0x90] sm:$0xff]
    %v3002 = vld [vmem:[%s2982 + $0x98] sm:$0xff]
    %v3003 = vld [vmem:[%s2982 + $0xa0] sm:$0xff]
    %v3004 = vld [vmem:[%s2982 + $0xa8] sm:$0xff]
    %v3005 = vld [vmem:[%s2982 + $0xb0] sm:$0xff]
    %v3006 = vld [vmem:[%s2982 + $0xb8] sm:$0xff]
    %v3007 = vld [vmem:[%s2982 + $0xc0] sm:$0xff]
    %v3008 = vld [vmem:[%s2982 + $0xc8] sm:$0xff]
    %v3009 = vld [vmem:[%s2982 + $0xd0] sm:$0xff]
    %v3010 = vld [vmem:[%s2982 + $0xd8] sm:$0xff]
    %v3011 = vld [vmem:[%s2982 + $0xe0] sm:$0xff]
    %v3012 = vld [vmem:[%s2982 + $0xe8] sm:$0xff]
    %v3013 = vld [vmem:[%s2982 + $0xf0] sm:$0xff]
    %v3014 = vld [vmem:[%s2982 + $0xf8] sm:$0xff]
    %v3016 = vunpack.c.l.b16 %v2224
    %v3017 = vunpack.c.h.b16 %v2224
    %v3018 = vpack.c.b16 %v3016, %v3016
    %v3019 = vpack.c.b16 %v3017, %v3017
    %v3054 = vunpack.c.l.b16 %v2983
    %v3055 = vunpack.c.h.b16 %v2983
    %v3056 = vunpack.c.l.b16 %v2984
    %v3057 = vunpack.c.h.b16 %v2984
    %v3058 = vunpack.c.l.b16 %v2985
    %v3059 = vunpack.c.h.b16 %v2985
    %v3060 = vunpack.c.l.b16 %v2986
    %v3061 = vunpack.c.h.b16 %v2986
    %v3062 = vunpack.c.l.b16 %v2987
    %v3063 = vunpack.c.h.b16 %v2987
    %v3064 = vunpack.c.l.b16 %v2988
    %v3065 = vunpack.c.h.b16 %v2988
    %v3066 = vunpack.c.l.b16 %v2989
    %v3067 = vunpack.c.h.b16 %v2989
    %v3068 = vunpack.c.l.b16 %v2990
    %v3069 = vunpack.c.h.b16 %v2990
    %v3070 = vunpack.c.l.b16 %v2991
    %v3071 = vunpack.c.h.b16 %v2991
    %v3072 = vunpack.c.l.b16 %v2992
    %v3073 = vunpack.c.h.b16 %v2992
    %v3074 = vunpack.c.l.b16 %v2993
    %v3075 = vunpack.c.h.b16 %v2993
    %v3076 = vunpack.c.l.b16 %v2994
    %v3077 = vunpack.c.h.b16 %v2994
    %v3078 = vunpack.c.l.b16 %v2995
    %v3079 = vunpack.c.h.b16 %v2995
    %v3080 = vunpack.c.l.b16 %v2996
    %v3081 = vunpack.c.h.b16 %v2996
    %v3082 = vunpack.c.l.b16 %v2997
    %v3083 = vunpack.c.h.b16 %v2997
    %v3084 = vunpack.c.l.b16 %v2998
    %v3085 = vunpack.c.h.b16 %v2998
    %v3086 = vunpack.c.l.b16 %v2999
    %v3087 = vunpack.c.h.b16 %v2999
    %v3088 = vunpack.c.l.b16 %v3000
    %v3089 = vunpack.c.h.b16 %v3000
    %v3090 = vunpack.c.l.b16 %v3001
    %v3091 = vunpack.c.h.b16 %v3001
    %v3092 = vunpack.c.l.b16 %v3002
    %v3093 = vunpack.c.h.b16 %v3002
    %v3094 = vunpack.c.l.b16 %v3003
    %v3095 = vunpack.c.h.b16 %v3003
    %v3096 = vunpack.c.l.b16 %v3004
    %v3097 = vunpack.c.h.b16 %v3004
    %v3098 = vunpack.c.l.b16 %v3005
    %v3099 = vunpack.c.h.b16 %v3005
    %v3100 = vunpack.c.l.b16 %v3006
    %v3101 = vunpack.c.h.b16 %v3006
    %v3102 = vunpack.c.l.b16 %v3007
    %v3103 = vunpack.c.h.b16 %v3007
    %v3104 = vunpack.c.l.b16 %v3008
    %v3105 = vunpack.c.h.b16 %v3008
    %v3106 = vunpack.c.l.b16 %v3009
    %v3107 = vunpack.c.h.b16 %v3009
    %v3108 = vunpack.c.l.b16 %v3010
    %v3109 = vunpack.c.h.b16 %v3010
    %v3110 = vunpack.c.l.b16 %v3011
    %v3111 = vunpack.c.h.b16 %v3011
    %v3112 = vunpack.c.l.b16 %v3012
    %v3113 = vunpack.c.h.b16 %v3012
    %v3114 = vunpack.c.l.b16 %v3013
    %v3115 = vunpack.c.h.b16 %v3013
    %v3116 = vunpack.c.l.b16 %v3014
    %v3117 = vunpack.c.h.b16 %v3014
    %v3118 = vpack.c.b16 %v3056, %v3054
    %v3119 = vpack.c.b16 %v3057, %v3055
    %v3120 = vpack.c.b16 %v3060, %v3058
    %v3121 = vpack.c.b16 %v3061, %v3059
    %v3122 = vpack.c.b16 %v3064, %v3062
    %v3123 = vpack.c.b16 %v3065, %v3063
    %v3124 = vpack.c.b16 %v3068, %v3066
    %v3125 = vpack.c.b16 %v3069, %v3067
    %v3126 = vpack.c.b16 %v3072, %v3070
    %v3127 = vpack.c.b16 %v3073, %v3071
    %v3128 = vpack.c.b16 %v3076, %v3074
    %v3129 = vpack.c.b16 %v3077, %v3075
    %v3130 = vpack.c.b16 %v3080, %v3078
    %v3131 = vpack.c.b16 %v3081, %v3079
    %v3132 = vpack.c.b16 %v3084, %v3082
    %v3133 = vpack.c.b16 %v3085, %v3083
    %v3134 = vpack.c.b16 %v3088, %v3086
    %v3135 = vpack.c.b16 %v3089, %v3087
    %v3136 = vpack.c.b16 %v3092, %v3090
    %v3137 = vpack.c.b16 %v3093, %v3091
    %v3138 = vpack.c.b16 %v3096, %v3094
    %v3139 = vpack.c.b16 %v3097, %v3095
    %v3140 = vpack.c.b16 %v3100, %v3098
    %v3141 = vpack.c.b16 %v3101, %v3099
    %v3142 = vpack.c.b16 %v3104, %v3102
    %v3143 = vpack.c.b16 %v3105, %v3103
    %v3144 = vpack.c.b16 %v3108, %v3106
    %v3145 = vpack.c.b16 %v3109, %v3107
    %v3146 = vpack.c.b16 %v3112, %v3110
    %v3147 = vpack.c.b16 %v3113, %v3111
    %v3148 = vpack.c.b16 %v3116, %v3114
    %v3149 = vpack.c.b16 %v3117, %v3115
    %3182 = vmatpush.bf16.msra.mxu0 %v3132
    %3183 = vmatpush.bf16.msra.mxu0 %v3130
    %3184 = vmatpush.bf16.msra.mxu0 %v3128
    %3185 = vmatpush.bf16.msra.mxu0 %v3126
    %3186 = vmatpush.bf16.msra.mxu0 %v3124
    %3187 = vmatpush.bf16.msra.mxu0 %v3122
    %3188 = vmatpush.bf16.msra.mxu0 %v3120
    %3189 = vmatpush.bf16.msra.mxu0 %v3118
    %3190 = vmatmul.bf16.gmra.mxu0 %v3018
    %v3191 = vpop.f32.mrf.mxu0
    %v3192 = vadd.f32 0.0, %v3191
    %v3193 = vpop.f32.mrf.mxu0
    %3194 = vdwg.mxu0
    %3195 = vmatpush.bf16.msra.mxu0 %v3148
    %3196 = vmatpush.bf16.msra.mxu0 %v3146
    %3197 = vmatpush.bf16.msra.mxu0 %v3144
    %3198 = vmatpush.bf16.msra.mxu0 %v3142
    %3199 = vmatpush.bf16.msra.mxu0 %v3140
    %3200 = vmatpush.bf16.msra.mxu0 %v3138
    %3201 = vmatpush.bf16.msra.mxu0 %v3136
    %3202 = vmatpush.bf16.msra.mxu0 %v3134
    %3203 = vmatmul.bf16.gmra.mxu0 %v3019
    %v3204 = vpop.f32.mrf.mxu0
    %v3205 = vadd.f32 %v3192, %v3204
    %v3206 = vpop.f32.mrf.mxu0
    %3207 = vdwg.mxu0
    %3208 = vmatpush.bf16.msra.mxu0 %v3133
    %3209 = vmatpush.bf16.msra.mxu0 %v3131
    %3210 = vmatpush.bf16.msra.mxu0 %v3129
    %3211 = vmatpush.bf16.msra.mxu0 %v3127
    %3212 = vmatpush.bf16.msra.mxu0 %v3125
    %3213 = vmatpush.bf16.msra.mxu0 %v3123
    %3214 = vmatpush.bf16.msra.mxu0 %v3121
    %3215 = vmatpush.bf16.msra.mxu0 %v3119
    %3216 = vmatmul.bf16.gmra.mxu0 %v3018
    %v3217 = vpop.f32.mrf.mxu0
    %v3218 = vadd.f32 0.0, %v3217
    %v3219 = vpop.f32.mrf.mxu0
    %3220 = vdwg.mxu0
    %3221 = vmatpush.bf16.msra.mxu0 %v3149
    %3222 = vmatpush.bf16.msra.mxu0 %v3147
    %3223 = vmatpush.bf16.msra.mxu0 %v3145
    %3224 = vmatpush.bf16.msra.mxu0 %v3143
    %3225 = vmatpush.bf16.msra.mxu0 %v3141
    %3226 = vmatpush.bf16.msra.mxu0 %v3139
    %3227 = vmatpush.bf16.msra.mxu0 %v3137
    %3228 = vmatpush.bf16.msra.mxu0 %v3135
    %3229 = vmatmul.bf16.gmra.mxu0 %v3019
    %v3230 = vpop.f32.mrf.mxu0
    %v3231 = vadd.f32 %v3218, %v3230
    %v3232 = vpop.f32.mrf.mxu0
    %3233 = vdwg.mxu0
    %v3234 = vadd.f32 %v2980, %v3205
    %v3235 = vadd.f32 %v2981, %v3231
    %v3236 = vld [vmem:[%s13] sm:$0x3]
    %v3238 = vperm.slane %v3236, 0
    %v3239 = vperm.slane %v3236, 1
    %v3242 = vmul.f32 %v3234, %v3238
    %v3243 = vmul.f32 %v3235, %v3239
    %v3244 = vld [vmem:[%s14] sm:$0x3]
    %v3246 = vperm.slane %v3244, 0
    %v3247 = vperm.slane %v3244, 1
    %v3250 = vadd.f32 %v3242, %v3246
    %v3251 = vadd.f32 %v3243, %v3247
    %v3252 = vmax.f32 %v3250, 0.0
    %v3253 = vmax.f32 %v3251, 0.0
    %v3254 = vpack.c.bf16 %v3252, %v3252
    %v3255 = vpack.c.bf16 %v3253, %v3253
    %v3256 = vld [vmem:[#allocation10] sm:$0xff]
    %v3257 = vld [vmem:[#allocation10 + $0x8] sm:$0xf]
    %v3258 = vld [vmem:[#allocation10 + $0xc] sm:$0xff]
    %v3259 = vld [vmem:[#allocation10 + $0x14] sm:$0xf]
    %v3260 = vld [vmem:[#allocation10 + $0x18] sm:$0xff]
    %v3261 = vld [vmem:[#allocation10 + $0x20] sm:$0xf]
    %v3262 = vld [vmem:[#allocation10 + $0x24] sm:$0xff]
    %v3263 = vld [vmem:[#allocation10 + $0x2c] sm:$0xf]
    %v3264 = vld [vmem:[#allocation10 + $0x30] sm:$0xff]
    %v3265 = vld [vmem:[#allocation10 + $0x38] sm:$0xf]
    %v3266 = vld [vmem:[#allocation10 + $0x3c] sm:$0xff]
    %v3267 = vld [vmem:[#allocation10 + $0x44] sm:$0xf]
    %v3268 = vld [vmem:[#allocation10 + $0x48] sm:$0xff]
    %v3269 = vld [vmem:[#allocation10 + $0x50] sm:$0xf]
    %v3270 = vld [vmem:[#allocation10 + $0x54] sm:$0xff]
    %v3271 = vld [vmem:[#allocation10 + $0x5c] sm:$0xf]
    %v3272 = vld [vmem:[#allocation10 + $0x60] sm:$0xff]
    %v3273 = vld [vmem:[#allocation10 + $0x68] sm:$0xf]
    %v3274 = vld [vmem:[#allocation10 + $0x6c] sm:$0xff]
    %v3275 = vld [vmem:[#allocation10 + $0x74] sm:$0xf]
    %v3276 = vld [vmem:[#allocation10 + $0x78] sm:$0xff]
    %v3277 = vld [vmem:[#allocation10 + $0x80] sm:$0xf]
    %v3278 = vld [vmem:[#allocation10 + $0x84] sm:$0xff]
    %v3279 = vld [vmem:[#allocation10 + $0x8c] sm:$0xf]
    %v3280 = vld [vmem:[#allocation10 + $0x90] sm:$0xff]
    %v3281 = vld [vmem:[#allocation10 + $0x98] sm:$0xf]
    %v3282 = vld [vmem:[#allocation10 + $0x9c] sm:$0xff]
    %v3283 = vld [vmem:[#allocation10 + $0xa4] sm:$0xf]
    %v3284 = vld [vmem:[#allocation10 + $0xa8] sm:$0xff]
    %v3285 = vld [vmem:[#allocation10 + $0xb0] sm:$0xf]
    %v3286 = vld [vmem:[#allocation10 + $0xb4] sm:$0xff]
    %v3287 = vld [vmem:[#allocation10 + $0xbc] sm:$0xf]
    %v3288 = vld [vmem:[#allocation10 + $0xc0] sm:$0xff]
    %v3289 = vld [vmem:[#allocation10 + $0xc8] sm:$0xf]
    %v3290 = vld [vmem:[#allocation10 + $0xcc] sm:$0xff]
    %v3291 = vld [vmem:[#allocation10 + $0xd4] sm:$0xf]
    %v3292 = vld [vmem:[#allocation10 + $0xd8] sm:$0xff]
    %v3293 = vld [vmem:[#allocation10 + $0xe0] sm:$0xf]
    %v3294 = vld [vmem:[#allocation10 + $0xe4] sm:$0xff]
    %v3295 = vld [vmem:[#allocation10 + $0xec] sm:$0xf]
    %v3296 = vld [vmem:[#allocation10 + $0xf0] sm:$0xff]
    %v3297 = vld [vmem:[#allocation10 + $0xf8] sm:$0xf]
    %v3298 = vld [vmem:[#allocation10 + $0xfc] sm:$0xff]
    %v3299 = vld [vmem:[#allocation10 + $0x104] sm:$0xf]
    %v3300 = vld [vmem:[#allocation10 + $0x108] sm:$0xff]
    %v3301 = vld [vmem:[#allocation10 + $0x110] sm:$0xf]
    %v3302 = vld [vmem:[#allocation10 + $0x114] sm:$0xff]
    %v3303 = vld [vmem:[#allocation10 + $0x11c] sm:$0xf]
    %v3304 = vld [vmem:[#allocation10 + $0x120] sm:$0xff]
    %v3305 = vld [vmem:[#allocation10 + $0x128] sm:$0xf]
    %v3306 = vld [vmem:[#allocation10 + $0x12c] sm:$0xff]
    %v3307 = vld [vmem:[#allocation10 + $0x134] sm:$0xf]
    %v3308 = vld [vmem:[#allocation10 + $0x138] sm:$0xff]
    %v3309 = vld [vmem:[#allocation10 + $0x140] sm:$0xf]
    %v3310 = vld [vmem:[#allocation10 + $0x144] sm:$0xff]
    %v3311 = vld [vmem:[#allocation10 + $0x14c] sm:$0xf]
    %v3312 = vld [vmem:[#allocation10 + $0x150] sm:$0xff]
    %v3313 = vld [vmem:[#allocation10 + $0x158] sm:$0xf]
    %v3314 = vld [vmem:[#allocation10 + $0x15c] sm:$0xff]
    %v3315 = vld [vmem:[#allocation10 + $0x164] sm:$0xf]
    %v3316 = vld [vmem:[#allocation10 + $0x168] sm:$0xff]
    %v3317 = vld [vmem:[#allocation10 + $0x170] sm:$0xf]
    %v3318 = vld [vmem:[#allocation10 + $0x174] sm:$0xff]
    %v3319 = vld [vmem:[#allocation10 + $0x17c] sm:$0xf]
    %v3384 = vunpack.c.l.b16 %v3256
    %v3385 = vunpack.c.h.b16 %v3256
    %v3386 = vunpack.c.l.b16 %v3257
    %v3387 = vunpack.c.l.b16 %v3258
    %v3388 = vunpack.c.h.b16 %v3258
    %v3389 = vunpack.c.l.b16 %v3259
    %v3390 = vunpack.c.l.b16 %v3260
    %v3391 = vunpack.c.h.b16 %v3260
    %v3392 = vunpack.c.l.b16 %v3261
    %v3393 = vunpack.c.l.b16 %v3262
    %v3394 = vunpack.c.h.b16 %v3262
    %v3395 = vunpack.c.l.b16 %v3263
    %v3396 = vunpack.c.l.b16 %v3264
    %v3397 = vunpack.c.h.b16 %v3264
    %v3398 = vunpack.c.l.b16 %v3265
    %v3399 = vunpack.c.l.b16 %v3266
    %v3400 = vunpack.c.h.b16 %v3266
    %v3401 = vunpack.c.l.b16 %v3267
    %v3402 = vunpack.c.l.b16 %v3268
    %v3403 = vunpack.c.h.b16 %v3268
    %v3404 = vunpack.c.l.b16 %v3269
    %v3405 = vunpack.c.l.b16 %v3270
    %v3406 = vunpack.c.h.b16 %v3270
    %v3407 = vunpack.c.l.b16 %v3271
    %v3408 = vunpack.c.l.b16 %v3272
    %v3409 = vunpack.c.h.b16 %v3272
    %v3410 = vunpack.c.l.b16 %v3273
    %v3411 = vunpack.c.l.b16 %v3274
    %v3412 = vunpack.c.h.b16 %v3274
    %v3413 = vunpack.c.l.b16 %v3275
    %v3414 = vunpack.c.l.b16 %v3276
    %v3415 = vunpack.c.h.b16 %v3276
    %v3416 = vunpack.c.l.b16 %v3277
    %v3417 = vunpack.c.l.b16 %v3278
    %v3418 = vunpack.c.h.b16 %v3278
    %v3419 = vunpack.c.l.b16 %v3279
    %v3420 = vunpack.c.l.b16 %v3280
    %v3421 = vunpack.c.h.b16 %v3280
    %v3422 = vunpack.c.l.b16 %v3281
    %v3423 = vunpack.c.l.b16 %v3282
    %v3424 = vunpack.c.h.b16 %v3282
    %v3425 = vunpack.c.l.b16 %v3283
    %v3426 = vunpack.c.l.b16 %v3284
    %v3427 = vunpack.c.h.b16 %v3284
    %v3428 = vunpack.c.l.b16 %v3285
    %v3429 = vunpack.c.l.b16 %v3286
    %v3430 = vunpack.c.h.b16 %v3286
    %v3431 = vunpack.c.l.b16 %v3287
    %v3432 = vunpack.c.l.b16 %v3288
    %v3433 = vunpack.c.h.b16 %v3288
    %v3434 = vunpack.c.l.b16 %v3289
    %v3435 = vunpack.c.l.b16 %v3290
    %v3436 = vunpack.c.h.b16 %v3290
    %v3437 = vunpack.c.l.b16 %v3291
    %v3438 = vunpack.c.l.b16 %v3292
    %v3439 = vunpack.c.h.b16 %v3292
    %v3440 = vunpack.c.l.b16 %v3293
    %v3441 = vunpack.c.l.b16 %v3294
    %v3442 = vunpack.c.h.b16 %v3294
    %v3443 = vunpack.c.l.b16 %v3295
    %v3444 = vunpack.c.l.b16 %v3296
    %v3445 = vunpack.c.h.b16 %v3296
    %v3446 = vunpack.c.l.b16 %v3297
    %v3447 = vunpack.c.l.b16 %v3298
    %v3448 = vunpack.c.h.b16 %v3298
    %v3449 = vunpack.c.l.b16 %v3299
    %v3450 = vunpack.c.l.b16 %v3300
    %v3451 = vunpack.c.h.b16 %v3300
    %v3452 = vunpack.c.l.b16 %v3301
    %v3453 = vunpack.c.l.b16 %v3302
    %v3454 = vunpack.c.h.b16 %v3302
    %v3455 = vunpack.c.l.b16 %v3303
    %v3456 = vunpack.c.l.b16 %v3304
    %v3457 = vunpack.c.h.b16 %v3304
    %v3458 = vunpack.c.l.b16 %v3305
    %v3459 = vunpack.c.l.b16 %v3306
    %v3460 = vunpack.c.h.b16 %v3306
    %v3461 = vunpack.c.l.b16 %v3307
    %v3462 = vunpack.c.l.b16 %v3308
    %v3463 = vunpack.c.h.b16 %v3308
    %v3464 = vunpack.c.l.b16 %v3309
    %v3465 = vunpack.c.l.b16 %v3310
    %v3466 = vunpack.c.h.b16 %v3310
    %v3467 = vunpack.c.l.b16 %v3311
    %v3468 = vunpack.c.l.b16 %v3312
    %v3469 = vunpack.c.h.b16 %v3312
    %v3470 = vunpack.c.l.b16 %v3313
    %v3471 = vunpack.c.l.b16 %v3314
    %v3472 = vunpack.c.h.b16 %v3314
    %v3473 = vunpack.c.l.b16 %v3315
    %v3474 = vunpack.c.l.b16 %v3316
    %v3475 = vunpack.c.h.b16 %v3316
    %v3476 = vunpack.c.l.b16 %v3317
    %v3477 = vunpack.c.l.b16 %v3318
    %v3478 = vunpack.c.h.b16 %v3318
    %v3479 = vunpack.c.l.b16 %v3319
    %v3480 = vpack.c.b16 %v3387, %v3384
    %v3481 = vpack.c.b16 %v3388, %v3385
    %v3482 = vpack.c.b16 %v3389, %v3386
    %v3483 = vpack.c.b16 %v3393, %v3390
    %v3484 = vpack.c.b16 %v3394, %v3391
    %v3485 = vpack.c.b16 %v3395, %v3392
    %v3486 = vpack.c.b16 %v3399, %v3396
    %v3487 = vpack.c.b16 %v3400, %v3397
    %v3488 = vpack.c.b16 %v3401, %v3398
    %v3489 = vpack.c.b16 %v3405, %v3402
    %v3490 = vpack.c.b16 %v3406, %v3403
    %v3491 = vpack.c.b16 %v3407, %v3404
    %v3492 = vpack.c.b16 %v3411, %v3408
    %v3493 = vpack.c.b16 %v3412, %v3409
    %v3494 = vpack.c.b16 %v3413, %v3410
    %v3495 = vpack.c.b16 %v3417, %v3414
    %v3496 = vpack.c.b16 %v3418, %v3415
    %v3497 = vpack.c.b16 %v3419, %v3416
    %v3498 = vpack.c.b16 %v3423, %v3420
    %v3499 = vpack.c.b16 %v3424, %v3421
    %v3500 = vpack.c.b16 %v3425, %v3422
    %v3501 = vpack.c.b16 %v3429, %v3426
    %v3502 = vpack.c.b16 %v3430, %v3427
    %v3503 = vpack.c.b16 %v3431, %v3428
    %v3504 = vpack.c.b16 %v3435, %v3432
    %v3505 = vpack.c.b16 %v3436, %v3433
    %v3506 = vpack.c.b16 %v3437, %v3434
    %v3507 = vpack.c.b16 %v3441, %v3438
    %v3508 = vpack.c.b16 %v3442, %v3439
    %v3509 = vpack.c.b16 %v3443, %v3440
    %v3510 = vpack.c.b16 %v3447, %v3444
    %v3511 = vpack.c.b16 %v3448, %v3445
    %v3512 = vpack.c.b16 %v3449, %v3446
    %v3513 = vpack.c.b16 %v3453, %v3450
    %v3514 = vpack.c.b16 %v3454, %v3451
    %v3515 = vpack.c.b16 %v3455, %v3452
    %v3516 = vpack.c.b16 %v3459, %v3456
    %v3517 = vpack.c.b16 %v3460, %v3457
    %v3518 = vpack.c.b16 %v3461, %v3458
    %v3519 = vpack.c.b16 %v3465, %v3462
    %v3520 = vpack.c.b16 %v3466, %v3463
    %v3521 = vpack.c.b16 %v3467, %v3464
    %v3522 = vpack.c.b16 %v3471, %v3468
    %v3523 = vpack.c.b16 %v3472, %v3469
    %v3524 = vpack.c.b16 %v3473, %v3470
    %v3525 = vpack.c.b16 %v3477, %v3474
    %v3526 = vpack.c.b16 %v3478, %v3475
    %v3527 = vpack.c.b16 %v3479, %v3476
    %3576 = vmatpush.bf16.msra.mxu0 %v3501
    %3577 = vmatpush.bf16.msra.mxu0 %v3498
    %3578 = vmatpush.bf16.msra.mxu0 %v3495
    %3579 = vmatpush.bf16.msra.mxu0 %v3492
    %3580 = vmatpush.bf16.msra.mxu0 %v3489
    %3581 = vmatpush.bf16.msra.mxu0 %v3486
    %3582 = vmatpush.bf16.msra.mxu0 %v3483
    %3583 = vmatpush.bf16.msra.mxu0 %v3480
    %3584 = vmatmul.bf16.gmra.mxu0 %v3254
    %v3585 = vpop.f32.mrf.mxu0
    %v3586 = vadd.f32 0.0, %v3585
    %v3587 = vpop.f32.mrf.mxu0
    %3588 = vdwg.mxu0
    %3589 = vmatpush.bf16.msra.mxu0 %v3525
    %3590 = vmatpush.bf16.msra.mxu0 %v3522
    %3591 = vmatpush.bf16.msra.mxu0 %v3519
    %3592 = vmatpush.bf16.msra.mxu0 %v3516
    %3593 = vmatpush.bf16.msra.mxu0 %v3513
    %3594 = vmatpush.bf16.msra.mxu0 %v3510
    %3595 = vmatpush.bf16.msra.mxu0 %v3507
    %3596 = vmatpush.bf16.msra.mxu0 %v3504
    %3597 = vmatmul.bf16.gmra.mxu0 %v3255
    %v3598 = vpop.f32.mrf.mxu0
    %v3599 = vadd.f32 %v3586, %v3598
    %v3600 = vpop.f32.mrf.mxu0
    %3601 = vdwg.mxu0
    %3602 = vmatpush.bf16.msra.mxu0 %v3502
    %3603 = vmatpush.bf16.msra.mxu0 %v3499
    %3604 = vmatpush.bf16.msra.mxu0 %v3496
    %3605 = vmatpush.bf16.msra.mxu0 %v3493
    %3606 = vmatpush.bf16.msra.mxu0 %v3490
    %3607 = vmatpush.bf16.msra.mxu0 %v3487
    %3608 = vmatpush.bf16.msra.mxu0 %v3484
    %3609 = vmatpush.bf16.msra.mxu0 %v3481
    %3610 = vmatmul.bf16.gmra.mxu0 %v3254
    %v3611 = vpop.f32.mrf.mxu0
    %v3612 = vadd.f32 0.0, %v3611
    %v3613 = vpop.f32.mrf.mxu0
    %3614 = vdwg.mxu0
    %3615 = vmatpush.bf16.msra.mxu0 %v3526
    %3616 = vmatpush.bf16.msra.mxu0 %v3523
    %3617 = vmatpush.bf16.msra.mxu0 %v3520
    %3618 = vmatpush.bf16.msra.mxu0 %v3517
    %3619 = vmatpush.bf16.msra.mxu0 %v3514
    %3620 = vmatpush.bf16.msra.mxu0 %v3511
    %3621 = vmatpush.bf16.msra.mxu0 %v3508
    %3622 = vmatpush.bf16.msra.mxu0 %v3505
    %3623 = vmatmul.bf16.gmra.mxu0 %v3255
    %v3624 = vpop.f32.mrf.mxu0
    %v3625 = vadd.f32 %v3612, %v3624
    %v3626 = vpop.f32.mrf.mxu0
    %3627 = vdwg.mxu0
    %3628 = vmatpush.bf16.msra.mxu0 %v3503
    %3629 = vmatpush.bf16.msra.mxu0 %v3500
    %3630 = vmatpush.bf16.msra.mxu0 %v3497
    %3631 = vmatpush.bf16.msra.mxu0 %v3494
    %3632 = vmatpush.bf16.msra.mxu0 %v3491
    %3633 = vmatpush.bf16.msra.mxu0 %v3488
    %3634 = vmatpush.bf16.msra.mxu0 %v3485
    %3635 = vmatpush.bf16.msra.mxu0 %v3482
    %3636 = vmatmul.bf16.gmra.mxu0 %v3254
    %v3637 = vpop.f32.mrf.mxu0
    %v3638 = vadd.f32 0.0, %v3637
    %v3639 = vpop.f32.mrf.mxu0
    %3640 = vdwg.mxu0
    %3641 = vmatpush.bf16.msra.mxu0 %v3527
    %3642 = vmatpush.bf16.msra.mxu0 %v3524
    %3643 = vmatpush.bf16.msra.mxu0 %v3521
    %3644 = vmatpush.bf16.msra.mxu0 %v3518
    %3645 = vmatpush.bf16.msra.mxu0 %v3515
    %3646 = vmatpush.bf16.msra.mxu0 %v3512
    %3647 = vmatpush.bf16.msra.mxu0 %v3509
    %3648 = vmatpush.bf16.msra.mxu0 %v3506
    %3649 = vmatmul.bf16.gmra.mxu0 %v3255
    %v3650 = vpop.f32.mrf.mxu0
    %v3651 = vadd.f32 %v3638, %v3650
    %v3652 = vpop.f32.mrf.mxu0
    %3653 = vdwg.mxu0
    %v3654 = vld [vmem:[%s17] sm:$0x1]
    %v3655 = vld [vmem:[%s16] sm:$0x3]
    %vm3656 = vcmask 48128
    %v3658 = vsel %vm3656, %v3655, 0
    %v3661 = vsel %vm2176, %v3599, 0
    %3663 = vmatpush.msra.mxu0 0.0
    %3664 = vmatpush.msra.mxu0 0.0
    %3665 = vmatpush.msra.mxu0 0.0
    %3666 = vmatpush.msra.mxu0 0.0
    %3667 = vmatpush.msra.mxu0 0.0
    %3668 = vmatpush.msra.mxu0 0.0
    %3669 = vmatpush.msra.mxu0 0.0
    %3670 = vmatpush.msra.mxu0 0.0
    %3671 = vmatpush.msra.mxu0 0.0
    %3672 = vmatpush.msra.mxu0 0.0
    %3673 = vmatpush.msra.mxu0 0.0
    %3674 = vmatpush.msra.mxu0 0.0
    %3675 = vmatpush.msra.mxu0 0.0
    %3676 = vmatpush.msra.mxu0 0.0
    %3677 = vmatpush.msra.mxu0 0.0
    %v3678 = vand.u32 %v3661, 4294901760
    %3679 = vmatpush.msra.mxu0 %v3678
    %v3680 = vand.u32 %v3658, 4294901760
    %v3681 = vsub.f32 %v3658, %v3680
    %v3682 = vand.u32 %v3681, 4294901760
    %v3683 = vsub.f32 %v3681, %v3682
    %v3684 = vand.u32 %v3683, 4294901760
    %3685 = vmatmul.f32.gmra.mxu0 %v3684
    %v3686 = vpop.f32.mrf.mxu0
    %v3687 = vadd.f32 0.0, %v3686
    %3688 = vdwg.mxu0
    %3689 = vmatpush.msra.mxu0 0.0
    %3690 = vmatpush.msra.mxu0 0.0
    %3691 = vmatpush.msra.mxu0 0.0
    %3692 = vmatpush.msra.mxu0 0.0
    %3693 = vmatpush.msra.mxu0 0.0
    %3694 = vmatpush.msra.mxu0 0.0
    %3695 = vmatpush.msra.mxu0 0.0
    %3696 = vmatpush.msra.mxu0 0.0
    %3697 = vmatpush.msra.mxu0 0.0
    %3698 = vmatpush.msra.mxu0 0.0
    %3699 = vmatpush.msra.mxu0 0.0
    %3700 = vmatpush.msra.mxu0 0.0
    %3701 = vmatpush.msra.mxu0 0.0
    %3702 = vmatpush.msra.mxu0 0.0
    %3703 = vmatpush.msra.mxu0 0.0
    %v3704 = vand.u32 %v3661, 4294901760
    %v3705 = vsub.f32 %v3661, %v3704
    %v3706 = vand.u32 %v3705, 4294901760
    %v3707 = vsub.f32 %v3705, %v3706
    %v3708 = vand.u32 %v3707, 4294901760
    %3709 = vmatpush.msra.mxu0 %v3708
    %v3710 = vand.u32 %v3658, 4294901760
    %3711 = vmatmul.f32.gmra.mxu0 %v3710
    %v3712 = vpop.f32.mrf.mxu0
    %v3713 = vadd.f32 %v3687, %v3712
    %3714 = vdwg.mxu0
    %3715 = vmatpush.msra.mxu0 0.0
    %3716 = vmatpush.msra.mxu0 0.0
    %3717 = vmatpush.msra.mxu0 0.0
    %3718 = vmatpush.msra.mxu0 0.0
    %3719 = vmatpush.msra.mxu0 0.0
    %3720 = vmatpush.msra.mxu0 0.0
    %3721 = vmatpush.msra.mxu0 0.0
    %3722 = vmatpush.msra.mxu0 0.0
    %3723 = vmatpush.msra.mxu0 0.0
    %3724 = vmatpush.msra.mxu0 0.0
    %3725 = vmatpush.msra.mxu0 0.0
    %3726 = vmatpush.msra.mxu0 0.0
    %3727 = vmatpush.msra.mxu0 0.0
    %3728 = vmatpush.msra.mxu0 0.0
    %3729 = vmatpush.msra.mxu0 0.0
    %v3730 = vand.u32 %v3661, 4294901760
    %v3731 = vsub.f32 %v3661, %v3730
    %3732 = vmatpush.msra.mxu0 %v3731
    %v3733 = vand.u32 %v3658, 4294901760
    %v3734 = vsub.f32 %v3658, %v3733
    %3735 = vmatmul.f32.gmra.mxu0 %v3734
    %v3736 = vpop.f32.mrf.mxu0
    %v3737 = vadd.f32 %v3713, %v3736
    %3738 = vdwg.mxu0
    %3739 = vmatpush.msra.mxu0 0.0
    %3740 = vmatpush.msra.mxu0 0.0
    %3741 = vmatpush.msra.mxu0 0.0
    %3742 = vmatpush.msra.mxu0 0.0
    %3743 = vmatpush.msra.mxu0 0.0
    %3744 = vmatpush.msra.mxu0 0.0
    %3745 = vmatpush.msra.mxu0 0.0
    %3746 = vmatpush.msra.mxu0 0.0
    %3747 = vmatpush.msra.mxu0 0.0
    %3748 = vmatpush.msra.mxu0 0.0
    %3749 = vmatpush.msra.mxu0 0.0
    %3750 = vmatpush.msra.mxu0 0.0
    %3751 = vmatpush.msra.mxu0 0.0
    %3752 = vmatpush.msra.mxu0 0.0
    %3753 = vmatpush.msra.mxu0 0.0
    %v3754 = vand.u32 %v3661, 4294901760
    %3755 = vmatpush.msra.mxu0 %v3754
    %v3756 = vand.u32 %v3658, 4294901760
    %v3757 = vsub.f32 %v3658, %v3756
    %v3758 = vand.u32 %v3757, 4294901760
    %3759 = vmatmul.f32.gmra.mxu0 %v3758
    %v3760 = vpop.f32.mrf.mxu0
    %v3761 = vadd.f32 %v3737, %v3760
    %3762 = vdwg.mxu0
    %3763 = vmatpush.msra.mxu0 0.0
    %3764 = vmatpush.msra.mxu0 0.0
    %3765 = vmatpush.msra.mxu0 0.0
    %3766 = vmatpush.msra.mxu0 0.0
    %3767 = vmatpush.msra.mxu0 0.0
    %3768 = vmatpush.msra.mxu0 0.0
    %3769 = vmatpush.msra.mxu0 0.0
    %3770 = vmatpush.msra.mxu0 0.0
    %3771 = vmatpush.msra.mxu0 0.0
    %3772 = vmatpush.msra.mxu0 0.0
    %3773 = vmatpush.msra.mxu0 0.0
    %3774 = vmatpush.msra.mxu0 0.0
    %3775 = vmatpush.msra.mxu0 0.0
    %3776 = vmatpush.msra.mxu0 0.0
    %3777 = vmatpush.msra.mxu0 0.0
    %v3778 = vand.u32 %v3661, 4294901760
    %v3779 = vsub.f32 %v3661, %v3778
    %v3780 = vand.u32 %v3779, 4294901760
    %3781 = vmatpush.msra.mxu0 %v3780
    %v3782 = vand.u32 %v3658, 4294901760
    %3783 = vmatmul.f32.gmra.mxu0 %v3782
    %v3784 = vpop.f32.mrf.mxu0
    %v3785 = vadd.f32 %v3761, %v3784
    %3786 = vdwg.mxu0
    %3787 = vmatpush.msra.mxu0 0.0
    %3788 = vmatpush.msra.mxu0 0.0
    %3789 = vmatpush.msra.mxu0 0.0
    %3790 = vmatpush.msra.mxu0 0.0
    %3791 = vmatpush.msra.mxu0 0.0
    %3792 = vmatpush.msra.mxu0 0.0
    %3793 = vmatpush.msra.mxu0 0.0
    %3794 = vmatpush.msra.mxu0 0.0
    %3795 = vmatpush.msra.mxu0 0.0
    %3796 = vmatpush.msra.mxu0 0.0
    %3797 = vmatpush.msra.mxu0 0.0
    %3798 = vmatpush.msra.mxu0 0.0
    %3799 = vmatpush.msra.mxu0 0.0
    %3800 = vmatpush.msra.mxu0 0.0
    %3801 = vmatpush.msra.mxu0 0.0
    %v3802 = vand.u32 %v3661, 4294901760
    %3803 = vmatpush.msra.mxu0 %v3802
    %v3804 = vand.u32 %v3658, 4294901760
    %3805 = vmatmul.f32.gmra.mxu0 %v3804
    %v3806 = vpop.f32.mrf.mxu0
    %v3807 = vadd.f32 %v3785, %v3806
    %3808 = vdwg.mxu0
    %v3810 = vperm.slane %v3654, 0
    %v3812 = vadd.f32 %v3810, %v3807
    %s3813 = scalar_lea.vmem %s16, 2
    %v3814 = vld [vmem:[%s3813] sm:$0x3]
    %v3816 = vsel %vm3656, %v3814, 0
    %v3819 = vsel %vm2176, %v3625, 0
    %3821 = vmatpush.msra.mxu0 0.0
    %3822 = vmatpush.msra.mxu0 0.0
    %3823 = vmatpush.msra.mxu0 0.0
    %3824 = vmatpush.msra.mxu0 0.0
    %3825 = vmatpush.msra.mxu0 0.0
    %3826 = vmatpush.msra.mxu0 0.0
    %3827 = vmatpush.msra.mxu0 0.0
    %3828 = vmatpush.msra.mxu0 0.0
    %3829 = vmatpush.msra.mxu0 0.0
    %3830 = vmatpush.msra.mxu0 0.0
    %3831 = vmatpush.msra.mxu0 0.0
    %3832 = vmatpush.msra.mxu0 0.0
    %3833 = vmatpush.msra.mxu0 0.0
    %3834 = vmatpush.msra.mxu0 0.0
    %3835 = vmatpush.msra.mxu0 0.0
    %v3836 = vand.u32 %v3819, 4294901760
    %3837 = vmatpush.msra.mxu0 %v3836
    %v3838 = vand.u32 %v3816, 4294901760
    %v3839 = vsub.f32 %v3816, %v3838
    %v3840 = vand.u32 %v3839, 4294901760
    %v3841 = vsub.f32 %v3839, %v3840
    %v3842 = vand.u32 %v3841, 4294901760
    %3843 = vmatmul.f32.gmra.mxu0 %v3842
    %v3844 = vpop.f32.mrf.mxu0
    %v3845 = vadd.f32 0.0, %v3844
    %3846 = vdwg.mxu0
    %3847 = vmatpush.msra.mxu0 0.0
    %3848 = vmatpush.msra.mxu0 0.0
    %3849 = vmatpush.msra.mxu0 0.0
    %3850 = vmatpush.msra.mxu0 0.0
    %3851 = vmatpush.msra.mxu0 0.0
    %3852 = vmatpush.msra.mxu0 0.0
    %3853 = vmatpush.msra.mxu0 0.0
    %3854 = vmatpush.msra.mxu0 0.0
    %3855 = vmatpush.msra.mxu0 0.0
    %3856 = vmatpush.msra.mxu0 0.0
    %3857 = vmatpush.msra.mxu0 0.0
    %3858 = vmatpush.msra.mxu0 0.0
    %3859 = vmatpush.msra.mxu0 0.0
    %3860 = vmatpush.msra.mxu0 0.0
    %3861 = vmatpush.msra.mxu0 0.0
    %v3862 = vand.u32 %v3819, 4294901760
    %v3863 = vsub.f32 %v3819, %v3862
    %v3864 = vand.u32 %v3863, 4294901760
    %v3865 = vsub.f32 %v3863, %v3864
    %v3866 = vand.u32 %v3865, 4294901760
    %3867 = vmatpush.msra.mxu0 %v3866
    %v3868 = vand.u32 %v3816, 4294901760
    %3869 = vmatmul.f32.gmra.mxu0 %v3868
    %v3870 = vpop.f32.mrf.mxu0
    %v3871 = vadd.f32 %v3845, %v3870
    %3872 = vdwg.mxu0
    %3873 = vmatpush.msra.mxu0 0.0
    %3874 = vmatpush.msra.mxu0 0.0
    %3875 = vmatpush.msra.mxu0 0.0
    %3876 = vmatpush.msra.mxu0 0.0
    %3877 = vmatpush.msra.mxu0 0.0
    %3878 = vmatpush.msra.mxu0 0.0
    %3879 = vmatpush.msra.mxu0 0.0
    %3880 = vmatpush.msra.mxu0 0.0
    %3881 = vmatpush.msra.mxu0 0.0
    %3882 = vmatpush.msra.mxu0 0.0
    %3883 = vmatpush.msra.mxu0 0.0
    %3884 = vmatpush.msra.mxu0 0.0
    %3885 = vmatpush.msra.mxu0 0.0
    %3886 = vmatpush.msra.mxu0 0.0
    %3887 = vmatpush.msra.mxu0 0.0
    %v3888 = vand.u32 %v3819, 4294901760
    %v3889 = vsub.f32 %v3819, %v3888
    %3890 = vmatpush.msra.mxu0 %v3889
    %v3891 = vand.u32 %v3816, 4294901760
    %v3892 = vsub.f32 %v3816, %v3891
    %3893 = vmatmul.f32.gmra.mxu0 %v3892
    %v3894 = vpop.f32.mrf.mxu0
    %v3895 = vadd.f32 %v3871, %v3894
    %3896 = vdwg.mxu0
    %3897 = vmatpush.msra.mxu0 0.0
    %3898 = vmatpush.msra.mxu0 0.0
    %3899 = vmatpush.msra.mxu0 0.0
    %3900 = vmatpush.msra.mxu0 0.0
    %3901 = vmatpush.msra.mxu0 0.0
    %3902 = vmatpush.msra.mxu0 0.0
    %3903 = vmatpush.msra.mxu0 0.0
    %3904 = vmatpush.msra.mxu0 0.0
    %3905 = vmatpush.msra.mxu0 0.0
    %3906 = vmatpush.msra.mxu0 0.0
    %3907 = vmatpush.msra.mxu0 0.0
    %3908 = vmatpush.msra.mxu0 0.0
    %3909 = vmatpush.msra.mxu0 0.0
    %3910 = vmatpush.msra.mxu0 0.0
    %3911 = vmatpush.msra.mxu0 0.0
    %v3912 = vand.u32 %v3819, 4294901760
    %3913 = vmatpush.msra.mxu0 %v3912
    %v3914 = vand.u32 %v3816, 4294901760
    %v3915 = vsub.f32 %v3816, %v3914
    %v3916 = vand.u32 %v3915, 4294901760
    %3917 = vmatmul.f32.gmra.mxu0 %v3916
    %v3918 = vpop.f32.mrf.mxu0
    %v3919 = vadd.f32 %v3895, %v3918
    %3920 = vdwg.mxu0
    %3921 = vmatpush.msra.mxu0 0.0
    %3922 = vmatpush.msra.mxu0 0.0
    %3923 = vmatpush.msra.mxu0 0.0
    %3924 = vmatpush.msra.mxu0 0.0
    %3925 = vmatpush.msra.mxu0 0.0
    %3926 = vmatpush.msra.mxu0 0.0
    %3927 = vmatpush.msra.mxu0 0.0
    %3928 = vmatpush.msra.mxu0 0.0
    %3929 = vmatpush.msra.mxu0 0.0
    %3930 = vmatpush.msra.mxu0 0.0
    %3931 = vmatpush.msra.mxu0 0.0
    %3932 = vmatpush.msra.mxu0 0.0
    %3933 = vmatpush.msra.mxu0 0.0
    %3934 = vmatpush.msra.mxu0 0.0
    %3935 = vmatpush.msra.mxu0 0.0
    %v3936 = vand.u32 %v3819, 4294901760
    %v3937 = vsub.f32 %v3819, %v3936
    %v3938 = vand.u32 %v3937, 4294901760
    %3939 = vmatpush.msra.mxu0 %v3938
    %v3940 = vand.u32 %v3816, 4294901760
    %3941 = vmatmul.f32.gmra.mxu0 %v3940
    %v3942 = vpop.f32.mrf.mxu0
    %v3943 = vadd.f32 %v3919, %v3942
    %3944 = vdwg.mxu0
    %3945 = vmatpush.msra.mxu0 0.0
    %3946 = vmatpush.msra.mxu0 0.0
    %3947 = vmatpush.msra.mxu0 0.0
    %3948 = vmatpush.msra.mxu0 0.0
    %3949 = vmatpush.msra.mxu0 0.0
    %3950 = vmatpush.msra.mxu0 0.0
    %3951 = vmatpush.msra.mxu0 0.0
    %3952 = vmatpush.msra.mxu0 0.0
    %3953 = vmatpush.msra.mxu0 0.0
    %3954 = vmatpush.msra.mxu0 0.0
    %3955 = vmatpush.msra.mxu0 0.0
    %3956 = vmatpush.msra.mxu0 0.0
    %3957 = vmatpush.msra.mxu0 0.0
    %3958 = vmatpush.msra.mxu0 0.0
    %3959 = vmatpush.msra.mxu0 0.0
    %v3960 = vand.u32 %v3819, 4294901760
    %3961 = vmatpush.msra.mxu0 %v3960
    %v3962 = vand.u32 %v3816, 4294901760
    %3963 = vmatmul.f32.gmra.mxu0 %v3962
    %v3964 = vpop.f32.mrf.mxu0
    %v3965 = vadd.f32 %v3943, %v3964
    %3966 = vdwg.mxu0
    %v3967 = vadd.f32 %v3812, %v3965
    %s3968 = scalar_lea.vmem %s16, 4
    %v3969 = vld [vmem:[%s3968] sm:$0x3]
    %v3971 = vsel %vm3656, %v3969, 0
    %v3974 = vsel %vm2176, %v3651, 0
    %3976 = vmatpush.msra.mxu0 0.0
    %3977 = vmatpush.msra.mxu0 0.0
    %3978 = vmatpush.msra.mxu0 0.0
    %3979 = vmatpush.msra.mxu0 0.0
    %3980 = vmatpush.msra.mxu0 0.0
    %3981 = vmatpush.msra.mxu0 0.0
    %3982 = vmatpush.msra.mxu0 0.0
    %3983 = vmatpush.msra.mxu0 0.0
    %3984 = vmatpush.msra.mxu0 0.0
    %3985 = vmatpush.msra.mxu0 0.0
    %3986 = vmatpush.msra.mxu0 0.0
    %3987 = vmatpush.msra.mxu0 0.0
    %3988 = vmatpush.msra.mxu0 0.0
    %3989 = vmatpush.msra.mxu0 0.0
    %3990 = vmatpush.msra.mxu0 0.0
    %v3991 = vand.u32 %v3974, 4294901760
    %3992 = vmatpush.msra.mxu0 %v3991
    %v3993 = vand.u32 %v3971, 4294901760
    %v3994 = vsub.f32 %v3971, %v3993
    %v3995 = vand.u32 %v3994, 4294901760
    %v3996 = vsub.f32 %v3994, %v3995
    %v3997 = vand.u32 %v3996, 4294901760
    %3998 = vmatmul.f32.gmra.mxu0 %v3997
    %v3999 = vpop.f32.mrf.mxu0
    %v4000 = vadd.f32 0.0, %v3999
    %4001 = vdwg.mxu0
    %4002 = vmatpush.msra.mxu0 0.0
    %4003 = vmatpush.msra.mxu0 0.0
    %4004 = vmatpush.msra.mxu0 0.0
    %4005 = vmatpush.msra.mxu0 0.0
    %4006 = vmatpush.msra.mxu0 0.0
    %4007 = vmatpush.msra.mxu0 0.0
    %4008 = vmatpush.msra.mxu0 0.0
    %4009 = vmatpush.msra.mxu0 0.0
    %4010 = vmatpush.msra.mxu0 0.0
    %4011 = vmatpush.msra.mxu0 0.0
    %4012 = vmatpush.msra.mxu0 0.0
    %4013 = vmatpush.msra.mxu0 0.0
    %4014 = vmatpush.msra.mxu0 0.0
    %4015 = vmatpush.msra.mxu0 0.0
    %4016 = vmatpush.msra.mxu0 0.0
    %v4017 = vand.u32 %v3974, 4294901760
    %v4018 = vsub.f32 %v3974, %v4017
    %v4019 = vand.u32 %v4018, 4294901760
    %v4020 = vsub.f32 %v4018, %v4019
    %v4021 = vand.u32 %v4020, 4294901760
    %4022 = vmatpush.msra.mxu0 %v4021
    %v4023 = vand.u32 %v3971, 4294901760
    %4024 = vmatmul.f32.gmra.mxu0 %v4023
    %v4025 = vpop.f32.mrf.mxu0
    %v4026 = vadd.f32 %v4000, %v4025
    %4027 = vdwg.mxu0
    %4028 = vmatpush.msra.mxu0 0.0
    %4029 = vmatpush.msra.mxu0 0.0
    %4030 = vmatpush.msra.mxu0 0.0
    %4031 = vmatpush.msra.mxu0 0.0
    %4032 = vmatpush.msra.mxu0 0.0
    %4033 = vmatpush.msra.mxu0 0.0
    %4034 = vmatpush.msra.mxu0 0.0
    %4035 = vmatpush.msra.mxu0 0.0
    %4036 = vmatpush.msra.mxu0 0.0
    %4037 = vmatpush.msra.mxu0 0.0
    %4038 = vmatpush.msra.mxu0 0.0
    %4039 = vmatpush.msra.mxu0 0.0
    %4040 = vmatpush.msra.mxu0 0.0
    %4041 = vmatpush.msra.mxu0 0.0
    %4042 = vmatpush.msra.mxu0 0.0
    %v4043 = vand.u32 %v3974, 4294901760
    %v4044 = vsub.f32 %v3974, %v4043
    %4045 = vmatpush.msra.mxu0 %v4044
    %v4046 = vand.u32 %v3971, 4294901760
    %v4047 = vsub.f32 %v3971, %v4046
    %4048 = vmatmul.f32.gmra.mxu0 %v4047
    %v4049 = vpop.f32.mrf.mxu0
    %v4050 = vadd.f32 %v4026, %v4049
    %4051 = vdwg.mxu0
    %4052 = vmatpush.msra.mxu0 0.0
    %4053 = vmatpush.msra.mxu0 0.0
    %4054 = vmatpush.msra.mxu0 0.0
    %4055 = vmatpush.msra.mxu0 0.0
    %4056 = vmatpush.msra.mxu0 0.0
    %4057 = vmatpush.msra.mxu0 0.0
    %4058 = vmatpush.msra.mxu0 0.0
    %4059 = vmatpush.msra.mxu0 0.0
    %4060 = vmatpush.msra.mxu0 0.0
    %4061 = vmatpush.msra.mxu0 0.0
    %4062 = vmatpush.msra.mxu0 0.0
    %4063 = vmatpush.msra.mxu0 0.0
    %4064 = vmatpush.msra.mxu0 0.0
    %4065 = vmatpush.msra.mxu0 0.0
    %4066 = vmatpush.msra.mxu0 0.0
    %v4067 = vand.u32 %v3974, 4294901760
    %4068 = vmatpush.msra.mxu0 %v4067
    %v4069 = vand.u32 %v3971, 4294901760
    %v4070 = vsub.f32 %v3971, %v4069
    %v4071 = vand.u32 %v4070, 4294901760
    %4072 = vmatmul.f32.gmra.mxu0 %v4071
    %v4073 = vpop.f32.mrf.mxu0
    %v4074 = vadd.f32 %v4050, %v4073
    %4075 = vdwg.mxu0
    %4076 = vmatpush.msra.mxu0 0.0
    %4077 = vmatpush.msra.mxu0 0.0
    %4078 = vmatpush.msra.mxu0 0.0
    %4079 = vmatpush.msra.mxu0 0.0
    %4080 = vmatpush.msra.mxu0 0.0
    %4081 = vmatpush.msra.mxu0 0.0
    %4082 = vmatpush.msra.mxu0 0.0
    %4083 = vmatpush.msra.mxu0 0.0
    %4084 = vmatpush.msra.mxu0 0.0
    %4085 = vmatpush.msra.mxu0 0.0
    %4086 = vmatpush.msra.mxu0 0.0
    %4087 = vmatpush.msra.mxu0 0.0
    %4088 = vmatpush.msra.mxu0 0.0
    %4089 = vmatpush.msra.mxu0 0.0
    %4090 = vmatpush.msra.mxu0 0.0
    %v4091 = vand.u32 %v3974, 4294901760
    %v4092 = vsub.f32 %v3974, %v4091
    %v4093 = vand.u32 %v4092, 4294901760
    %4094 = vmatpush.msra.mxu0 %v4093
    %v4095 = vand.u32 %v3971, 4294901760
    %4096 = vmatmul.f32.gmra.mxu0 %v4095
    %v4097 = vpop.f32.mrf.mxu0
    %v4098 = vadd.f32 %v4074, %v4097
    %4099 = vdwg.mxu0
    %4100 = vmatpush.msra.mxu0 0.0
    %4101 = vmatpush.msra.mxu0 0.0
    %4102 = vmatpush.msra.mxu0 0.0
    %4103 = vmatpush.msra.mxu0 0.0
    %4104 = vmatpush.msra.mxu0 0.0
    %4105 = vmatpush.msra.mxu0 0.0
    %4106 = vmatpush.msra.mxu0 0.0
    %4107 = vmatpush.msra.mxu0 0.0
    %4108 = vmatpush.msra.mxu0 0.0
    %4109 = vmatpush.msra.mxu0 0.0
    %4110 = vmatpush.msra.mxu0 0.0
    %4111 = vmatpush.msra.mxu0 0.0
    %4112 = vmatpush.msra.mxu0 0.0
    %4113 = vmatpush.msra.mxu0 0.0
    %4114 = vmatpush.msra.mxu0 0.0
    %v4115 = vand.u32 %v3974, 4294901760
    %4116 = vmatpush.msra.mxu0 %v4115
    %v4117 = vand.u32 %v3971, 4294901760
    %4118 = vmatmul.f32.gmra.mxu0 %v4117
    %v4119 = vpop.f32.mrf.mxu0
    %v4120 = vadd.f32 %v4098, %v4119
    %4121 = vdwg.mxu0
    %v4122 = vadd.f32 %v3967, %v4120
    %4123 = vst [vmem:[#allocation11] sm:$0x3] %v4122
    // Predicated region
    $region94: #{tpu_custom_call.1} parent=1 // pred_check
      _
    $region95: #{tpu_custom_call.1} parent=1 // pred_check_branch
      %4125 = sbr.rel (0) target = $region97
    $region96: #{tpu_custom_call.1} parent=1 // pred_region
      %4127 = vsyncadd [#allocation4], 0
      %s4129 = sshll.u32 [#allocation11], 4
      %s4130 = int_to_ptr.vmem [resolvable:$true] %s4129
      %s4131 = sshll.u32 %s18, 4
      %s4132 = int_to_ptr.hbm [resolvable:$true] %s4131
      %4134 = dma.vmem_to_hbm [thread:$0]  %s4130, 32, %s4132, [#allocation4]
    $region97: #{tpu_custom_call.1} parent=1 // pred_fallthru
      _
    // Predicated region
    $region98: #{tpu_custom_call.1} parent=1 // pred_check
      _
    $region99: #{tpu_custom_call.1} parent=1 // pred_check_branch
      %4136 = sbr.rel (0) target = $region101
    $region100: #{tpu_custom_call.1} parent=1 // pred_region
      %4138 = dma.done [#allocation4], 32
    $region101: #{tpu_custom_call.1} parent=1 // pred_fallthru
      _
    %4139 = vsyncpa [#allocation3], 1
    %4140 = vsyncpa [#allocation6], 1
    %4141 = vsyncpa [#allocation9], 1
    %4142 = vsyncpa [#allocation4], 1

</llo_original>
